<compile_context>
chip_gen: v7x
topology: tpu7x:2x2x1
jax: 0.10.0
libtpu: 0.0.40
codegen_flags: <defaults>
</compile_context>

<pallas_src>
import functools

import numpy as np
import jax
import jax.numpy as jnp
from jax import lax
from jax.experimental import pallas as pl
from jax.experimental.pallas import tpu as pltpu


def _flow_kernel(x_ref, mask_ref, w_in_ref, b_in_ref, w_res_ref, b_res_ref,
                 w_out_ref, b_out_ref, flow_ref, scale_ref, *, H, W, B):
    HW = H * W
    BHW = B * HW

    def shifted(v, t):
        """Tap-t shifted copy of v (C, BHW); out-of-image positions zeroed."""
        dy, dx = t // 3 - 1, t % 3 - 1
        sh = dy * W + dx
        if sh == 0:
            return v                                        # center tap: all valid
        r = pltpu.roll(v, shift=(-sh) % BHW, axis=1)        # r[:, p] = v[:, (p+sh) mod BHW]
        return r * mask_ref[pl.ds(t, 1), :]                 # zero invalid taps

    # ---- conv_in (3x3, pad=1) + ReLU: per-tap accumulation ------------------
    x = x_ref[...]                                          # (Cin, BHW)
    acc = None
    for t in range(9):
        contrib = jnp.dot(w_in_ref[t], shifted(x, t),
                          preferred_element_type=jnp.float32)   # (Cm, BHW)
        acc = contrib if acc is None else acc + contrib
    h1 = jnp.maximum(acc + b_in_ref[...], 0.0)              # (Cm, BHW)

    # ---- conv_res (3x3, pad=1) + ReLU, residual add --------------------------
    acc = None
    for t in range(9):
        contrib = jnp.dot(w_res_ref[t], shifted(h1, t),
                          preferred_element_type=jnp.float32)   # (Cm, BHW)
        acc = contrib if acc is None else acc + contrib
    x2 = h1 + jnp.maximum(acc + b_res_ref[...], 0.0)        # (Cm, BHW)

    # ---- conv_out (1x1, 3 channels): sigmoid only on the scale row ----------
    out3 = jnp.dot(w_out_ref[...], x2,
                   preferred_element_type=jnp.float32) + b_out_ref[...]   # (3, BHW)
    flow = out3[0:2]                                        # (2, BHW)
    scale = jax.nn.sigmoid(out3[2:3])                       # (1, BHW)

    # write channel-first, per image (lane-aligned 256-wide slices)
    for b in range(B):
        flow_ref[b] = flow[:, b * HW:(b + 1) * HW]
        scale_ref[b] = scale[:, b * HW:(b + 1) * HW]


def single_input_flow_predictor(x_nchw, params):
    """x_nchw: (B, Cin, H, W) f32.  Returns (flow (B,2,H,W), scale (B,1,H,W))."""
    w_in_hwio, b_in, w_res_hwio, b_res, w_out, b_out = params
    B, Cin, H, W = x_nchw.shape
    Cm = w_in_hwio.shape[-1]
    HW = H * W
    BHW = B * HW

    # channels-major, batch folded into lanes: x2d[c, b*HW + r*W + col]
    x2d = jnp.transpose(x_nchw, (1, 0, 2, 3)).reshape(Cin, BHW)

    # 0/1 boundary-validity masks for the 9 taps (host numpy -> constant input)
    p = np.arange(HW)
    row, col = p // W, p % W
    masks = []
    for ky in range(3):
        for kx in range(3):
            dy, dx = ky - 1, kx - 1
            ok = ((row + dy >= 0) & (row + dy < H) &
                  (col + dx >= 0) & (col + dx < W))
            masks.append(ok)
    mask_np = np.stack(masks, axis=0).astype(np.float32)    # (9, HW)
    mask = jnp.asarray(np.tile(mask_np, (1, B)))            # (9, B*HW)

    # per-tap, output-major weights
    w_in_t = jnp.transpose(w_in_hwio.reshape(9, Cin, Cm), (0, 2, 1))    # (9, Cm, Cin)
    w_res_t = jnp.transpose(w_res_hwio.reshape(9, Cm, Cm), (0, 2, 1))   # (9, Cm, Cm)
    w_out_r = w_out.T                                                    # (3, Cm)
    b_in_c = b_in.reshape(Cm, 1)
    b_res_c = b_res.reshape(Cm, 1)
    b_out_c = b_out.reshape(3, 1)

    kernel = functools.partial(_flow_kernel, H=H, W=W, B=B)

    flow3, scale3 = pl.pallas_call(
        kernel,
        out_shape=(jax.ShapeDtypeStruct((B, 2, HW), jnp.float32),
                   jax.ShapeDtypeStruct((B, 1, HW), jnp.float32)),
        grid=(1,),
        in_specs=[
            pl.BlockSpec((Cin, BHW), lambda i: (0, 0)),        # x (channels-major)
            pl.BlockSpec((9, BHW), lambda i: (0, 0)),          # tap masks
            pl.BlockSpec((9, Cm, Cin), lambda i: (0, 0, 0)),   # w_in per tap
            pl.BlockSpec((Cm, 1), lambda i: (0, 0)),           # b_in
            pl.BlockSpec((9, Cm, Cm), lambda i: (0, 0, 0)),    # w_res per tap
            pl.BlockSpec((Cm, 1), lambda i: (0, 0)),           # b_res
            pl.BlockSpec((3, Cm), lambda i: (0, 0)),           # w_out
            pl.BlockSpec((3, 1), lambda i: (0, 0)),            # b_out
        ],
        out_specs=(pl.BlockSpec((B, 2, HW), lambda i: (0, 0, 0)),
                   pl.BlockSpec((B, 1, HW), lambda i: (0, 0, 0))),
        compiler_params=pltpu.CompilerParams(
            dimension_semantics=("arbitrary",)),
    )(x2d, mask, w_in_t, b_in_c, w_res_t, b_res_c, w_out_r, b_out_c)

    flow = flow3.reshape(B, 2, H, W)
    scale = scale3.reshape(B, 1, H, W)
    return flow, scale


def _ref_forward(x_nchw, params):
    """Pure-JAX reference (same math as the PyTorch module)."""
    w_in_hwio, b_in, w_res_hwio, b_res, w_out, b_out = params
    x = jnp.transpose(x_nchw, (0, 2, 3, 1))                 # NHWC
    dn = ('NHWC', 'HWIO', 'NHWC')
    h = lax.conv_general_dilated(x, w_in_hwio, (1, 1), 'SAME',
                                 dimension_numbers=dn) + b_in
    h = jnp.maximum(h, 0.0)
    r = lax.conv_general_dilated(h, w_res_hwio, (1, 1), 'SAME',
                                 dimension_numbers=dn) + b_res
    x2 = h + jnp.maximum(r, 0.0)
    out = jnp.einsum('bhwc,co->bhwo', x2, w_out) + b_out
    flow = out[..., 0:2]
    scale = jax.nn.sigmoid(out[..., 2:3])
    return jnp.transpose(flow, (0, 3, 1, 2)), jnp.transpose(scale, (0, 3, 1, 2))


if __name__ == "__main__":
    # Small shapes consistent with the module's forward.
    B, Cin, H, W = 2, 4, 16, 16
    Cm = 32  # middle_channels

    key = jax.random.PRNGKey(0)
    ks = jax.random.split(key, 7)

    x = jax.random.normal(ks[0], (B, Cin, H, W), jnp.float32)

    # Deterministic synthetic parameters (built directly in HWIO layout).
    w_in_hwio = jax.random.normal(ks[1], (3, 3, Cin, Cm), jnp.float32) * 0.1
    b_in = jax.random.normal(ks[2], (Cm,), jnp.float32) * 0.1
    w_res_hwio = jax.random.normal(ks[3], (3, 3, Cm, Cm), jnp.float32) * 0.05
    b_res = jax.random.normal(ks[4], (Cm,), jnp.float32) * 0.1
    w_out = jax.random.normal(ks[5], (Cm, 3), jnp.float32) * 0.1
    b_out = jax.random.normal(ks[6], (3,), jnp.float32) * 0.1

    params = (w_in_hwio, b_in, w_res_hwio, b_res, w_out, b_out)

    flow, scale = single_input_flow_predictor(x, params)
    jax.block_until_ready((flow, scale))

    # Correctness check against a pure-JAX reference.
    flow_ref, scale_ref = _ref_forward(x, params)
    assert flow.shape == (B, 2, H, W) and scale.shape == (B, 1, H, W)
    assert jnp.allclose(flow, flow_ref, atol=1e-4, rtol=1e-4)
    assert jnp.allclose(scale, scale_ref, atol=1e-4, rtol=1e-4)

    print("KERNEL_OK")
</pallas_src>

<mosaic_0001>
module attributes {stable_mosaic.version = 11 : i64} {
  func.func @_flow_kernel(%arg0: i32, %arg1: memref<4x512xf32, #tpu.memory_space<vmem>>, %arg2: memref<9x512xf32, #tpu.memory_space<vmem>>, %arg3: memref<9x32x4xf32, #tpu.memory_space<vmem>>, %arg4: memref<32x1xf32, #tpu.memory_space<vmem>>, %arg5: memref<9x32x32xf32, #tpu.memory_space<vmem>>, %arg6: memref<32x1xf32, #tpu.memory_space<vmem>>, %arg7: memref<3x32xf32, #tpu.memory_space<vmem>>, %arg8: memref<3x1xf32, #tpu.memory_space<vmem>>, %arg9: memref<2x2x256xf32, #tpu.memory_space<vmem>>, %arg10: memref<2x1x256xf32, #tpu.memory_space<vmem>>) attributes {dimension_semantics = [#tpu.dimension_semantics<arbitrary>], iteration_bounds = array<i64: 1>, scalar_prefetch = 0 : i64, scratch_operands = 0 : i64, tpu.core_type = #tpu.core_type<tc>, window_params = [{pipeline_mode = #tpu.pipeline_mode<synchronous>, transform_indices = @transform_0, window_bounds = array<i64: 4, 512>}, {pipeline_mode = #tpu.pipeline_mode<synchronous>, transform_indices = @transform_1, window_bounds = array<i64: 9, 512>}, {pipeline_mode = #tpu.pipeline_mode<synchronous>, transform_indices = @transform_2, window_bounds = array<i64: 9, 32, 4>}, {pipeline_mode = #tpu.pipeline_mode<synchronous>, transform_indices = @transform_3, window_bounds = array<i64: 32, 1>}, {pipeline_mode = #tpu.pipeline_mode<synchronous>, transform_indices = @transform_4, window_bounds = array<i64: 9, 32, 32>}, {pipeline_mode = #tpu.pipeline_mode<synchronous>, transform_indices = @transform_5, window_bounds = array<i64: 32, 1>}, {pipeline_mode = #tpu.pipeline_mode<synchronous>, transform_indices = @transform_6, window_bounds = array<i64: 3, 32>}, {pipeline_mode = #tpu.pipeline_mode<synchronous>, transform_indices = @transform_7, window_bounds = array<i64: 3, 1>}, {pipeline_mode = #tpu.pipeline_mode<synchronous>, transform_indices = @transform_8, window_bounds = array<i64: 2, 2, 256>}, {pipeline_mode = #tpu.pipeline_mode<synchronous>, transform_indices = @transform_9, window_bounds = array<i64: 2, 1, 256>}]} {
    %c0 = arith.constant 0 : index
    %c0_0 = arith.constant 0 : index
    %0 = vector.load %arg1[%c0, %c0_0] : memref<4x512xf32, #tpu.memory_space<vmem>>, vector<4x512xf32>
    %c0_1 = arith.constant 0 : index
    %c0_2 = arith.constant 0 : index
    %c0_3 = arith.constant 0 : index
    %1 = vector.load %arg3[%c0_1, %c0_2, %c0_3] : memref<9x32x4xf32, #tpu.memory_space<vmem>>, vector<1x32x4xf32>
    %2 = vector.shape_cast %1 : vector<1x32x4xf32> to vector<32x4xf32>
    %c17_i32 = arith.constant 17 : i32
    %3 = tpu.dynamic_rotate %0 by %c17_i32 dim 1 : vector<4x512xf32>, i32 -> vector<4x512xf32>
    %c0_4 = arith.constant 0 : index
    %c0_5 = arith.constant 0 : index
    %4 = vector.load %arg2[%c0_4, %c0_5] : memref<9x512xf32, #tpu.memory_space<vmem>>, vector<1x512xf32>
    %5 = vector.broadcast %4 : vector<1x512xf32> to vector<4x512xf32>
    %6 = arith.mulf %3, %5 : vector<4x512xf32>
    %cst = arith.constant dense<0.000000e+00> : vector<32x512xf32>
    %7 = tpu.matmul %2, %6, %cst {dimension_numbers = #tpu.dot_dimension_numbers<[1], [0], [0], [1], [0, 0, 1, 1], [], []>} : vector<32x4xf32>, vector<4x512xf32>, vector<32x512xf32> -> vector<32x512xf32>
    %c1 = arith.constant 1 : index
    %c0_6 = arith.constant 0 : index
    %c0_7 = arith.constant 0 : index
    %8 = vector.load %arg3[%c1, %c0_6, %c0_7] : memref<9x32x4xf32, #tpu.memory_space<vmem>>, vector<1x32x4xf32>
    %9 = vector.shape_cast %8 : vector<1x32x4xf32> to vector<32x4xf32>
    %c16_i32 = arith.constant 16 : i32
    %10 = tpu.dynamic_rotate %0 by %c16_i32 dim 1 : vector<4x512xf32>, i32 -> vector<4x512xf32>
    %c1_8 = arith.constant 1 : index
    %c0_9 = arith.constant 0 : index
    %11 = vector.load %arg2[%c1_8, %c0_9] : memref<9x512xf32, #tpu.memory_space<vmem>>, vector<1x512xf32>
    %12 = vector.broadcast %11 : vector<1x512xf32> to vector<4x512xf32>
    %13 = arith.mulf %10, %12 : vector<4x512xf32>
    %cst_10 = arith.constant dense<0.000000e+00> : vector<32x512xf32>
    %14 = tpu.matmul %9, %13, %cst_10 {dimension_numbers = #tpu.dot_dimension_numbers<[1], [0], [0], [1], [0, 0, 1, 1], [], []>} : vector<32x4xf32>, vector<4x512xf32>, vector<32x512xf32> -> vector<32x512xf32>
    %15 = arith.addf %7, %14 : vector<32x512xf32>
    %c2 = arith.constant 2 : index
    %c0_11 = arith.constant 0 : index
    %c0_12 = arith.constant 0 : index
    %16 = vector.load %arg3[%c2, %c0_11, %c0_12] : memref<9x32x4xf32, #tpu.memory_space<vmem>>, vector<1x32x4xf32>
    %17 = vector.shape_cast %16 : vector<1x32x4xf32> to vector<32x4xf32>
    %c15_i32 = arith.constant 15 : i32
    %18 = tpu.dynamic_rotate %0 by %c15_i32 dim 1 : vector<4x512xf32>, i32 -> vector<4x512xf32>
    %c2_13 = arith.constant 2 : index
    %c0_14 = arith.constant 0 : index
    %19 = vector.load %arg2[%c2_13, %c0_14] : memref<9x512xf32, #tpu.memory_space<vmem>>, vector<1x512xf32>
    %20 = vector.broadcast %19 : vector<1x512xf32> to vector<4x512xf32>
    %21 = arith.mulf %18, %20 : vector<4x512xf32>
    %cst_15 = arith.constant dense<0.000000e+00> : vector<32x512xf32>
    %22 = tpu.matmul %17, %21, %cst_15 {dimension_numbers = #tpu.dot_dimension_numbers<[1], [0], [0], [1], [0, 0, 1, 1], [], []>} : vector<32x4xf32>, vector<4x512xf32>, vector<32x512xf32> -> vector<32x512xf32>
    %23 = arith.addf %15, %22 : vector<32x512xf32>
    %c3 = arith.constant 3 : index
    %c0_16 = arith.constant 0 : index
    %c0_17 = arith.constant 0 : index
    %24 = vector.load %arg3[%c3, %c0_16, %c0_17] : memref<9x32x4xf32, #tpu.memory_space<vmem>>, vector<1x32x4xf32>
    %25 = vector.shape_cast %24 : vector<1x32x4xf32> to vector<32x4xf32>
    %c1_i32 = arith.constant 1 : i32
    %26 = tpu.dynamic_rotate %0 by %c1_i32 dim 1 : vector<4x512xf32>, i32 -> vector<4x512xf32>
    %c3_18 = arith.constant 3 : index
    %c0_19 = arith.constant 0 : index
    %27 = vector.load %arg2[%c3_18, %c0_19] : memref<9x512xf32, #tpu.memory_space<vmem>>, vector<1x512xf32>
    %28 = vector.broadcast %27 : vector<1x512xf32> to vector<4x512xf32>
    %29 = arith.mulf %26, %28 : vector<4x512xf32>
    %cst_20 = arith.constant dense<0.000000e+00> : vector<32x512xf32>
    %30 = tpu.matmul %25, %29, %cst_20 {dimension_numbers = #tpu.dot_dimension_numbers<[1], [0], [0], [1], [0, 0, 1, 1], [], []>} : vector<32x4xf32>, vector<4x512xf32>, vector<32x512xf32> -> vector<32x512xf32>
    %31 = arith.addf %23, %30 : vector<32x512xf32>
    %c4 = arith.constant 4 : index
    %c0_21 = arith.constant 0 : index
    %c0_22 = arith.constant 0 : index
    %32 = vector.load %arg3[%c4, %c0_21, %c0_22] : memref<9x32x4xf32, #tpu.memory_space<vmem>>, vector<1x32x4xf32>
    %33 = vector.shape_cast %32 : vector<1x32x4xf32> to vector<32x4xf32>
    %cst_23 = arith.constant dense<0.000000e+00> : vector<32x512xf32>
    %34 = tpu.matmul %33, %0, %cst_23 {dimension_numbers = #tpu.dot_dimension_numbers<[1], [0], [0], [1], [0, 0, 1, 1], [], []>} : vector<32x4xf32>, vector<4x512xf32>, vector<32x512xf32> -> vector<32x512xf32>
    %35 = arith.addf %31, %34 : vector<32x512xf32>
    %c5 = arith.constant 5 : index
    %c0_24 = arith.constant 0 : index
    %c0_25 = arith.constant 0 : index
    %36 = vector.load %arg3[%c5, %c0_24, %c0_25] : memref<9x32x4xf32, #tpu.memory_space<vmem>>, vector<1x32x4xf32>
    %37 = vector.shape_cast %36 : vector<1x32x4xf32> to vector<32x4xf32>
    %c511_i32 = arith.constant 511 : i32
    %38 = tpu.dynamic_rotate %0 by %c511_i32 dim 1 : vector<4x512xf32>, i32 -> vector<4x512xf32>
    %c5_26 = arith.constant 5 : index
    %c0_27 = arith.constant 0 : index
    %39 = vector.load %arg2[%c5_26, %c0_27] : memref<9x512xf32, #tpu.memory_space<vmem>>, vector<1x512xf32>
    %40 = vector.broadcast %39 : vector<1x512xf32> to vector<4x512xf32>
    %41 = arith.mulf %38, %40 : vector<4x512xf32>
    %cst_28 = arith.constant dense<0.000000e+00> : vector<32x512xf32>
    %42 = tpu.matmul %37, %41, %cst_28 {dimension_numbers = #tpu.dot_dimension_numbers<[1], [0], [0], [1], [0, 0, 1, 1], [], []>} : vector<32x4xf32>, vector<4x512xf32>, vector<32x512xf32> -> vector<32x512xf32>
    %43 = arith.addf %35, %42 : vector<32x512xf32>
    %c6 = arith.constant 6 : index
    %c0_29 = arith.constant 0 : index
    %c0_30 = arith.constant 0 : index
    %44 = vector.load %arg3[%c6, %c0_29, %c0_30] : memref<9x32x4xf32, #tpu.memory_space<vmem>>, vector<1x32x4xf32>
    %45 = vector.shape_cast %44 : vector<1x32x4xf32> to vector<32x4xf32>
    %c497_i32 = arith.constant 497 : i32
    %46 = tpu.dynamic_rotate %0 by %c497_i32 dim 1 : vector<4x512xf32>, i32 -> vector<4x512xf32>
    %c6_31 = arith.constant 6 : index
    %c0_32 = arith.constant 0 : index
    %47 = vector.load %arg2[%c6_31, %c0_32] : memref<9x512xf32, #tpu.memory_space<vmem>>, vector<1x512xf32>
    %48 = vector.broadcast %47 : vector<1x512xf32> to vector<4x512xf32>
    %49 = arith.mulf %46, %48 : vector<4x512xf32>
    %cst_33 = arith.constant dense<0.000000e+00> : vector<32x512xf32>
    %50 = tpu.matmul %45, %49, %cst_33 {dimension_numbers = #tpu.dot_dimension_numbers<[1], [0], [0], [1], [0, 0, 1, 1], [], []>} : vector<32x4xf32>, vector<4x512xf32>, vector<32x512xf32> -> vector<32x512xf32>
    %51 = arith.addf %43, %50 : vector<32x512xf32>
    %c7 = arith.constant 7 : index
    %c0_34 = arith.constant 0 : index
    %c0_35 = arith.constant 0 : index
    %52 = vector.load %arg3[%c7, %c0_34, %c0_35] : memref<9x32x4xf32, #tpu.memory_space<vmem>>, vector<1x32x4xf32>
    %53 = vector.shape_cast %52 : vector<1x32x4xf32> to vector<32x4xf32>
    %c496_i32 = arith.constant 496 : i32
    %54 = tpu.dynamic_rotate %0 by %c496_i32 dim 1 : vector<4x512xf32>, i32 -> vector<4x512xf32>
    %c7_36 = arith.constant 7 : index
    %c0_37 = arith.constant 0 : index
    %55 = vector.load %arg2[%c7_36, %c0_37] : memref<9x512xf32, #tpu.memory_space<vmem>>, vector<1x512xf32>
    %56 = vector.broadcast %55 : vector<1x512xf32> to vector<4x512xf32>
    %57 = arith.mulf %54, %56 : vector<4x512xf32>
    %cst_38 = arith.constant dense<0.000000e+00> : vector<32x512xf32>
    %58 = tpu.matmul %53, %57, %cst_38 {dimension_numbers = #tpu.dot_dimension_numbers<[1], [0], [0], [1], [0, 0, 1, 1], [], []>} : vector<32x4xf32>, vector<4x512xf32>, vector<32x512xf32> -> vector<32x512xf32>
    %59 = arith.addf %51, %58 : vector<32x512xf32>
    %c8 = arith.constant 8 : index
    %c0_39 = arith.constant 0 : index
    %c0_40 = arith.constant 0 : index
    %60 = vector.load %arg3[%c8, %c0_39, %c0_40] : memref<9x32x4xf32, #tpu.memory_space<vmem>>, vector<1x32x4xf32>
    %61 = vector.shape_cast %60 : vector<1x32x4xf32> to vector<32x4xf32>
    %c495_i32 = arith.constant 495 : i32
    %62 = tpu.dynamic_rotate %0 by %c495_i32 dim 1 : vector<4x512xf32>, i32 -> vector<4x512xf32>
    %c8_41 = arith.constant 8 : index
    %c0_42 = arith.constant 0 : index
    %63 = vector.load %arg2[%c8_41, %c0_42] : memref<9x512xf32, #tpu.memory_space<vmem>>, vector<1x512xf32>
    %64 = vector.broadcast %63 : vector<1x512xf32> to vector<4x512xf32>
    %65 = arith.mulf %62, %64 : vector<4x512xf32>
    %cst_43 = arith.constant dense<0.000000e+00> : vector<32x512xf32>
    %66 = tpu.matmul %61, %65, %cst_43 {dimension_numbers = #tpu.dot_dimension_numbers<[1], [0], [0], [1], [0, 0, 1, 1], [], []>} : vector<32x4xf32>, vector<4x512xf32>, vector<32x512xf32> -> vector<32x512xf32>
    %67 = arith.addf %59, %66 : vector<32x512xf32>
    %c0_44 = arith.constant 0 : index
    %c0_45 = arith.constant 0 : index
    %68 = vector.load %arg4[%c0_44, %c0_45] : memref<32x1xf32, #tpu.memory_space<vmem>>, vector<32x1xf32>
    %69 = vector.broadcast %68 : vector<32x1xf32> to vector<32x512xf32>
    %70 = arith.addf %67, %69 : vector<32x512xf32>
    %cst_46 = arith.constant 0.000000e+00 : f32
    %71 = vector.broadcast %cst_46 : f32 to vector<32x512xf32>
    %72 = arith.maximumf %70, %71 : vector<32x512xf32>
    %c0_47 = arith.constant 0 : index
    %c0_48 = arith.constant 0 : index
    %c0_49 = arith.constant 0 : index
    %73 = vector.load %arg5[%c0_47, %c0_48, %c0_49] : memref<9x32x32xf32, #tpu.memory_space<vmem>>, vector<1x32x32xf32>
    %74 = vector.shape_cast %73 : vector<1x32x32xf32> to vector<32x32xf32>
    %c17_i32_50 = arith.constant 17 : i32
    %75 = tpu.dynamic_rotate %72 by %c17_i32_50 dim 1 : vector<32x512xf32>, i32 -> vector<32x512xf32>
    %c0_51 = arith.constant 0 : index
    %c0_52 = arith.constant 0 : index
    %76 = vector.load %arg2[%c0_51, %c0_52] : memref<9x512xf32, #tpu.memory_space<vmem>>, vector<1x512xf32>
    %77 = vector.broadcast %76 : vector<1x512xf32> to vector<32x512xf32>
    %78 = arith.mulf %75, %77 : vector<32x512xf32>
    %cst_53 = arith.constant dense<0.000000e+00> : vector<32x512xf32>
    %79 = tpu.matmul %74, %78, %cst_53 {dimension_numbers = #tpu.dot_dimension_numbers<[1], [0], [0], [1], [0, 0, 1, 1], [], []>} : vector<32x32xf32>, vector<32x512xf32>, vector<32x512xf32> -> vector<32x512xf32>
    %c1_54 = arith.constant 1 : index
    %c0_55 = arith.constant 0 : index
    %c0_56 = arith.constant 0 : index
    %80 = vector.load %arg5[%c1_54, %c0_55, %c0_56] : memref<9x32x32xf32, #tpu.memory_space<vmem>>, vector<1x32x32xf32>
    %81 = vector.shape_cast %80 : vector<1x32x32xf32> to vector<32x32xf32>
    %c16_i32_57 = arith.constant 16 : i32
    %82 = tpu.dynamic_rotate %72 by %c16_i32_57 dim 1 : vector<32x512xf32>, i32 -> vector<32x512xf32>
    %c1_58 = arith.constant 1 : index
    %c0_59 = arith.constant 0 : index
    %83 = vector.load %arg2[%c1_58, %c0_59] : memref<9x512xf32, #tpu.memory_space<vmem>>, vector<1x512xf32>
    %84 = vector.broadcast %83 : vector<1x512xf32> to vector<32x512xf32>
    %85 = arith.mulf %82, %84 : vector<32x512xf32>
    %cst_60 = arith.constant dense<0.000000e+00> : vector<32x512xf32>
    %86 = tpu.matmul %81, %85, %cst_60 {dimension_numbers = #tpu.dot_dimension_numbers<[1], [0], [0], [1], [0, 0, 1, 1], [], []>} : vector<32x32xf32>, vector<32x512xf32>, vector<32x512xf32> -> vector<32x512xf32>
    %87 = arith.addf %79, %86 : vector<32x512xf32>
    %c2_61 = arith.constant 2 : index
    %c0_62 = arith.constant 0 : index
    %c0_63 = arith.constant 0 : index
    %88 = vector.load %arg5[%c2_61, %c0_62, %c0_63] : memref<9x32x32xf32, #tpu.memory_space<vmem>>, vector<1x32x32xf32>
    %89 = vector.shape_cast %88 : vector<1x32x32xf32> to vector<32x32xf32>
    %c15_i32_64 = arith.constant 15 : i32
    %90 = tpu.dynamic_rotate %72 by %c15_i32_64 dim 1 : vector<32x512xf32>, i32 -> vector<32x512xf32>
    %c2_65 = arith.constant 2 : index
    %c0_66 = arith.constant 0 : index
    %91 = vector.load %arg2[%c2_65, %c0_66] : memref<9x512xf32, #tpu.memory_space<vmem>>, vector<1x512xf32>
    %92 = vector.broadcast %91 : vector<1x512xf32> to vector<32x512xf32>
    %93 = arith.mulf %90, %92 : vector<32x512xf32>
    %cst_67 = arith.constant dense<0.000000e+00> : vector<32x512xf32>
    %94 = tpu.matmul %89, %93, %cst_67 {dimension_numbers = #tpu.dot_dimension_numbers<[1], [0], [0], [1], [0, 0, 1, 1], [], []>} : vector<32x32xf32>, vector<32x512xf32>, vector<32x512xf32> -> vector<32x512xf32>
    %95 = arith.addf %87, %94 : vector<32x512xf32>
    %c3_68 = arith.constant 3 : index
    %c0_69 = arith.constant 0 : index
    %c0_70 = arith.constant 0 : index
    %96 = vector.load %arg5[%c3_68, %c0_69, %c0_70] : memref<9x32x32xf32, #tpu.memory_space<vmem>>, vector<1x32x32xf32>
    %97 = vector.shape_cast %96 : vector<1x32x32xf32> to vector<32x32xf32>
    %c1_i32_71 = arith.constant 1 : i32
    %98 = tpu.dynamic_rotate %72 by %c1_i32_71 dim 1 : vector<32x512xf32>, i32 -> vector<32x512xf32>
    %c3_72 = arith.constant 3 : index
    %c0_73 = arith.constant 0 : index
    %99 = vector.load %arg2[%c3_72, %c0_73] : memref<9x512xf32, #tpu.memory_space<vmem>>, vector<1x512xf32>
    %100 = vector.broadcast %99 : vector<1x512xf32> to vector<32x512xf32>
    %101 = arith.mulf %98, %100 : vector<32x512xf32>
    %cst_74 = arith.constant dense<0.000000e+00> : vector<32x512xf32>
    %102 = tpu.matmul %97, %101, %cst_74 {dimension_numbers = #tpu.dot_dimension_numbers<[1], [0], [0], [1], [0, 0, 1, 1], [], []>} : vector<32x32xf32>, vector<32x512xf32>, vector<32x512xf32> -> vector<32x512xf32>
    %103 = arith.addf %95, %102 : vector<32x512xf32>
    %c4_75 = arith.constant 4 : index
    %c0_76 = arith.constant 0 : index
    %c0_77 = arith.constant 0 : index
    %104 = vector.load %arg5[%c4_75, %c0_76, %c0_77] : memref<9x32x32xf32, #tpu.memory_space<vmem>>, vector<1x32x32xf32>
    %105 = vector.shape_cast %104 : vector<1x32x32xf32> to vector<32x32xf32>
    %cst_78 = arith.constant dense<0.000000e+00> : vector<32x512xf32>
    %106 = tpu.matmul %105, %72, %cst_78 {dimension_numbers = #tpu.dot_dimension_numbers<[1], [0], [0], [1], [0, 0, 1, 1], [], []>} : vector<32x32xf32>, vector<32x512xf32>, vector<32x512xf32> -> vector<32x512xf32>
    %107 = arith.addf %103, %106 : vector<32x512xf32>
    %c5_79 = arith.constant 5 : index
    %c0_80 = arith.constant 0 : index
    %c0_81 = arith.constant 0 : index
    %108 = vector.load %arg5[%c5_79, %c0_80, %c0_81] : memref<9x32x32xf32, #tpu.memory_space<vmem>>, vector<1x32x32xf32>
    %109 = vector.shape_cast %108 : vector<1x32x32xf32> to vector<32x32xf32>
    %c511_i32_82 = arith.constant 511 : i32
    %110 = tpu.dynamic_rotate %72 by %c511_i32_82 dim 1 : vector<32x512xf32>, i32 -> vector<32x512xf32>
    %c5_83 = arith.constant 5 : index
    %c0_84 = arith.constant 0 : index
    %111 = vector.load %arg2[%c5_83, %c0_84] : memref<9x512xf32, #tpu.memory_space<vmem>>, vector<1x512xf32>
    %112 = vector.broadcast %111 : vector<1x512xf32> to vector<32x512xf32>
    %113 = arith.mulf %110, %112 : vector<32x512xf32>
    %cst_85 = arith.constant dense<0.000000e+00> : vector<32x512xf32>
    %114 = tpu.matmul %109, %113, %cst_85 {dimension_numbers = #tpu.dot_dimension_numbers<[1], [0], [0], [1], [0, 0, 1, 1], [], []>} : vector<32x32xf32>, vector<32x512xf32>, vector<32x512xf32> -> vector<32x512xf32>
    %115 = arith.addf %107, %114 : vector<32x512xf32>
    %c6_86 = arith.constant 6 : index
    %c0_87 = arith.constant 0 : index
    %c0_88 = arith.constant 0 : index
    %116 = vector.load %arg5[%c6_86, %c0_87, %c0_88] : memref<9x32x32xf32, #tpu.memory_space<vmem>>, vector<1x32x32xf32>
    %117 = vector.shape_cast %116 : vector<1x32x32xf32> to vector<32x32xf32>
    %c497_i32_89 = arith.constant 497 : i32
    %118 = tpu.dynamic_rotate %72 by %c497_i32_89 dim 1 : vector<32x512xf32>, i32 -> vector<32x512xf32>
    %c6_90 = arith.constant 6 : index
    %c0_91 = arith.constant 0 : index
    %119 = vector.load %arg2[%c6_90, %c0_91] : memref<9x512xf32, #tpu.memory_space<vmem>>, vector<1x512xf32>
    %120 = vector.broadcast %119 : vector<1x512xf32> to vector<32x512xf32>
    %121 = arith.mulf %118, %120 : vector<32x512xf32>
    %cst_92 = arith.constant dense<0.000000e+00> : vector<32x512xf32>
    %122 = tpu.matmul %117, %121, %cst_92 {dimension_numbers = #tpu.dot_dimension_numbers<[1], [0], [0], [1], [0, 0, 1, 1], [], []>} : vector<32x32xf32>, vector<32x512xf32>, vector<32x512xf32> -> vector<32x512xf32>
    %123 = arith.addf %115, %122 : vector<32x512xf32>
    %c7_93 = arith.constant 7 : index
    %c0_94 = arith.constant 0 : index
    %c0_95 = arith.constant 0 : index
    %124 = vector.load %arg5[%c7_93, %c0_94, %c0_95] : memref<9x32x32xf32, #tpu.memory_space<vmem>>, vector<1x32x32xf32>
    %125 = vector.shape_cast %124 : vector<1x32x32xf32> to vector<32x32xf32>
    %c496_i32_96 = arith.constant 496 : i32
    %126 = tpu.dynamic_rotate %72 by %c496_i32_96 dim 1 : vector<32x512xf32>, i32 -> vector<32x512xf32>
    %c7_97 = arith.constant 7 : index
    %c0_98 = arith.constant 0 : index
    %127 = vector.load %arg2[%c7_97, %c0_98] : memref<9x512xf32, #tpu.memory_space<vmem>>, vector<1x512xf32>
    %128 = vector.broadcast %127 : vector<1x512xf32> to vector<32x512xf32>
    %129 = arith.mulf %126, %128 : vector<32x512xf32>
    %cst_99 = arith.constant dense<0.000000e+00> : vector<32x512xf32>
    %130 = tpu.matmul %125, %129, %cst_99 {dimension_numbers = #tpu.dot_dimension_numbers<[1], [0], [0], [1], [0, 0, 1, 1], [], []>} : vector<32x32xf32>, vector<32x512xf32>, vector<32x512xf32> -> vector<32x512xf32>
    %131 = arith.addf %123, %130 : vector<32x512xf32>
    %c8_100 = arith.constant 8 : index
    %c0_101 = arith.constant 0 : index
    %c0_102 = arith.constant 0 : index
    %132 = vector.load %arg5[%c8_100, %c0_101, %c0_102] : memref<9x32x32xf32, #tpu.memory_space<vmem>>, vector<1x32x32xf32>
    %133 = vector.shape_cast %132 : vector<1x32x32xf32> to vector<32x32xf32>
    %c495_i32_103 = arith.constant 495 : i32
    %134 = tpu.dynamic_rotate %72 by %c495_i32_103 dim 1 : vector<32x512xf32>, i32 -> vector<32x512xf32>
    %c8_104 = arith.constant 8 : index
    %c0_105 = arith.constant 0 : index
    %135 = vector.load %arg2[%c8_104, %c0_105] : memref<9x512xf32, #tpu.memory_space<vmem>>, vector<1x512xf32>
    %136 = vector.broadcast %135 : vector<1x512xf32> to vector<32x512xf32>
    %137 = arith.mulf %134, %136 : vector<32x512xf32>
    %cst_106 = arith.constant dense<0.000000e+00> : vector<32x512xf32>
    %138 = tpu.matmul %133, %137, %cst_106 {dimension_numbers = #tpu.dot_dimension_numbers<[1], [0], [0], [1], [0, 0, 1, 1], [], []>} : vector<32x32xf32>, vector<32x512xf32>, vector<32x512xf32> -> vector<32x512xf32>
    %139 = arith.addf %131, %138 : vector<32x512xf32>
    %c0_107 = arith.constant 0 : index
    %c0_108 = arith.constant 0 : index
    %140 = vector.load %arg6[%c0_107, %c0_108] : memref<32x1xf32, #tpu.memory_space<vmem>>, vector<32x1xf32>
    %141 = vector.broadcast %140 : vector<32x1xf32> to vector<32x512xf32>
    %142 = arith.addf %139, %141 : vector<32x512xf32>
    %cst_109 = arith.constant 0.000000e+00 : f32
    %143 = vector.broadcast %cst_109 : f32 to vector<32x512xf32>
    %144 = arith.maximumf %142, %143 : vector<32x512xf32>
    %145 = arith.addf %72, %144 : vector<32x512xf32>
    %c0_110 = arith.constant 0 : index
    %c0_111 = arith.constant 0 : index
    %146 = vector.load %arg7[%c0_110, %c0_111] : memref<3x32xf32, #tpu.memory_space<vmem>>, vector<3x32xf32>
    %cst_112 = arith.constant dense<0.000000e+00> : vector<3x512xf32>
    %147 = tpu.matmul %146, %145, %cst_112 {dimension_numbers = #tpu.dot_dimension_numbers<[1], [0], [0], [1], [0, 0, 1, 1], [], []>} : vector<3x32xf32>, vector<32x512xf32>, vector<3x512xf32> -> vector<3x512xf32>
    %c0_113 = arith.constant 0 : index
    %c0_114 = arith.constant 0 : index
    %148 = vector.load %arg8[%c0_113, %c0_114] : memref<3x1xf32, #tpu.memory_space<vmem>>, vector<3x1xf32>
    %149 = vector.broadcast %148 : vector<3x1xf32> to vector<3x512xf32>
    %150 = arith.addf %147, %149 : vector<3x512xf32>
    %151 = vector.extract_strided_slice %150 {offsets = [0, 0], sizes = [2, 512], strides = [1, 1]} : vector<3x512xf32> to vector<2x512xf32>
    %152 = vector.extract_strided_slice %150 {offsets = [2, 0], sizes = [1, 512], strides = [1, 1]} : vector<3x512xf32> to vector<1x512xf32>
    %153 = arith.negf %152 : vector<1x512xf32>
    %154 = math.exp %153 : vector<1x512xf32>
    %cst_115 = arith.constant 1.000000e+00 : f32
    %155 = vector.broadcast %cst_115 : f32 to vector<1x512xf32>
    %156 = arith.addf %155, %154 : vector<1x512xf32>
    %157 = arith.divf %155, %156 : vector<1x512xf32>
    %158 = vector.extract_strided_slice %151 {offsets = [0, 0], sizes = [2, 256], strides = [1, 1]} : vector<2x512xf32> to vector<2x256xf32>
    %c0_116 = arith.constant 0 : index
    %c0_117 = arith.constant 0 : index
    %c0_118 = arith.constant 0 : index
    %159 = vector.load %arg9[%c0_116, %c0_117, %c0_118] : memref<2x2x256xf32, #tpu.memory_space<vmem>>, vector<1x2x256xf32>
    %160 = vector.shape_cast %159 : vector<1x2x256xf32> to vector<2x256xf32>
    %161 = vector.shape_cast %158 : vector<2x256xf32> to vector<1x2x256xf32>
    tpu.vector_store %arg9[%c0_116, %c0_117, %c0_118], %161 {strides = array<i32>} : memref<2x2x256xf32, #tpu.memory_space<vmem>>, vector<1x2x256xf32>,
    %162 = vector.extract_strided_slice %157 {offsets = [0, 0], sizes = [1, 256], strides = [1, 1]} : vector<1x512xf32> to vector<1x256xf32>
    %c0_119 = arith.constant 0 : index
    %c0_120 = arith.constant 0 : index
    %c0_121 = arith.constant 0 : index
    %163 = vector.load %arg10[%c0_119, %c0_120, %c0_121] : memref<2x1x256xf32, #tpu.memory_space<vmem>>, vector<1x1x256xf32>
    %164 = vector.shape_cast %163 : vector<1x1x256xf32> to vector<1x256xf32>
    %165 = vector.shape_cast %162 : vector<1x256xf32> to vector<1x1x256xf32>
    tpu.vector_store %arg10[%c0_119, %c0_120, %c0_121], %165 {strides = array<i32>} : memref<2x1x256xf32, #tpu.memory_space<vmem>>, vector<1x1x256xf32>,
    %166 = vector.extract_strided_slice %151 {offsets = [0, 256], sizes = [2, 256], strides = [1, 1]} : vector<2x512xf32> to vector<2x256xf32>
    %c1_122 = arith.constant 1 : index
    %c0_123 = arith.constant 0 : index
    %c0_124 = arith.constant 0 : index
    %167 = vector.load %arg9[%c1_122, %c0_123, %c0_124] : memref<2x2x256xf32, #tpu.memory_space<vmem>>, vector<1x2x256xf32>
    %168 = vector.shape_cast %167 : vector<1x2x256xf32> to vector<2x256xf32>
    %169 = vector.shape_cast %166 : vector<2x256xf32> to vector<1x2x256xf32>
    tpu.vector_store %arg9[%c1_122, %c0_123, %c0_124], %169 {strides = array<i32>} : memref<2x2x256xf32, #tpu.memory_space<vmem>>, vector<1x2x256xf32>,
    %170 = vector.extract_strided_slice %157 {offsets = [0, 256], sizes = [1, 256], strides = [1, 1]} : vector<1x512xf32> to vector<1x256xf32>
    %c1_125 = arith.constant 1 : index
    %c0_126 = arith.constant 0 : index
    %c0_127 = arith.constant 0 : index
    %171 = vector.load %arg10[%c1_125, %c0_126, %c0_127] : memref<2x1x256xf32, #tpu.memory_space<vmem>>, vector<1x1x256xf32>
    %172 = vector.shape_cast %171 : vector<1x1x256xf32> to vector<1x256xf32>
    %173 = vector.shape_cast %170 : vector<1x256xf32> to vector<1x1x256xf32>
    tpu.vector_store %arg10[%c1_125, %c0_126, %c0_127], %173 {strides = array<i32>} : memref<2x1x256xf32, #tpu.memory_space<vmem>>, vector<1x1x256xf32>,
    return
  }
  func.func @transform_0(%arg0: i32) -> (i32, i32) {
    %c0_i32 = arith.constant 0 : i32
    %c0_i32_0 = arith.constant 0 : i32
    %c0_i32_1 = arith.constant 0 : i32
    return %c0_i32, %c0_i32_0 : i32, i32
  }
  func.func @transform_1(%arg0: i32) -> (i32, i32) {
    %c0_i32 = arith.constant 0 : i32
    %c0_i32_0 = arith.constant 0 : i32
    %c0_i32_1 = arith.constant 0 : i32
    return %c0_i32, %c0_i32_0 : i32, i32
  }
  func.func @transform_2(%arg0: i32) -> (i32, i32, i32) {
    %c0_i32 = arith.constant 0 : i32
    %c0_i32_0 = arith.constant 0 : i32
    %c0_i32_1 = arith.constant 0 : i32
    %c0_i32_2 = arith.constant 0 : i32
    return %c0_i32, %c0_i32_0, %c0_i32_1 : i32, i32, i32
  }
  func.func @transform_3(%arg0: i32) -> (i32, i32) {
    %c0_i32 = arith.constant 0 : i32
    %c0_i32_0 = arith.constant 0 : i32
    %c0_i32_1 = arith.constant 0 : i32
    return %c0_i32, %c0_i32_0 : i32, i32
  }
  func.func @transform_4(%arg0: i32) -> (i32, i32, i32) {
    %c0_i32 = arith.constant 0 : i32
    %c0_i32_0 = arith.constant 0 : i32
    %c0_i32_1 = arith.constant 0 : i32
    %c0_i32_2 = arith.constant 0 : i32
    return %c0_i32, %c0_i32_0, %c0_i32_1 : i32, i32, i32
  }
  func.func @transform_5(%arg0: i32) -> (i32, i32) {
    %c0_i32 = arith.constant 0 : i32
    %c0_i32_0 = arith.constant 0 : i32
    %c0_i32_1 = arith.constant 0 : i32
    return %c0_i32, %c0_i32_0 : i32, i32
  }
  func.func @transform_6(%arg0: i32) -> (i32, i32) {
    %c0_i32 = arith.constant 0 : i32
    %c0_i32_0 = arith.constant 0 : i32
    %c0_i32_1 = arith.constant 0 : i32
    return %c0_i32, %c0_i32_0 : i32, i32
  }
  func.func @transform_7(%arg0: i32) -> (i32, i32) {
    %c0_i32 = arith.constant 0 : i32
    %c0_i32_0 = arith.constant 0 : i32
    %c0_i32_1 = arith.constant 0 : i32
    return %c0_i32, %c0_i32_0 : i32, i32
  }
  func.func @transform_8(%arg0: i32) -> (i32, i32, i32) {
    %c0_i32 = arith.constant 0 : i32
    %c0_i32_0 = arith.constant 0 : i32
    %c0_i32_1 = arith.constant 0 : i32
    %c0_i32_2 = arith.constant 0 : i32
    return %c0_i32, %c0_i32_0, %c0_i32_1 : i32, i32, i32
  }
  func.func @transform_9(%arg0: i32) -> (i32, i32, i32) {
    %c0_i32 = arith.constant 0 : i32
    %c0_i32_0 = arith.constant 0 : i32
    %c0_i32_1 = arith.constant 0 : i32
    %c0_i32_2 = arith.constant 0 : i32
    return %c0_i32, %c0_i32_0, %c0_i32_1 : i32, i32, i32
  }
}

</mosaic_0001>

<llo_original>
// kernel: tpu_custom_call.1
$region0: #{tpu_custom_call.1}
  #allocation0 [shape = 'u32[]', space=smem, size = 0x4, offset = 0x4, fixed_abs, tag = 'smem constant byte address 0x4 - core index']
  #allocation1 [shape = 'u32[144,128]{1,0:T(1,128)}', space=vmem, size = 0x12000, scoped, tag = 'internal scratch']
  %s0 = inlined_call_operand.vmem [shape: f32[4,512], index: 0, kind: input, shape index: {}]
  %s1 = inlined_call_operand.vmem [shape: f32[9,512], index: 1, kind: input, shape index: {}]
  %s2 = inlined_call_operand.vmem [shape: f32[9,32,4], index: 2, kind: input, shape index: {}]
  %s3 = inlined_call_operand.vmem [shape: f32[32,1], index: 3, kind: input, shape index: {}]
  %s4 = inlined_call_operand.vmem [shape: f32[9,32,32], index: 4, kind: input, shape index: {}]
  %s5 = inlined_call_operand.vmem [shape: f32[32,1], index: 5, kind: input, shape index: {}]
  %s6 = inlined_call_operand.vmem [shape: f32[3,32], index: 6, kind: input, shape index: {}]
  %s7 = inlined_call_operand.vmem [shape: f32[3,1], index: 7, kind: input, shape index: {}]
  %s8 = inlined_call_operand.hbm [shape: f32[2,2,256], index: 8, kind: output, shape index: {0}]
  %s9 = inlined_call_operand.hbm [shape: f32[2,1,256], index: 9, kind: output, shape index: {1}]
  %10 = xla_tuple %s8, %s9
  %s11 = sld [smem:[#allocation0]]
  $region50: #{tpu_custom_call.1} parent=0
    _
  %s13 = ssub.s32 1, %s11
  %s14 = scalar_select 0, %s13, %s11
  $region1: #{tpu_custom_call.1} parent=0
    #allocation2 [shape = 'u8[4096]{0}', space=vmem, size = 0x1000, scoped, tag = 'output window, operand 0, single buffered']
    #allocation3 [shape = 's32[1]{0}', space=sflag, size = 0x4, scoped, tag = 'scoped memory for tpu_custom_call.1']
    #allocation4 [shape = 'u8[2048]{0}', space=vmem, size = 0x800, scoped, tag = 'output window, operand 1, single buffered']
    #allocation5 [shape = 's32[1]{0}', space=sflag, size = 0x4, scoped, tag = 'scoped memory for tpu_custom_call.1']
    %15 = vsyncpa [#allocation3], 0
    %16 = vsyncpa [#allocation5], 0
    // Predicated region
    $region2: #{tpu_custom_call.1} parent=1 // pred_check
      _
    $region3: #{tpu_custom_call.1} parent=1 // pred_check_branch
      %18 = sbr.rel (0) target = $region5
    $region4: #{tpu_custom_call.1} parent=1 // pred_region
      _
    $region5: #{tpu_custom_call.1} parent=1 // pred_fallthru
      _
    // Predicated region
    $region6: #{tpu_custom_call.1} parent=1 // pred_check
      _
    $region7: #{tpu_custom_call.1} parent=1 // pred_check_branch
      %20 = sbr.rel (0) target = $region9
    $region8: #{tpu_custom_call.1} parent=1 // pred_region
      _
    $region9: #{tpu_custom_call.1} parent=1 // pred_fallthru
      _
    // Predicated region
    $region10: #{tpu_custom_call.1} parent=1 // pred_check
      _
    $region11: #{tpu_custom_call.1} parent=1 // pred_check_branch
      %22 = sbr.rel (0) target = $region13
    $region12: #{tpu_custom_call.1} parent=1 // pred_region
      _
    $region13: #{tpu_custom_call.1} parent=1 // pred_fallthru
      _
    // Predicated region
    $region14: #{tpu_custom_call.1} parent=1 // pred_check
      _
    $region15: #{tpu_custom_call.1} parent=1 // pred_check_branch
      %24 = sbr.rel (0) target = $region17
    $region16: #{tpu_custom_call.1} parent=1 // pred_region
      _
    $region17: #{tpu_custom_call.1} parent=1 // pred_fallthru
      _
    // Predicated region
    $region18: #{tpu_custom_call.1} parent=1 // pred_check
      _
    $region19: #{tpu_custom_call.1} parent=1 // pred_check_branch
      %26 = sbr.rel (0) target = $region21
    $region20: #{tpu_custom_call.1} parent=1 // pred_region
      _
    $region21: #{tpu_custom_call.1} parent=1 // pred_fallthru
      _
    // Predicated region
    $region22: #{tpu_custom_call.1} parent=1 // pred_check
      _
    $region23: #{tpu_custom_call.1} parent=1 // pred_check_branch
      %28 = sbr.rel (0) target = $region25
    $region24: #{tpu_custom_call.1} parent=1 // pred_region
      _
    $region25: #{tpu_custom_call.1} parent=1 // pred_fallthru
      _
    // Predicated region
    $region26: #{tpu_custom_call.1} parent=1 // pred_check
      _
    $region27: #{tpu_custom_call.1} parent=1 // pred_check_branch
      %30 = sbr.rel (0) target = $region29
    $region28: #{tpu_custom_call.1} parent=1 // pred_region
      _
    $region29: #{tpu_custom_call.1} parent=1 // pred_fallthru
      _
    // Predicated region
    $region30: #{tpu_custom_call.1} parent=1 // pred_check
      _
    $region31: #{tpu_custom_call.1} parent=1 // pred_check_branch
      %32 = sbr.rel (0) target = $region33
    $region32: #{tpu_custom_call.1} parent=1 // pred_region
      _
    $region33: #{tpu_custom_call.1} parent=1 // pred_fallthru
      _
    %v33 = vld [vmem:[%s0] sm:$0xff]
    %v34 = vld [vmem:[%s0 + $0x8] sm:$0xff]
    %v35 = vld [vmem:[%s2] sm:$0xff]
    %v36 = vld [vmem:[%s2 + $0x8] sm:$0xff]
    %v37 = vld [vmem:[%s2 + $0x10] sm:$0xff]
    %v38 = vld [vmem:[%s2 + $0x18] sm:$0xff]
    %v41 = vcombine.high %v33, %v33
    %v42 = vcombine.high %v34, %v34
    %45 = vrot.lane.b32.xlu0 %v33, 17
    %v46 = vpop.permute.xlu0 %45
    %47 = vrot.lane.b32.xlu0 %v41, 17
    %v48 = vpop.permute.xlu0 %47
    %49 = vrot.lane.b32.xlu0 %v34, 17
    %v50 = vpop.permute.xlu0 %49
    %51 = vrot.lane.b32.xlu0 %v42, 17
    %v52 = vpop.permute.xlu0 %51
    %v53 = vlaneseq
    %v54 = vand.u32 %v53, 127
    %vm55 = vcmp.lt.s32.totalorder %v54, 17
    %v56 = vsel %vm55, %v50, %v52
    %v57 = vsel %vm55, %v48, %v50
    %v58 = vsel %vm55, %v46, %v48
    %v59 = vsel %vm55, %v52, %v46
    %v60 = vld [vmem:[%s1] ss:$8 sm:$0xf]
    %v62 = vlaneseq
    %v63 = vshrl.u32 %v62, 7
    %v64 = vsub.s32 0, %v63
    %v65 = vrot.slane %v60, %v64
    %v66 = vlaneseq
    %v67 = vshrl.u32 %v66, 7
    %v68 = vsub.s32 1, %v67
    %v69 = vrot.slane %v60, %v68
    %v70 = vlaneseq
    %v71 = vshrl.u32 %v70, 7
    %v72 = vsub.s32 2, %v71
    %v73 = vrot.slane %v60, %v72
    %v74 = vlaneseq
    %v75 = vshrl.u32 %v74, 7
    %v76 = vsub.s32 3, %v75
    %v77 = vrot.slane %v60, %v76
    %v82 = vmul.f32 %v59, %v65
    %v83 = vmul.f32 %v58, %v69
    %v84 = vmul.f32 %v57, %v73
    %v85 = vmul.f32 %v56, %v77
    %s86 = scalar_lea.vmem %s2, 32
    %v87 = vld [vmem:[%s86] sm:$0xff]
    %v88 = vld [vmem:[%s86 + $0x8] sm:$0xff]
    %v89 = vld [vmem:[%s86 + $0x10] sm:$0xff]
    %v90 = vld [vmem:[%s86 + $0x18] sm:$0xff]
    %91 = vrot.lane.b32.xlu0 %v33, 16
    %v92 = vpop.permute.xlu0 %91
    %93 = vrot.lane.b32.xlu0 %v41, 16
    %v94 = vpop.permute.xlu0 %93
    %95 = vrot.lane.b32.xlu0 %v34, 16
    %v96 = vpop.permute.xlu0 %95
    %97 = vrot.lane.b32.xlu0 %v42, 16
    %v98 = vpop.permute.xlu0 %97
    %vm99 = vcmp.lt.s32.totalorder %v54, 16
    %v100 = vsel %vm99, %v96, %v98
    %v101 = vsel %vm99, %v94, %v96
    %v102 = vsel %vm99, %v92, %v94
    %v103 = vsel %vm99, %v98, %v92
    %s104 = scalar_lea.vmem %s1, 1
    %v105 = vld [vmem:[%s104] ss:$8 sm:$0xf]
    %v107 = vlaneseq
    %v108 = vshrl.u32 %v107, 7
    %v109 = vsub.s32 0, %v108
    %v110 = vrot.slane %v105, %v109
    %v111 = vlaneseq
    %v112 = vshrl.u32 %v111, 7
    %v113 = vsub.s32 1, %v112
    %v114 = vrot.slane %v105, %v113
    %v115 = vlaneseq
    %v116 = vshrl.u32 %v115, 7
    %v117 = vsub.s32 2, %v116
    %v118 = vrot.slane %v105, %v117
    %v119 = vlaneseq
    %v120 = vshrl.u32 %v119, 7
    %v121 = vsub.s32 3, %v120
    %v122 = vrot.slane %v105, %v121
    %v127 = vmul.f32 %v103, %v110
    %v128 = vmul.f32 %v102, %v114
    %v129 = vmul.f32 %v101, %v118
    %v130 = vmul.f32 %v100, %v122
    %vm131 = vcmask 31744
    %v133 = vsel %vm131, %v87, 0
    %v136 = vsel %vm131, %v88, 0
    %v139 = vsel %vm131, %v89, 0
    %v142 = vsel %vm131, %v90, 0
    %vm144 = vcmask 1043456
    %v146 = vsel %vm144, %v127, 0
    %v149 = vsel %vm144, %v128, 0
    %v152 = vsel %vm144, %v129, 0
    %v155 = vsel %vm144, %v130, 0
    %157 = vmatprep.subr.mxu0 %v149
    %158 = vmatpush1.msra.mxu0 %v146
    %159 = vmatprep.subr.mxu0 0.0
    %160 = vmatpush1.msra.mxu0 0.0
    %161 = vmatprep.subr.mxu0 0.0
    %162 = vmatpush1.msra.mxu0 0.0
    %163 = vmatprep.subr.mxu0 0.0
    %164 = vmatpush1.msra.mxu0 0.0
    %165 = vmatprep.subr.mxu0 0.0
    %166 = vmatpush1.msra.mxu0 0.0
    %167 = vmatprep.subr.mxu0 0.0
    %168 = vmatpush1.msra.mxu0 0.0
    %169 = vmatprep.subr.mxu0 0.0
    %170 = vmatpush1.msra.mxu0 0.0
    %171 = vmatprep.subr.mxu0 0.0
    %172 = vmatpush1.msra.mxu0 0.0
    %173 = vmatprep.subr.mxu0 0.0
    %174 = vmatpush1.msra.mxu0 0.0
    %175 = vmatprep.subr.mxu0 0.0
    %176 = vmatpush1.msra.mxu0 0.0
    %177 = vmatprep.subr.mxu0 0.0
    %178 = vmatpush1.msra.mxu0 0.0
    %179 = vmatprep.subr.mxu0 0.0
    %180 = vmatpush1.msra.mxu0 0.0
    %181 = vmatprep.subr.mxu0 0.0
    %182 = vmatpush1.msra.mxu0 0.0
    %183 = vmatprep.subr.mxu0 0.0
    %184 = vmatpush1.msra.mxu0 0.0
    %185 = vmatprep.subr.mxu0 0.0
    %186 = vmatpush1.msra.mxu0 0.0
    %187 = vmatprep.subr.mxu0 0.0
    %188 = vmatpush1.msra.mxu0 0.0
    %189 = vmatprep.subr.mxu0 0.0
    %190 = vmatpush1.msra.mxu0 0.0
    %191 = vmatprep.subr.mxu0 0.0
    %192 = vmatpush1.msra.mxu0 0.0
    %193 = vmatprep.subr.mxu0 0.0
    %194 = vmatpush1.msra.mxu0 0.0
    %195 = vmatprep.subr.mxu0 0.0
    %196 = vmatpush1.msra.mxu0 0.0
    %197 = vmatprep.subr.mxu0 0.0
    %198 = vmatpush1.msra.mxu0 0.0
    %199 = vmatprep.subr.mxu0 0.0
    %200 = vmatpush1.msra.mxu0 0.0
    %201 = vmatprep.subr.mxu0 0.0
    %202 = vmatpush1.msra.mxu0 0.0
    %203 = vmatprep.subr.mxu0 0.0
    %204 = vmatpush1.msra.mxu0 0.0
    %205 = vmatprep.subr.mxu0 0.0
    %206 = vmatpush1.msra.mxu0 0.0
    %207 = vmatprep.subr.mxu0 0.0
    %208 = vmatpush1.msra.mxu0 0.0
    %209 = vmatprep.subr.mxu0 0.0
    %210 = vmatpush1.msra.mxu0 0.0
    %211 = vmatprep.subr.mxu0 0.0
    %212 = vmatpush1.msra.mxu0 0.0
    %213 = vmatprep.subr.mxu0 0.0
    %214 = vmatpush1.msra.mxu0 0.0
    %215 = vmatprep.subr.mxu0 0.0
    %216 = vmatpush1.msra.mxu0 0.0
    %217 = vmatprep.subr.mxu0 0.0
    %218 = vmatpush1.msra.mxu0 0.0
    %219 = vmatprep.subr.mxu0 0.0
    %220 = vmatpush1.msra.mxu0 0.0
    %221 = vmatprep.mubr.f32.mxu0 0.0
    %222 = vmatmul.mubr.f32.gmra.mrb[0].mxu0 %v133
    %v223 = vpop.f32.mrb[0].mxu0
    %v224 = vadd.f32 0.0, %v223
    %v225 = vpop.f32.mrb[0].mxu0
    %v226 = vadd.f32 0.0, %v225
    %227 = vmatprep.mubr.f32.mxu0 0.0
    %228 = vmatmul.mubr.f32.gmra.mrb[0].mxu0 %v136
    %v229 = vpop.f32.mrb[0].mxu0
    %v230 = vadd.f32 0.0, %v229
    %v231 = vpop.f32.mrb[0].mxu0
    %v232 = vadd.f32 0.0, %v231
    %233 = vmatprep.mubr.f32.mxu0 0.0
    %234 = vmatmul.mubr.f32.gmra.mrb[0].mxu0 %v139
    %v235 = vpop.f32.mrb[0].mxu0
    %v236 = vadd.f32 0.0, %v235
    %v237 = vpop.f32.mrb[0].mxu0
    %v238 = vadd.f32 0.0, %v237
    %239 = vmatprep.mubr.f32.mxu0 0.0
    %240 = vmatmul.mubr.f32.gmra.mrb[0].mxu0 %v142
    %v241 = vpop.f32.mrb[0].mxu0
    %v242 = vadd.f32 0.0, %v241
    %v243 = vpop.f32.mrb[0].mxu0
    %v244 = vadd.f32 0.0, %v243
    %245 = vdwg.mxu0
    %246 = vmatprep.subr.mxu0 %v155
    %247 = vmatpush1.msra.mxu0 %v152
    %248 = vmatprep.subr.mxu0 0.0
    %249 = vmatpush1.msra.mxu0 0.0
    %250 = vmatprep.subr.mxu0 0.0
    %251 = vmatpush1.msra.mxu0 0.0
    %252 = vmatprep.subr.mxu0 0.0
    %253 = vmatpush1.msra.mxu0 0.0
    %254 = vmatprep.subr.mxu0 0.0
    %255 = vmatpush1.msra.mxu0 0.0
    %256 = vmatprep.subr.mxu0 0.0
    %257 = vmatpush1.msra.mxu0 0.0
    %258 = vmatprep.subr.mxu0 0.0
    %259 = vmatpush1.msra.mxu0 0.0
    %260 = vmatprep.subr.mxu0 0.0
    %261 = vmatpush1.msra.mxu0 0.0
    %262 = vmatprep.subr.mxu0 0.0
    %263 = vmatpush1.msra.mxu0 0.0
    %264 = vmatprep.subr.mxu0 0.0
    %265 = vmatpush1.msra.mxu0 0.0
    %266 = vmatprep.subr.mxu0 0.0
    %267 = vmatpush1.msra.mxu0 0.0
    %268 = vmatprep.subr.mxu0 0.0
    %269 = vmatpush1.msra.mxu0 0.0
    %270 = vmatprep.subr.mxu0 0.0
    %271 = vmatpush1.msra.mxu0 0.0
    %272 = vmatprep.subr.mxu0 0.0
    %273 = vmatpush1.msra.mxu0 0.0
    %274 = vmatprep.subr.mxu0 0.0
    %275 = vmatpush1.msra.mxu0 0.0
    %276 = vmatprep.subr.mxu0 0.0
    %277 = vmatpush1.msra.mxu0 0.0
    %278 = vmatprep.subr.mxu0 0.0
    %279 = vmatpush1.msra.mxu0 0.0
    %280 = vmatprep.subr.mxu0 0.0
    %281 = vmatpush1.msra.mxu0 0.0
    %282 = vmatprep.subr.mxu0 0.0
    %283 = vmatpush1.msra.mxu0 0.0
    %284 = vmatprep.subr.mxu0 0.0
    %285 = vmatpush1.msra.mxu0 0.0
    %286 = vmatprep.subr.mxu0 0.0
    %287 = vmatpush1.msra.mxu0 0.0
    %288 = vmatprep.subr.mxu0 0.0
    %289 = vmatpush1.msra.mxu0 0.0
    %290 = vmatprep.subr.mxu0 0.0
    %291 = vmatpush1.msra.mxu0 0.0
    %292 = vmatprep.subr.mxu0 0.0
    %293 = vmatpush1.msra.mxu0 0.0
    %294 = vmatprep.subr.mxu0 0.0
    %295 = vmatpush1.msra.mxu0 0.0
    %296 = vmatprep.subr.mxu0 0.0
    %297 = vmatpush1.msra.mxu0 0.0
    %298 = vmatprep.subr.mxu0 0.0
    %299 = vmatpush1.msra.mxu0 0.0
    %300 = vmatprep.subr.mxu0 0.0
    %301 = vmatpush1.msra.mxu0 0.0
    %302 = vmatprep.subr.mxu0 0.0
    %303 = vmatpush1.msra.mxu0 0.0
    %304 = vmatprep.subr.mxu0 0.0
    %305 = vmatpush1.msra.mxu0 0.0
    %306 = vmatprep.subr.mxu0 0.0
    %307 = vmatpush1.msra.mxu0 0.0
    %308 = vmatprep.subr.mxu0 0.0
    %309 = vmatpush1.msra.mxu0 0.0
    %310 = vmatprep.mubr.f32.mxu0 0.0
    %311 = vmatmul.mubr.f32.gmra.mrb[0].mxu0 %v133
    %v312 = vpop.f32.mrb[0].mxu0
    %v313 = vadd.f32 0.0, %v312
    %v314 = vpop.f32.mrb[0].mxu0
    %v315 = vadd.f32 0.0, %v314
    %316 = vmatprep.mubr.f32.mxu0 0.0
    %317 = vmatmul.mubr.f32.gmra.mrb[0].mxu0 %v136
    %v318 = vpop.f32.mrb[0].mxu0
    %v319 = vadd.f32 0.0, %v318
    %v320 = vpop.f32.mrb[0].mxu0
    %v321 = vadd.f32 0.0, %v320
    %322 = vmatprep.mubr.f32.mxu0 0.0
    %323 = vmatmul.mubr.f32.gmra.mrb[0].mxu0 %v139
    %v324 = vpop.f32.mrb[0].mxu0
    %v325 = vadd.f32 0.0, %v324
    %v326 = vpop.f32.mrb[0].mxu0
    %v327 = vadd.f32 0.0, %v326
    %328 = vmatprep.mubr.f32.mxu0 0.0
    %329 = vmatmul.mubr.f32.gmra.mrb[0].mxu0 %v142
    %v330 = vpop.f32.mrb[0].mxu0
    %v331 = vadd.f32 0.0, %v330
    %v332 = vpop.f32.mrb[0].mxu0
    %v333 = vadd.f32 0.0, %v332
    %334 = vdwg.mxu0
    %v336 = vsel %vm131, %v35, 0
    %v339 = vsel %vm131, %v36, 0
    %v342 = vsel %vm131, %v37, 0
    %v345 = vsel %vm131, %v38, 0
    %v348 = vsel %vm144, %v82, 0
    %v351 = vsel %vm144, %v83, 0
    %v354 = vsel %vm144, %v84, 0
    %v357 = vsel %vm144, %v85, 0
    %359 = vmatprep.subr.mxu0 %v351
    %360 = vmatpush1.msra.mxu0 %v348
    %361 = vmatprep.subr.mxu0 0.0
    %362 = vmatpush1.msra.mxu0 0.0
    %363 = vmatprep.subr.mxu0 0.0
    %364 = vmatpush1.msra.mxu0 0.0
    %365 = vmatprep.subr.mxu0 0.0
    %366 = vmatpush1.msra.mxu0 0.0
    %367 = vmatprep.subr.mxu0 0.0
    %368 = vmatpush1.msra.mxu0 0.0
    %369 = vmatprep.subr.mxu0 0.0
    %370 = vmatpush1.msra.mxu0 0.0
    %371 = vmatprep.subr.mxu0 0.0
    %372 = vmatpush1.msra.mxu0 0.0
    %373 = vmatprep.subr.mxu0 0.0
    %374 = vmatpush1.msra.mxu0 0.0
    %375 = vmatprep.subr.mxu0 0.0
    %376 = vmatpush1.msra.mxu0 0.0
    %377 = vmatprep.subr.mxu0 0.0
    %378 = vmatpush1.msra.mxu0 0.0
    %379 = vmatprep.subr.mxu0 0.0
    %380 = vmatpush1.msra.mxu0 0.0
    %381 = vmatprep.subr.mxu0 0.0
    %382 = vmatpush1.msra.mxu0 0.0
    %383 = vmatprep.subr.mxu0 0.0
    %384 = vmatpush1.msra.mxu0 0.0
    %385 = vmatprep.subr.mxu0 0.0
    %386 = vmatpush1.msra.mxu0 0.0
    %387 = vmatprep.subr.mxu0 0.0
    %388 = vmatpush1.msra.mxu0 0.0
    %389 = vmatprep.subr.mxu0 0.0
    %390 = vmatpush1.msra.mxu0 0.0
    %391 = vmatprep.subr.mxu0 0.0
    %392 = vmatpush1.msra.mxu0 0.0
    %393 = vmatprep.subr.mxu0 0.0
    %394 = vmatpush1.msra.mxu0 0.0
    %395 = vmatprep.subr.mxu0 0.0
    %396 = vmatpush1.msra.mxu0 0.0
    %397 = vmatprep.subr.mxu0 0.0
    %398 = vmatpush1.msra.mxu0 0.0
    %399 = vmatprep.subr.mxu0 0.0
    %400 = vmatpush1.msra.mxu0 0.0
    %401 = vmatprep.subr.mxu0 0.0
    %402 = vmatpush1.msra.mxu0 0.0
    %403 = vmatprep.subr.mxu0 0.0
    %404 = vmatpush1.msra.mxu0 0.0
    %405 = vmatprep.subr.mxu0 0.0
    %406 = vmatpush1.msra.mxu0 0.0
    %407 = vmatprep.subr.mxu0 0.0
    %408 = vmatpush1.msra.mxu0 0.0
    %409 = vmatprep.subr.mxu0 0.0
    %410 = vmatpush1.msra.mxu0 0.0
    %411 = vmatprep.subr.mxu0 0.0
    %412 = vmatpush1.msra.mxu0 0.0
    %413 = vmatprep.subr.mxu0 0.0
    %414 = vmatpush1.msra.mxu0 0.0
    %415 = vmatprep.subr.mxu0 0.0
    %416 = vmatpush1.msra.mxu0 0.0
    %417 = vmatprep.subr.mxu0 0.0
    %418 = vmatpush1.msra.mxu0 0.0
    %419 = vmatprep.subr.mxu0 0.0
    %420 = vmatpush1.msra.mxu0 0.0
    %421 = vmatprep.subr.mxu0 0.0
    %422 = vmatpush1.msra.mxu0 0.0
    %423 = vmatprep.mubr.f32.mxu0 0.0
    %424 = vmatmul.mubr.f32.gmra.mrb[0].mxu0 %v336
    %v425 = vpop.f32.mrb[0].mxu0
    %v426 = vadd.f32 %v224, %v425
    %v427 = vpop.f32.mrb[0].mxu0
    %v428 = vadd.f32 %v226, %v427
    %429 = vmatprep.mubr.f32.mxu0 0.0
    %430 = vmatmul.mubr.f32.gmra.mrb[0].mxu0 %v339
    %v431 = vpop.f32.mrb[0].mxu0
    %v432 = vadd.f32 %v230, %v431
    %v433 = vpop.f32.mrb[0].mxu0
    %v434 = vadd.f32 %v232, %v433
    %435 = vmatprep.mubr.f32.mxu0 0.0
    %436 = vmatmul.mubr.f32.gmra.mrb[0].mxu0 %v342
    %v437 = vpop.f32.mrb[0].mxu0
    %v438 = vadd.f32 %v236, %v437
    %v439 = vpop.f32.mrb[0].mxu0
    %v440 = vadd.f32 %v238, %v439
    %441 = vmatprep.mubr.f32.mxu0 0.0
    %442 = vmatmul.mubr.f32.gmra.mrb[0].mxu0 %v345
    %v443 = vpop.f32.mrb[0].mxu0
    %v444 = vadd.f32 %v242, %v443
    %v445 = vpop.f32.mrb[0].mxu0
    %v446 = vadd.f32 %v244, %v445
    %447 = vdwg.mxu0
    %448 = vmatprep.subr.mxu0 %v357
    %449 = vmatpush1.msra.mxu0 %v354
    %450 = vmatprep.subr.mxu0 0.0
    %451 = vmatpush1.msra.mxu0 0.0
    %452 = vmatprep.subr.mxu0 0.0
    %453 = vmatpush1.msra.mxu0 0.0
    %454 = vmatprep.subr.mxu0 0.0
    %455 = vmatpush1.msra.mxu0 0.0
    %456 = vmatprep.subr.mxu0 0.0
    %457 = vmatpush1.msra.mxu0 0.0
    %458 = vmatprep.subr.mxu0 0.0
    %459 = vmatpush1.msra.mxu0 0.0
    %460 = vmatprep.subr.mxu0 0.0
    %461 = vmatpush1.msra.mxu0 0.0
    %462 = vmatprep.subr.mxu0 0.0
    %463 = vmatpush1.msra.mxu0 0.0
    %464 = vmatprep.subr.mxu0 0.0
    %465 = vmatpush1.msra.mxu0 0.0
    %466 = vmatprep.subr.mxu0 0.0
    %467 = vmatpush1.msra.mxu0 0.0
    %468 = vmatprep.subr.mxu0 0.0
    %469 = vmatpush1.msra.mxu0 0.0
    %470 = vmatprep.subr.mxu0 0.0
    %471 = vmatpush1.msra.mxu0 0.0
    %472 = vmatprep.subr.mxu0 0.0
    %473 = vmatpush1.msra.mxu0 0.0
    %474 = vmatprep.subr.mxu0 0.0
    %475 = vmatpush1.msra.mxu0 0.0
    %476 = vmatprep.subr.mxu0 0.0
    %477 = vmatpush1.msra.mxu0 0.0
    %478 = vmatprep.subr.mxu0 0.0
    %479 = vmatpush1.msra.mxu0 0.0
    %480 = vmatprep.subr.mxu0 0.0
    %481 = vmatpush1.msra.mxu0 0.0
    %482 = vmatprep.subr.mxu0 0.0
    %483 = vmatpush1.msra.mxu0 0.0
    %484 = vmatprep.subr.mxu0 0.0
    %485 = vmatpush1.msra.mxu0 0.0
    %486 = vmatprep.subr.mxu0 0.0
    %487 = vmatpush1.msra.mxu0 0.0
    %488 = vmatprep.subr.mxu0 0.0
    %489 = vmatpush1.msra.mxu0 0.0
    %490 = vmatprep.subr.mxu0 0.0
    %491 = vmatpush1.msra.mxu0 0.0
    %492 = vmatprep.subr.mxu0 0.0
    %493 = vmatpush1.msra.mxu0 0.0
    %494 = vmatprep.subr.mxu0 0.0
    %495 = vmatpush1.msra.mxu0 0.0
    %496 = vmatprep.subr.mxu0 0.0
    %497 = vmatpush1.msra.mxu0 0.0
    %498 = vmatprep.subr.mxu0 0.0
    %499 = vmatpush1.msra.mxu0 0.0
    %500 = vmatprep.subr.mxu0 0.0
    %501 = vmatpush1.msra.mxu0 0.0
    %502 = vmatprep.subr.mxu0 0.0
    %503 = vmatpush1.msra.mxu0 0.0
    %504 = vmatprep.subr.mxu0 0.0
    %505 = vmatpush1.msra.mxu0 0.0
    %506 = vmatprep.subr.mxu0 0.0
    %507 = vmatpush1.msra.mxu0 0.0
    %508 = vmatprep.subr.mxu0 0.0
    %509 = vmatpush1.msra.mxu0 0.0
    %510 = vmatprep.subr.mxu0 0.0
    %511 = vmatpush1.msra.mxu0 0.0
    %512 = vmatprep.mubr.f32.mxu0 0.0
    %513 = vmatmul.mubr.f32.gmra.mrb[0].mxu0 %v336
    %v514 = vpop.f32.mrb[0].mxu0
    %v515 = vadd.f32 %v313, %v514
    %v516 = vpop.f32.mrb[0].mxu0
    %v517 = vadd.f32 %v315, %v516
    %518 = vmatprep.mubr.f32.mxu0 0.0
    %519 = vmatmul.mubr.f32.gmra.mrb[0].mxu0 %v339
    %v520 = vpop.f32.mrb[0].mxu0
    %v521 = vadd.f32 %v319, %v520
    %v522 = vpop.f32.mrb[0].mxu0
    %v523 = vadd.f32 %v321, %v522
    %524 = vmatprep.mubr.f32.mxu0 0.0
    %525 = vmatmul.mubr.f32.gmra.mrb[0].mxu0 %v342
    %v526 = vpop.f32.mrb[0].mxu0
    %v527 = vadd.f32 %v325, %v526
    %v528 = vpop.f32.mrb[0].mxu0
    %v529 = vadd.f32 %v327, %v528
    %530 = vmatprep.mubr.f32.mxu0 0.0
    %531 = vmatmul.mubr.f32.gmra.mrb[0].mxu0 %v345
    %v532 = vpop.f32.mrb[0].mxu0
    %v533 = vadd.f32 %v331, %v532
    %v534 = vpop.f32.mrb[0].mxu0
    %v535 = vadd.f32 %v333, %v534
    %536 = vdwg.mxu0
    %s537 = scalar_lea.vmem %s2, 64
    %v538 = vld [vmem:[%s537] sm:$0xff]
    %v539 = vld [vmem:[%s537 + $0x8] sm:$0xff]
    %v540 = vld [vmem:[%s537 + $0x10] sm:$0xff]
    %v541 = vld [vmem:[%s537 + $0x18] sm:$0xff]
    %542 = vrot.lane.b32.xlu0 %v33, 15
    %v543 = vpop.permute.xlu0 %542
    %544 = vrot.lane.b32.xlu0 %v41, 15
    %v545 = vpop.permute.xlu0 %544
    %546 = vrot.lane.b32.xlu0 %v34, 15
    %v547 = vpop.permute.xlu0 %546
    %548 = vrot.lane.b32.xlu0 %v42, 15
    %v549 = vpop.permute.xlu0 %548
    %vm550 = vcmp.lt.s32.totalorder %v54, 15
    %v551 = vsel %vm550, %v547, %v549
    %v552 = vsel %vm550, %v545, %v547
    %v553 = vsel %vm550, %v543, %v545
    %v554 = vsel %vm550, %v549, %v543
    %s555 = scalar_lea.vmem %s1, 2
    %v556 = vld [vmem:[%s555] ss:$8 sm:$0xf]
    %v558 = vlaneseq
    %v559 = vshrl.u32 %v558, 7
    %v560 = vsub.s32 0, %v559
    %v561 = vrot.slane %v556, %v560
    %v562 = vlaneseq
    %v563 = vshrl.u32 %v562, 7
    %v564 = vsub.s32 1, %v563
    %v565 = vrot.slane %v556, %v564
    %v566 = vlaneseq
    %v567 = vshrl.u32 %v566, 7
    %v568 = vsub.s32 2, %v567
    %v569 = vrot.slane %v556, %v568
    %v570 = vlaneseq
    %v571 = vshrl.u32 %v570, 7
    %v572 = vsub.s32 3, %v571
    %v573 = vrot.slane %v556, %v572
    %v578 = vmul.f32 %v554, %v561
    %v579 = vmul.f32 %v553, %v565
    %v580 = vmul.f32 %v552, %v569
    %v581 = vmul.f32 %v551, %v573
    %v583 = vsel %vm131, %v538, 0
    %v586 = vsel %vm131, %v539, 0
    %v589 = vsel %vm131, %v540, 0
    %v592 = vsel %vm131, %v541, 0
    %v595 = vsel %vm144, %v578, 0
    %v598 = vsel %vm144, %v579, 0
    %v601 = vsel %vm144, %v580, 0
    %v604 = vsel %vm144, %v581, 0
    %606 = vmatprep.subr.mxu0 %v598
    %607 = vmatpush1.msra.mxu0 %v595
    %608 = vmatprep.subr.mxu0 0.0
    %609 = vmatpush1.msra.mxu0 0.0
    %610 = vmatprep.subr.mxu0 0.0
    %611 = vmatpush1.msra.mxu0 0.0
    %612 = vmatprep.subr.mxu0 0.0
    %613 = vmatpush1.msra.mxu0 0.0
    %614 = vmatprep.subr.mxu0 0.0
    %615 = vmatpush1.msra.mxu0 0.0
    %616 = vmatprep.subr.mxu0 0.0
    %617 = vmatpush1.msra.mxu0 0.0
    %618 = vmatprep.subr.mxu0 0.0
    %619 = vmatpush1.msra.mxu0 0.0
    %620 = vmatprep.subr.mxu0 0.0
    %621 = vmatpush1.msra.mxu0 0.0
    %622 = vmatprep.subr.mxu0 0.0
    %623 = vmatpush1.msra.mxu0 0.0
    %624 = vmatprep.subr.mxu0 0.0
    %625 = vmatpush1.msra.mxu0 0.0
    %626 = vmatprep.subr.mxu0 0.0
    %627 = vmatpush1.msra.mxu0 0.0
    %628 = vmatprep.subr.mxu0 0.0
    %629 = vmatpush1.msra.mxu0 0.0
    %630 = vmatprep.subr.mxu0 0.0
    %631 = vmatpush1.msra.mxu0 0.0
    %632 = vmatprep.subr.mxu0 0.0
    %633 = vmatpush1.msra.mxu0 0.0
    %634 = vmatprep.subr.mxu0 0.0
    %635 = vmatpush1.msra.mxu0 0.0
    %636 = vmatprep.subr.mxu0 0.0
    %637 = vmatpush1.msra.mxu0 0.0
    %638 = vmatprep.subr.mxu0 0.0
    %639 = vmatpush1.msra.mxu0 0.0
    %640 = vmatprep.subr.mxu0 0.0
    %641 = vmatpush1.msra.mxu0 0.0
    %642 = vmatprep.subr.mxu0 0.0
    %643 = vmatpush1.msra.mxu0 0.0
    %644 = vmatprep.subr.mxu0 0.0
    %645 = vmatpush1.msra.mxu0 0.0
    %646 = vmatprep.subr.mxu0 0.0
    %647 = vmatpush1.msra.mxu0 0.0
    %648 = vmatprep.subr.mxu0 0.0
    %649 = vmatpush1.msra.mxu0 0.0
    %650 = vmatprep.subr.mxu0 0.0
    %651 = vmatpush1.msra.mxu0 0.0
    %652 = vmatprep.subr.mxu0 0.0
    %653 = vmatpush1.msra.mxu0 0.0
    %654 = vmatprep.subr.mxu0 0.0
    %655 = vmatpush1.msra.mxu0 0.0
    %656 = vmatprep.subr.mxu0 0.0
    %657 = vmatpush1.msra.mxu0 0.0
    %658 = vmatprep.subr.mxu0 0.0
    %659 = vmatpush1.msra.mxu0 0.0
    %660 = vmatprep.subr.mxu0 0.0
    %661 = vmatpush1.msra.mxu0 0.0
    %662 = vmatprep.subr.mxu0 0.0
    %663 = vmatpush1.msra.mxu0 0.0
    %664 = vmatprep.subr.mxu0 0.0
    %665 = vmatpush1.msra.mxu0 0.0
    %666 = vmatprep.subr.mxu0 0.0
    %667 = vmatpush1.msra.mxu0 0.0
    %668 = vmatprep.subr.mxu0 0.0
    %669 = vmatpush1.msra.mxu0 0.0
    %670 = vmatprep.mubr.f32.mxu0 0.0
    %671 = vmatmul.mubr.f32.gmra.mrb[0].mxu0 %v583
    %v672 = vpop.f32.mrb[0].mxu0
    %v673 = vadd.f32 0.0, %v672
    %v674 = vpop.f32.mrb[0].mxu0
    %v675 = vadd.f32 0.0, %v674
    %676 = vmatprep.mubr.f32.mxu0 0.0
    %677 = vmatmul.mubr.f32.gmra.mrb[0].mxu0 %v586
    %v678 = vpop.f32.mrb[0].mxu0
    %v679 = vadd.f32 0.0, %v678
    %v680 = vpop.f32.mrb[0].mxu0
    %v681 = vadd.f32 0.0, %v680
    %682 = vmatprep.mubr.f32.mxu0 0.0
    %683 = vmatmul.mubr.f32.gmra.mrb[0].mxu0 %v589
    %v684 = vpop.f32.mrb[0].mxu0
    %v685 = vadd.f32 0.0, %v684
    %v686 = vpop.f32.mrb[0].mxu0
    %v687 = vadd.f32 0.0, %v686
    %688 = vmatprep.mubr.f32.mxu0 0.0
    %689 = vmatmul.mubr.f32.gmra.mrb[0].mxu0 %v592
    %v690 = vpop.f32.mrb[0].mxu0
    %v691 = vadd.f32 0.0, %v690
    %v692 = vpop.f32.mrb[0].mxu0
    %v693 = vadd.f32 0.0, %v692
    %694 = vdwg.mxu0
    %695 = vmatprep.subr.mxu0 %v604
    %696 = vmatpush1.msra.mxu0 %v601
    %697 = vmatprep.subr.mxu0 0.0
    %698 = vmatpush1.msra.mxu0 0.0
    %699 = vmatprep.subr.mxu0 0.0
    %700 = vmatpush1.msra.mxu0 0.0
    %701 = vmatprep.subr.mxu0 0.0
    %702 = vmatpush1.msra.mxu0 0.0
    %703 = vmatprep.subr.mxu0 0.0
    %704 = vmatpush1.msra.mxu0 0.0
    %705 = vmatprep.subr.mxu0 0.0
    %706 = vmatpush1.msra.mxu0 0.0
    %707 = vmatprep.subr.mxu0 0.0
    %708 = vmatpush1.msra.mxu0 0.0
    %709 = vmatprep.subr.mxu0 0.0
    %710 = vmatpush1.msra.mxu0 0.0
    %711 = vmatprep.subr.mxu0 0.0
    %712 = vmatpush1.msra.mxu0 0.0
    %713 = vmatprep.subr.mxu0 0.0
    %714 = vmatpush1.msra.mxu0 0.0
    %715 = vmatprep.subr.mxu0 0.0
    %716 = vmatpush1.msra.mxu0 0.0
    %717 = vmatprep.subr.mxu0 0.0
    %718 = vmatpush1.msra.mxu0 0.0
    %719 = vmatprep.subr.mxu0 0.0
    %720 = vmatpush1.msra.mxu0 0.0
    %721 = vmatprep.subr.mxu0 0.0
    %722 = vmatpush1.msra.mxu0 0.0
    %723 = vmatprep.subr.mxu0 0.0
    %724 = vmatpush1.msra.mxu0 0.0
    %725 = vmatprep.subr.mxu0 0.0
    %726 = vmatpush1.msra.mxu0 0.0
    %727 = vmatprep.subr.mxu0 0.0
    %728 = vmatpush1.msra.mxu0 0.0
    %729 = vmatprep.subr.mxu0 0.0
    %730 = vmatpush1.msra.mxu0 0.0
    %731 = vmatprep.subr.mxu0 0.0
    %732 = vmatpush1.msra.mxu0 0.0
    %733 = vmatprep.subr.mxu0 0.0
    %734 = vmatpush1.msra.mxu0 0.0
    %735 = vmatprep.subr.mxu0 0.0
    %736 = vmatpush1.msra.mxu0 0.0
    %737 = vmatprep.subr.mxu0 0.0
    %738 = vmatpush1.msra.mxu0 0.0
    %739 = vmatprep.subr.mxu0 0.0
    %740 = vmatpush1.msra.mxu0 0.0
    %741 = vmatprep.subr.mxu0 0.0
    %742 = vmatpush1.msra.mxu0 0.0
    %743 = vmatprep.subr.mxu0 0.0
    %744 = vmatpush1.msra.mxu0 0.0
    %745 = vmatprep.subr.mxu0 0.0
    %746 = vmatpush1.msra.mxu0 0.0
    %747 = vmatprep.subr.mxu0 0.0
    %748 = vmatpush1.msra.mxu0 0.0
    %749 = vmatprep.subr.mxu0 0.0
    %750 = vmatpush1.msra.mxu0 0.0
    %751 = vmatprep.subr.mxu0 0.0
    %752 = vmatpush1.msra.mxu0 0.0
    %753 = vmatprep.subr.mxu0 0.0
    %754 = vmatpush1.msra.mxu0 0.0
    %755 = vmatprep.subr.mxu0 0.0
    %756 = vmatpush1.msra.mxu0 0.0
    %757 = vmatprep.subr.mxu0 0.0
    %758 = vmatpush1.msra.mxu0 0.0
    %759 = vmatprep.mubr.f32.mxu0 0.0
    %760 = vmatmul.mubr.f32.gmra.mrb[0].mxu0 %v583
    %v761 = vpop.f32.mrb[0].mxu0
    %v762 = vadd.f32 0.0, %v761
    %v763 = vpop.f32.mrb[0].mxu0
    %v764 = vadd.f32 0.0, %v763
    %765 = vmatprep.mubr.f32.mxu0 0.0
    %766 = vmatmul.mubr.f32.gmra.mrb[0].mxu0 %v586
    %v767 = vpop.f32.mrb[0].mxu0
    %v768 = vadd.f32 0.0, %v767
    %v769 = vpop.f32.mrb[0].mxu0
    %v770 = vadd.f32 0.0, %v769
    %771 = vmatprep.mubr.f32.mxu0 0.0
    %772 = vmatmul.mubr.f32.gmra.mrb[0].mxu0 %v589
    %v773 = vpop.f32.mrb[0].mxu0
    %v774 = vadd.f32 0.0, %v773
    %v775 = vpop.f32.mrb[0].mxu0
    %v776 = vadd.f32 0.0, %v775
    %777 = vmatprep.mubr.f32.mxu0 0.0
    %778 = vmatmul.mubr.f32.gmra.mrb[0].mxu0 %v592
    %v779 = vpop.f32.mrb[0].mxu0
    %v780 = vadd.f32 0.0, %v779
    %v781 = vpop.f32.mrb[0].mxu0
    %v782 = vadd.f32 0.0, %v781
    %783 = vdwg.mxu0
    %v784 = vadd.f32 %v426, %v673
    %v785 = vadd.f32 %v428, %v675
    %v786 = vadd.f32 %v515, %v762
    %v787 = vadd.f32 %v517, %v764
    %v788 = vadd.f32 %v432, %v679
    %v789 = vadd.f32 %v434, %v681
    %v790 = vadd.f32 %v521, %v768
    %v791 = vadd.f32 %v523, %v770
    %v792 = vadd.f32 %v438, %v685
    %v793 = vadd.f32 %v440, %v687
    %v794 = vadd.f32 %v527, %v774
    %v795 = vadd.f32 %v529, %v776
    %v796 = vadd.f32 %v444, %v691
    %v797 = vadd.f32 %v446, %v693
    %v798 = vadd.f32 %v533, %v780
    %v799 = vadd.f32 %v535, %v782
    %s800 = scalar_lea.vmem %s2, 96
    %v801 = vld [vmem:[%s800] sm:$0xff]
    %v802 = vld [vmem:[%s800 + $0x8] sm:$0xff]
    %v803 = vld [vmem:[%s800 + $0x10] sm:$0xff]
    %v804 = vld [vmem:[%s800 + $0x18] sm:$0xff]
    %805 = vrot.lane.b32.xlu0 %v33, 1
    %v806 = vpop.permute.xlu0 %805
    %807 = vrot.lane.b32.xlu0 %v41, 1
    %v808 = vpop.permute.xlu0 %807
    %809 = vrot.lane.b32.xlu0 %v34, 1
    %v810 = vpop.permute.xlu0 %809
    %811 = vrot.lane.b32.xlu0 %v42, 1
    %v812 = vpop.permute.xlu0 %811
    %vm813 = vcmp.lt.s32.totalorder %v54, 1
    %v814 = vsel %vm813, %v810, %v812
    %v815 = vsel %vm813, %v808, %v810
    %v816 = vsel %vm813, %v806, %v808
    %v817 = vsel %vm813, %v812, %v806
    %s818 = scalar_lea.vmem %s1, 3
    %v819 = vld [vmem:[%s818] ss:$8 sm:$0xf]
    %v821 = vlaneseq
    %v822 = vshrl.u32 %v821, 7
    %v823 = vsub.s32 0, %v822
    %v824 = vrot.slane %v819, %v823
    %v825 = vlaneseq
    %v826 = vshrl.u32 %v825, 7
    %v827 = vsub.s32 1, %v826
    %v828 = vrot.slane %v819, %v827
    %v829 = vlaneseq
    %v830 = vshrl.u32 %v829, 7
    %v831 = vsub.s32 2, %v830
    %v832 = vrot.slane %v819, %v831
    %v833 = vlaneseq
    %v834 = vshrl.u32 %v833, 7
    %v835 = vsub.s32 3, %v834
    %v836 = vrot.slane %v819, %v835
    %v841 = vmul.f32 %v817, %v824
    %v842 = vmul.f32 %v816, %v828
    %v843 = vmul.f32 %v815, %v832
    %v844 = vmul.f32 %v814, %v836
    %v846 = vsel %vm131, %v801, 0
    %v849 = vsel %vm131, %v802, 0
    %v852 = vsel %vm131, %v803, 0
    %v855 = vsel %vm131, %v804, 0
    %v858 = vsel %vm144, %v841, 0
    %v861 = vsel %vm144, %v842, 0
    %v864 = vsel %vm144, %v843, 0
    %v867 = vsel %vm144, %v844, 0
    %869 = vmatprep.subr.mxu0 %v861
    %870 = vmatpush1.msra.mxu0 %v858
    %871 = vmatprep.subr.mxu0 0.0
    %872 = vmatpush1.msra.mxu0 0.0
    %873 = vmatprep.subr.mxu0 0.0
    %874 = vmatpush1.msra.mxu0 0.0
    %875 = vmatprep.subr.mxu0 0.0
    %876 = vmatpush1.msra.mxu0 0.0
    %877 = vmatprep.subr.mxu0 0.0
    %878 = vmatpush1.msra.mxu0 0.0
    %879 = vmatprep.subr.mxu0 0.0
    %880 = vmatpush1.msra.mxu0 0.0
    %881 = vmatprep.subr.mxu0 0.0
    %882 = vmatpush1.msra.mxu0 0.0
    %883 = vmatprep.subr.mxu0 0.0
    %884 = vmatpush1.msra.mxu0 0.0
    %885 = vmatprep.subr.mxu0 0.0
    %886 = vmatpush1.msra.mxu0 0.0
    %887 = vmatprep.subr.mxu0 0.0
    %888 = vmatpush1.msra.mxu0 0.0
    %889 = vmatprep.subr.mxu0 0.0
    %890 = vmatpush1.msra.mxu0 0.0
    %891 = vmatprep.subr.mxu0 0.0
    %892 = vmatpush1.msra.mxu0 0.0
    %893 = vmatprep.subr.mxu0 0.0
    %894 = vmatpush1.msra.mxu0 0.0
    %895 = vmatprep.subr.mxu0 0.0
    %896 = vmatpush1.msra.mxu0 0.0
    %897 = vmatprep.subr.mxu0 0.0
    %898 = vmatpush1.msra.mxu0 0.0
    %899 = vmatprep.subr.mxu0 0.0
    %900 = vmatpush1.msra.mxu0 0.0
    %901 = vmatprep.subr.mxu0 0.0
    %902 = vmatpush1.msra.mxu0 0.0
    %903 = vmatprep.subr.mxu0 0.0
    %904 = vmatpush1.msra.mxu0 0.0
    %905 = vmatprep.subr.mxu0 0.0
    %906 = vmatpush1.msra.mxu0 0.0
    %907 = vmatprep.subr.mxu0 0.0
    %908 = vmatpush1.msra.mxu0 0.0
    %909 = vmatprep.subr.mxu0 0.0
    %910 = vmatpush1.msra.mxu0 0.0
    %911 = vmatprep.subr.mxu0 0.0
    %912 = vmatpush1.msra.mxu0 0.0
    %913 = vmatprep.subr.mxu0 0.0
    %914 = vmatpush1.msra.mxu0 0.0
    %915 = vmatprep.subr.mxu0 0.0
    %916 = vmatpush1.msra.mxu0 0.0
    %917 = vmatprep.subr.mxu0 0.0
    %918 = vmatpush1.msra.mxu0 0.0
    %919 = vmatprep.subr.mxu0 0.0
    %920 = vmatpush1.msra.mxu0 0.0
    %921 = vmatprep.subr.mxu0 0.0
    %922 = vmatpush1.msra.mxu0 0.0
    %923 = vmatprep.subr.mxu0 0.0
    %924 = vmatpush1.msra.mxu0 0.0
    %925 = vmatprep.subr.mxu0 0.0
    %926 = vmatpush1.msra.mxu0 0.0
    %927 = vmatprep.subr.mxu0 0.0
    %928 = vmatpush1.msra.mxu0 0.0
    %929 = vmatprep.subr.mxu0 0.0
    %930 = vmatpush1.msra.mxu0 0.0
    %931 = vmatprep.subr.mxu0 0.0
    %932 = vmatpush1.msra.mxu0 0.0
    %933 = vmatprep.mubr.f32.mxu0 0.0
    %934 = vmatmul.mubr.f32.gmra.mrb[0].mxu0 %v846
    %v935 = vpop.f32.mrb[0].mxu0
    %v936 = vadd.f32 0.0, %v935
    %v937 = vpop.f32.mrb[0].mxu0
    %v938 = vadd.f32 0.0, %v937
    %939 = vmatprep.mubr.f32.mxu0 0.0
    %940 = vmatmul.mubr.f32.gmra.mrb[0].mxu0 %v849
    %v941 = vpop.f32.mrb[0].mxu0
    %v942 = vadd.f32 0.0, %v941
    %v943 = vpop.f32.mrb[0].mxu0
    %v944 = vadd.f32 0.0, %v943
    %945 = vmatprep.mubr.f32.mxu0 0.0
    %946 = vmatmul.mubr.f32.gmra.mrb[0].mxu0 %v852
    %v947 = vpop.f32.mrb[0].mxu0
    %v948 = vadd.f32 0.0, %v947
    %v949 = vpop.f32.mrb[0].mxu0
    %v950 = vadd.f32 0.0, %v949
    %951 = vmatprep.mubr.f32.mxu0 0.0
    %952 = vmatmul.mubr.f32.gmra.mrb[0].mxu0 %v855
    %v953 = vpop.f32.mrb[0].mxu0
    %v954 = vadd.f32 0.0, %v953
    %v955 = vpop.f32.mrb[0].mxu0
    %v956 = vadd.f32 0.0, %v955
    %957 = vdwg.mxu0
    %958 = vmatprep.subr.mxu0 %v867
    %959 = vmatpush1.msra.mxu0 %v864
    %960 = vmatprep.subr.mxu0 0.0
    %961 = vmatpush1.msra.mxu0 0.0
    %962 = vmatprep.subr.mxu0 0.0
    %963 = vmatpush1.msra.mxu0 0.0
    %964 = vmatprep.subr.mxu0 0.0
    %965 = vmatpush1.msra.mxu0 0.0
    %966 = vmatprep.subr.mxu0 0.0
    %967 = vmatpush1.msra.mxu0 0.0
    %968 = vmatprep.subr.mxu0 0.0
    %969 = vmatpush1.msra.mxu0 0.0
    %970 = vmatprep.subr.mxu0 0.0
    %971 = vmatpush1.msra.mxu0 0.0
    %972 = vmatprep.subr.mxu0 0.0
    %973 = vmatpush1.msra.mxu0 0.0
    %974 = vmatprep.subr.mxu0 0.0
    %975 = vmatpush1.msra.mxu0 0.0
    %976 = vmatprep.subr.mxu0 0.0
    %977 = vmatpush1.msra.mxu0 0.0
    %978 = vmatprep.subr.mxu0 0.0
    %979 = vmatpush1.msra.mxu0 0.0
    %980 = vmatprep.subr.mxu0 0.0
    %981 = vmatpush1.msra.mxu0 0.0
    %982 = vmatprep.subr.mxu0 0.0
    %983 = vmatpush1.msra.mxu0 0.0
    %984 = vmatprep.subr.mxu0 0.0
    %985 = vmatpush1.msra.mxu0 0.0
    %986 = vmatprep.subr.mxu0 0.0
    %987 = vmatpush1.msra.mxu0 0.0
    %988 = vmatprep.subr.mxu0 0.0
    %989 = vmatpush1.msra.mxu0 0.0
    %990 = vmatprep.subr.mxu0 0.0
    %991 = vmatpush1.msra.mxu0 0.0
    %992 = vmatprep.subr.mxu0 0.0
    %993 = vmatpush1.msra.mxu0 0.0
    %994 = vmatprep.subr.mxu0 0.0
    %995 = vmatpush1.msra.mxu0 0.0
    %996 = vmatprep.subr.mxu0 0.0
    %997 = vmatpush1.msra.mxu0 0.0
    %998 = vmatprep.subr.mxu0 0.0
    %999 = vmatpush1.msra.mxu0 0.0
    %1000 = vmatprep.subr.mxu0 0.0
    %1001 = vmatpush1.msra.mxu0 0.0
    %1002 = vmatprep.subr.mxu0 0.0
    %1003 = vmatpush1.msra.mxu0 0.0
    %1004 = vmatprep.subr.mxu0 0.0
    %1005 = vmatpush1.msra.mxu0 0.0
    %1006 = vmatprep.subr.mxu0 0.0
    %1007 = vmatpush1.msra.mxu0 0.0
    %1008 = vmatprep.subr.mxu0 0.0
    %1009 = vmatpush1.msra.mxu0 0.0
    %1010 = vmatprep.subr.mxu0 0.0
    %1011 = vmatpush1.msra.mxu0 0.0
    %1012 = vmatprep.subr.mxu0 0.0
    %1013 = vmatpush1.msra.mxu0 0.0
    %1014 = vmatprep.subr.mxu0 0.0
    %1015 = vmatpush1.msra.mxu0 0.0
    %1016 = vmatprep.subr.mxu0 0.0
    %1017 = vmatpush1.msra.mxu0 0.0
    %1018 = vmatprep.subr.mxu0 0.0
    %1019 = vmatpush1.msra.mxu0 0.0
    %1020 = vmatprep.subr.mxu0 0.0
    %1021 = vmatpush1.msra.mxu0 0.0
    %1022 = vmatprep.mubr.f32.mxu0 0.0
    %1023 = vmatmul.mubr.f32.gmra.mrb[0].mxu0 %v846
    %v1024 = vpop.f32.mrb[0].mxu0
    %v1025 = vadd.f32 0.0, %v1024
    %v1026 = vpop.f32.mrb[0].mxu0
    %v1027 = vadd.f32 0.0, %v1026
    %1028 = vmatprep.mubr.f32.mxu0 0.0
    %1029 = vmatmul.mubr.f32.gmra.mrb[0].mxu0 %v849
    %v1030 = vpop.f32.mrb[0].mxu0
    %v1031 = vadd.f32 0.0, %v1030
    %v1032 = vpop.f32.mrb[0].mxu0
    %v1033 = vadd.f32 0.0, %v1032
    %1034 = vmatprep.mubr.f32.mxu0 0.0
    %1035 = vmatmul.mubr.f32.gmra.mrb[0].mxu0 %v852
    %v1036 = vpop.f32.mrb[0].mxu0
    %v1037 = vadd.f32 0.0, %v1036
    %v1038 = vpop.f32.mrb[0].mxu0
    %v1039 = vadd.f32 0.0, %v1038
    %1040 = vmatprep.mubr.f32.mxu0 0.0
    %1041 = vmatmul.mubr.f32.gmra.mrb[0].mxu0 %v855
    %v1042 = vpop.f32.mrb[0].mxu0
    %v1043 = vadd.f32 0.0, %v1042
    %v1044 = vpop.f32.mrb[0].mxu0
    %v1045 = vadd.f32 0.0, %v1044
    %1046 = vdwg.mxu0
    %v1047 = vadd.f32 %v784, %v936
    %v1048 = vadd.f32 %v785, %v938
    %v1049 = vadd.f32 %v786, %v1025
    %v1050 = vadd.f32 %v787, %v1027
    %v1051 = vadd.f32 %v788, %v942
    %v1052 = vadd.f32 %v789, %v944
    %v1053 = vadd.f32 %v790, %v1031
    %v1054 = vadd.f32 %v791, %v1033
    %v1055 = vadd.f32 %v792, %v948
    %v1056 = vadd.f32 %v793, %v950
    %v1057 = vadd.f32 %v794, %v1037
    %v1058 = vadd.f32 %v795, %v1039
    %v1059 = vadd.f32 %v796, %v954
    %v1060 = vadd.f32 %v797, %v956
    %v1061 = vadd.f32 %v798, %v1043
    %v1062 = vadd.f32 %v799, %v1045
    %s1063 = scalar_lea.vmem %s2, 128
    %v1064 = vld [vmem:[%s1063] sm:$0xff]
    %v1065 = vld [vmem:[%s1063 + $0x8] sm:$0xff]
    %v1066 = vld [vmem:[%s1063 + $0x10] sm:$0xff]
    %v1067 = vld [vmem:[%s1063 + $0x18] sm:$0xff]
    %v1069 = vsel %vm131, %v1064, 0
    %v1072 = vsel %vm131, %v1065, 0
    %v1075 = vsel %vm131, %v1066, 0
    %v1078 = vsel %vm131, %v1067, 0
    %v1080 = vsel %vm144, %v33, 0
    %v1082 = vsel %vm144, %v41, 0
    %v1084 = vsel %vm144, %v34, 0
    %v1086 = vsel %vm144, %v42, 0
    %1088 = vmatprep.subr.mxu0 %v1082
    %1089 = vmatpush1.msra.mxu0 %v1080
    %1090 = vmatprep.subr.mxu0 0.0
    %1091 = vmatpush1.msra.mxu0 0.0
    %1092 = vmatprep.subr.mxu0 0.0
    %1093 = vmatpush1.msra.mxu0 0.0
    %1094 = vmatprep.subr.mxu0 0.0
    %1095 = vmatpush1.msra.mxu0 0.0
    %1096 = vmatprep.subr.mxu0 0.0
    %1097 = vmatpush1.msra.mxu0 0.0
    %1098 = vmatprep.subr.mxu0 0.0
    %1099 = vmatpush1.msra.mxu0 0.0
    %1100 = vmatprep.subr.mxu0 0.0
    %1101 = vmatpush1.msra.mxu0 0.0
    %1102 = vmatprep.subr.mxu0 0.0
    %1103 = vmatpush1.msra.mxu0 0.0
    %1104 = vmatprep.subr.mxu0 0.0
    %1105 = vmatpush1.msra.mxu0 0.0
    %1106 = vmatprep.subr.mxu0 0.0
    %1107 = vmatpush1.msra.mxu0 0.0
    %1108 = vmatprep.subr.mxu0 0.0
    %1109 = vmatpush1.msra.mxu0 0.0
    %1110 = vmatprep.subr.mxu0 0.0
    %1111 = vmatpush1.msra.mxu0 0.0
    %1112 = vmatprep.subr.mxu0 0.0
    %1113 = vmatpush1.msra.mxu0 0.0
    %1114 = vmatprep.subr.mxu0 0.0
    %1115 = vmatpush1.msra.mxu0 0.0
    %1116 = vmatprep.subr.mxu0 0.0
    %1117 = vmatpush1.msra.mxu0 0.0
    %1118 = vmatprep.subr.mxu0 0.0
    %1119 = vmatpush1.msra.mxu0 0.0
    %1120 = vmatprep.subr.mxu0 0.0
    %1121 = vmatpush1.msra.mxu0 0.0
    %1122 = vmatprep.subr.mxu0 0.0
    %1123 = vmatpush1.msra.mxu0 0.0
    %1124 = vmatprep.subr.mxu0 0.0
    %1125 = vmatpush1.msra.mxu0 0.0
    %1126 = vmatprep.subr.mxu0 0.0
    %1127 = vmatpush1.msra.mxu0 0.0
    %1128 = vmatprep.subr.mxu0 0.0
    %1129 = vmatpush1.msra.mxu0 0.0
    %1130 = vmatprep.subr.mxu0 0.0
    %1131 = vmatpush1.msra.mxu0 0.0
    %1132 = vmatprep.subr.mxu0 0.0
    %1133 = vmatpush1.msra.mxu0 0.0
    %1134 = vmatprep.subr.mxu0 0.0
    %1135 = vmatpush1.msra.mxu0 0.0
    %1136 = vmatprep.subr.mxu0 0.0
    %1137 = vmatpush1.msra.mxu0 0.0
    %1138 = vmatprep.subr.mxu0 0.0
    %1139 = vmatpush1.msra.mxu0 0.0
    %1140 = vmatprep.subr.mxu0 0.0
    %1141 = vmatpush1.msra.mxu0 0.0
    %1142 = vmatprep.subr.mxu0 0.0
    %1143 = vmatpush1.msra.mxu0 0.0
    %1144 = vmatprep.subr.mxu0 0.0
    %1145 = vmatpush1.msra.mxu0 0.0
    %1146 = vmatprep.subr.mxu0 0.0
    %1147 = vmatpush1.msra.mxu0 0.0
    %1148 = vmatprep.subr.mxu0 0.0
    %1149 = vmatpush1.msra.mxu0 0.0
    %1150 = vmatprep.subr.mxu0 0.0
    %1151 = vmatpush1.msra.mxu0 0.0
    %1152 = vmatprep.mubr.f32.mxu0 0.0
    %1153 = vmatmul.mubr.f32.gmra.mrb[0].mxu0 %v1069
    %v1154 = vpop.f32.mrb[0].mxu0
    %v1155 = vadd.f32 0.0, %v1154
    %v1156 = vpop.f32.mrb[0].mxu0
    %v1157 = vadd.f32 0.0, %v1156
    %1158 = vmatprep.mubr.f32.mxu0 0.0
    %1159 = vmatmul.mubr.f32.gmra.mrb[0].mxu0 %v1072
    %v1160 = vpop.f32.mrb[0].mxu0
    %v1161 = vadd.f32 0.0, %v1160
    %v1162 = vpop.f32.mrb[0].mxu0
    %v1163 = vadd.f32 0.0, %v1162
    %1164 = vmatprep.mubr.f32.mxu0 0.0
    %1165 = vmatmul.mubr.f32.gmra.mrb[0].mxu0 %v1075
    %v1166 = vpop.f32.mrb[0].mxu0
    %v1167 = vadd.f32 0.0, %v1166
    %v1168 = vpop.f32.mrb[0].mxu0
    %v1169 = vadd.f32 0.0, %v1168
    %1170 = vmatprep.mubr.f32.mxu0 0.0
    %1171 = vmatmul.mubr.f32.gmra.mrb[0].mxu0 %v1078
    %v1172 = vpop.f32.mrb[0].mxu0
    %v1173 = vadd.f32 0.0, %v1172
    %v1174 = vpop.f32.mrb[0].mxu0
    %v1175 = vadd.f32 0.0, %v1174
    %1176 = vdwg.mxu0
    %1177 = vmatprep.subr.mxu0 %v1086
    %1178 = vmatpush1.msra.mxu0 %v1084
    %1179 = vmatprep.subr.mxu0 0.0
    %1180 = vmatpush1.msra.mxu0 0.0
    %1181 = vmatprep.subr.mxu0 0.0
    %1182 = vmatpush1.msra.mxu0 0.0
    %1183 = vmatprep.subr.mxu0 0.0
    %1184 = vmatpush1.msra.mxu0 0.0
    %1185 = vmatprep.subr.mxu0 0.0
    %1186 = vmatpush1.msra.mxu0 0.0
    %1187 = vmatprep.subr.mxu0 0.0
    %1188 = vmatpush1.msra.mxu0 0.0
    %1189 = vmatprep.subr.mxu0 0.0
    %1190 = vmatpush1.msra.mxu0 0.0
    %1191 = vmatprep.subr.mxu0 0.0
    %1192 = vmatpush1.msra.mxu0 0.0
    %1193 = vmatprep.subr.mxu0 0.0
    %1194 = vmatpush1.msra.mxu0 0.0
    %1195 = vmatprep.subr.mxu0 0.0
    %1196 = vmatpush1.msra.mxu0 0.0
    %1197 = vmatprep.subr.mxu0 0.0
    %1198 = vmatpush1.msra.mxu0 0.0
    %1199 = vmatprep.subr.mxu0 0.0
    %1200 = vmatpush1.msra.mxu0 0.0
    %1201 = vmatprep.subr.mxu0 0.0
    %1202 = vmatpush1.msra.mxu0 0.0
    %1203 = vmatprep.subr.mxu0 0.0
    %1204 = vmatpush1.msra.mxu0 0.0
    %1205 = vmatprep.subr.mxu0 0.0
    %1206 = vmatpush1.msra.mxu0 0.0
    %1207 = vmatprep.subr.mxu0 0.0
    %1208 = vmatpush1.msra.mxu0 0.0
    %1209 = vmatprep.subr.mxu0 0.0
    %1210 = vmatpush1.msra.mxu0 0.0
    %1211 = vmatprep.subr.mxu0 0.0
    %1212 = vmatpush1.msra.mxu0 0.0
    %1213 = vmatprep.subr.mxu0 0.0
    %1214 = vmatpush1.msra.mxu0 0.0
    %1215 = vmatprep.subr.mxu0 0.0
    %1216 = vmatpush1.msra.mxu0 0.0
    %1217 = vmatprep.subr.mxu0 0.0
    %1218 = vmatpush1.msra.mxu0 0.0
    %1219 = vmatprep.subr.mxu0 0.0
    %1220 = vmatpush1.msra.mxu0 0.0
    %1221 = vmatprep.subr.mxu0 0.0
    %1222 = vmatpush1.msra.mxu0 0.0
    %1223 = vmatprep.subr.mxu0 0.0
    %1224 = vmatpush1.msra.mxu0 0.0
    %1225 = vmatprep.subr.mxu0 0.0
    %1226 = vmatpush1.msra.mxu0 0.0
    %1227 = vmatprep.subr.mxu0 0.0
    %1228 = vmatpush1.msra.mxu0 0.0
    %1229 = vmatprep.subr.mxu0 0.0
    %1230 = vmatpush1.msra.mxu0 0.0
    %1231 = vmatprep.subr.mxu0 0.0
    %1232 = vmatpush1.msra.mxu0 0.0
    %1233 = vmatprep.subr.mxu0 0.0
    %1234 = vmatpush1.msra.mxu0 0.0
    %1235 = vmatprep.subr.mxu0 0.0
    %1236 = vmatpush1.msra.mxu0 0.0
    %1237 = vmatprep.subr.mxu0 0.0
    %1238 = vmatpush1.msra.mxu0 0.0
    %1239 = vmatprep.subr.mxu0 0.0
    %1240 = vmatpush1.msra.mxu0 0.0
    %1241 = vmatprep.mubr.f32.mxu0 0.0
    %1242 = vmatmul.mubr.f32.gmra.mrb[0].mxu0 %v1069
    %v1243 = vpop.f32.mrb[0].mxu0
    %v1244 = vadd.f32 0.0, %v1243
    %v1245 = vpop.f32.mrb[0].mxu0
    %v1246 = vadd.f32 0.0, %v1245
    %1247 = vmatprep.mubr.f32.mxu0 0.0
    %1248 = vmatmul.mubr.f32.gmra.mrb[0].mxu0 %v1072
    %v1249 = vpop.f32.mrb[0].mxu0
    %v1250 = vadd.f32 0.0, %v1249
    %v1251 = vpop.f32.mrb[0].mxu0
    %v1252 = vadd.f32 0.0, %v1251
    %1253 = vmatprep.mubr.f32.mxu0 0.0
    %1254 = vmatmul.mubr.f32.gmra.mrb[0].mxu0 %v1075
    %v1255 = vpop.f32.mrb[0].mxu0
    %v1256 = vadd.f32 0.0, %v1255
    %v1257 = vpop.f32.mrb[0].mxu0
    %v1258 = vadd.f32 0.0, %v1257
    %1259 = vmatprep.mubr.f32.mxu0 0.0
    %1260 = vmatmul.mubr.f32.gmra.mrb[0].mxu0 %v1078
    %v1261 = vpop.f32.mrb[0].mxu0
    %v1262 = vadd.f32 0.0, %v1261
    %v1263 = vpop.f32.mrb[0].mxu0
    %v1264 = vadd.f32 0.0, %v1263
    %1265 = vdwg.mxu0
    %v1266 = vadd.f32 %v1047, %v1155
    %v1267 = vadd.f32 %v1048, %v1157
    %v1268 = vadd.f32 %v1049, %v1244
    %v1269 = vadd.f32 %v1050, %v1246
    %v1270 = vadd.f32 %v1051, %v1161
    %v1271 = vadd.f32 %v1052, %v1163
    %v1272 = vadd.f32 %v1053, %v1250
    %v1273 = vadd.f32 %v1054, %v1252
    %v1274 = vadd.f32 %v1055, %v1167
    %v1275 = vadd.f32 %v1056, %v1169
    %v1276 = vadd.f32 %v1057, %v1256
    %v1277 = vadd.f32 %v1058, %v1258
    %v1278 = vadd.f32 %v1059, %v1173
    %v1279 = vadd.f32 %v1060, %v1175
    %v1280 = vadd.f32 %v1061, %v1262
    %v1281 = vadd.f32 %v1062, %v1264
    %s1282 = scalar_lea.vmem %s2, 160
    %v1283 = vld [vmem:[%s1282] sm:$0xff]
    %v1284 = vld [vmem:[%s1282 + $0x8] sm:$0xff]
    %v1285 = vld [vmem:[%s1282 + $0x10] sm:$0xff]
    %v1286 = vld [vmem:[%s1282 + $0x18] sm:$0xff]
    %1287 = vrot.lane.b32.xlu0 %v33, 127
    %v1288 = vpop.permute.xlu0 %1287
    %1289 = vrot.lane.b32.xlu0 %v41, 127
    %v1290 = vpop.permute.xlu0 %1289
    %1291 = vrot.lane.b32.xlu0 %v34, 127
    %v1292 = vpop.permute.xlu0 %1291
    %1293 = vrot.lane.b32.xlu0 %v42, 127
    %v1294 = vpop.permute.xlu0 %1293
    %vm1295 = vcmp.lt.s32.totalorder %v54, 127
    %v1296 = vsel %vm1295, %v1292, %v1294
    %v1297 = vsel %vm1295, %v1290, %v1292
    %v1298 = vsel %vm1295, %v1288, %v1290
    %v1299 = vsel %vm1295, %v1294, %v1288
    %s1300 = scalar_lea.vmem %s1, 5
    %v1301 = vld [vmem:[%s1300] ss:$8 sm:$0xf]
    %v1303 = vlaneseq
    %v1304 = vshrl.u32 %v1303, 7
    %v1305 = vsub.s32 0, %v1304
    %v1306 = vrot.slane %v1301, %v1305
    %v1307 = vlaneseq
    %v1308 = vshrl.u32 %v1307, 7
    %v1309 = vsub.s32 1, %v1308
    %v1310 = vrot.slane %v1301, %v1309
    %v1311 = vlaneseq
    %v1312 = vshrl.u32 %v1311, 7
    %v1313 = vsub.s32 2, %v1312
    %v1314 = vrot.slane %v1301, %v1313
    %v1315 = vlaneseq
    %v1316 = vshrl.u32 %v1315, 7
    %v1317 = vsub.s32 3, %v1316
    %v1318 = vrot.slane %v1301, %v1317
    %v1323 = vmul.f32 %v1298, %v1306
    %v1324 = vmul.f32 %v1297, %v1310
    %v1325 = vmul.f32 %v1296, %v1314
    %v1326 = vmul.f32 %v1299, %v1318
    %v1328 = vsel %vm131, %v1283, 0
    %v1331 = vsel %vm131, %v1284, 0
    %v1334 = vsel %vm131, %v1285, 0
    %v1337 = vsel %vm131, %v1286, 0
    %v1340 = vsel %vm144, %v1323, 0
    %v1343 = vsel %vm144, %v1324, 0
    %v1346 = vsel %vm144, %v1325, 0
    %v1349 = vsel %vm144, %v1326, 0
    %1351 = vmatprep.subr.mxu0 %v1343
    %1352 = vmatpush1.msra.mxu0 %v1340
    %1353 = vmatprep.subr.mxu0 0.0
    %1354 = vmatpush1.msra.mxu0 0.0
    %1355 = vmatprep.subr.mxu0 0.0
    %1356 = vmatpush1.msra.mxu0 0.0
    %1357 = vmatprep.subr.mxu0 0.0
    %1358 = vmatpush1.msra.mxu0 0.0
    %1359 = vmatprep.subr.mxu0 0.0
    %1360 = vmatpush1.msra.mxu0 0.0
    %1361 = vmatprep.subr.mxu0 0.0
    %1362 = vmatpush1.msra.mxu0 0.0
    %1363 = vmatprep.subr.mxu0 0.0
    %1364 = vmatpush1.msra.mxu0 0.0
    %1365 = vmatprep.subr.mxu0 0.0
    %1366 = vmatpush1.msra.mxu0 0.0
    %1367 = vmatprep.subr.mxu0 0.0
    %1368 = vmatpush1.msra.mxu0 0.0
    %1369 = vmatprep.subr.mxu0 0.0
    %1370 = vmatpush1.msra.mxu0 0.0
    %1371 = vmatprep.subr.mxu0 0.0
    %1372 = vmatpush1.msra.mxu0 0.0
    %1373 = vmatprep.subr.mxu0 0.0
    %1374 = vmatpush1.msra.mxu0 0.0
    %1375 = vmatprep.subr.mxu0 0.0
    %1376 = vmatpush1.msra.mxu0 0.0
    %1377 = vmatprep.subr.mxu0 0.0
    %1378 = vmatpush1.msra.mxu0 0.0
    %1379 = vmatprep.subr.mxu0 0.0
    %1380 = vmatpush1.msra.mxu0 0.0
    %1381 = vmatprep.subr.mxu0 0.0
    %1382 = vmatpush1.msra.mxu0 0.0
    %1383 = vmatprep.subr.mxu0 0.0
    %1384 = vmatpush1.msra.mxu0 0.0
    %1385 = vmatprep.subr.mxu0 0.0
    %1386 = vmatpush1.msra.mxu0 0.0
    %1387 = vmatprep.subr.mxu0 0.0
    %1388 = vmatpush1.msra.mxu0 0.0
    %1389 = vmatprep.subr.mxu0 0.0
    %1390 = vmatpush1.msra.mxu0 0.0
    %1391 = vmatprep.subr.mxu0 0.0
    %1392 = vmatpush1.msra.mxu0 0.0
    %1393 = vmatprep.subr.mxu0 0.0
    %1394 = vmatpush1.msra.mxu0 0.0
    %1395 = vmatprep.subr.mxu0 0.0
    %1396 = vmatpush1.msra.mxu0 0.0
    %1397 = vmatprep.subr.mxu0 0.0
    %1398 = vmatpush1.msra.mxu0 0.0
    %1399 = vmatprep.subr.mxu0 0.0
    %1400 = vmatpush1.msra.mxu0 0.0
    %1401 = vmatprep.subr.mxu0 0.0
    %1402 = vmatpush1.msra.mxu0 0.0
    %1403 = vmatprep.subr.mxu0 0.0
    %1404 = vmatpush1.msra.mxu0 0.0
    %1405 = vmatprep.subr.mxu0 0.0
    %1406 = vmatpush1.msra.mxu0 0.0
    %1407 = vmatprep.subr.mxu0 0.0
    %1408 = vmatpush1.msra.mxu0 0.0
    %1409 = vmatprep.subr.mxu0 0.0
    %1410 = vmatpush1.msra.mxu0 0.0
    %1411 = vmatprep.subr.mxu0 0.0
    %1412 = vmatpush1.msra.mxu0 0.0
    %1413 = vmatprep.subr.mxu0 0.0
    %1414 = vmatpush1.msra.mxu0 0.0
    %1415 = vmatprep.mubr.f32.mxu0 0.0
    %1416 = vmatmul.mubr.f32.gmra.mrb[0].mxu0 %v1328
    %v1417 = vpop.f32.mrb[0].mxu0
    %v1418 = vadd.f32 0.0, %v1417
    %v1419 = vpop.f32.mrb[0].mxu0
    %v1420 = vadd.f32 0.0, %v1419
    %1421 = vmatprep.mubr.f32.mxu0 0.0
    %1422 = vmatmul.mubr.f32.gmra.mrb[0].mxu0 %v1331
    %v1423 = vpop.f32.mrb[0].mxu0
    %v1424 = vadd.f32 0.0, %v1423
    %v1425 = vpop.f32.mrb[0].mxu0
    %v1426 = vadd.f32 0.0, %v1425
    %1427 = vmatprep.mubr.f32.mxu0 0.0
    %1428 = vmatmul.mubr.f32.gmra.mrb[0].mxu0 %v1334
    %v1429 = vpop.f32.mrb[0].mxu0
    %v1430 = vadd.f32 0.0, %v1429
    %v1431 = vpop.f32.mrb[0].mxu0
    %v1432 = vadd.f32 0.0, %v1431
    %1433 = vmatprep.mubr.f32.mxu0 0.0
    %1434 = vmatmul.mubr.f32.gmra.mrb[0].mxu0 %v1337
    %v1435 = vpop.f32.mrb[0].mxu0
    %v1436 = vadd.f32 0.0, %v1435
    %v1437 = vpop.f32.mrb[0].mxu0
    %v1438 = vadd.f32 0.0, %v1437
    %1439 = vdwg.mxu0
    %1440 = vmatprep.subr.mxu0 %v1349
    %1441 = vmatpush1.msra.mxu0 %v1346
    %1442 = vmatprep.subr.mxu0 0.0
    %1443 = vmatpush1.msra.mxu0 0.0
    %1444 = vmatprep.subr.mxu0 0.0
    %1445 = vmatpush1.msra.mxu0 0.0
    %1446 = vmatprep.subr.mxu0 0.0
    %1447 = vmatpush1.msra.mxu0 0.0
    %1448 = vmatprep.subr.mxu0 0.0
    %1449 = vmatpush1.msra.mxu0 0.0
    %1450 = vmatprep.subr.mxu0 0.0
    %1451 = vmatpush1.msra.mxu0 0.0
    %1452 = vmatprep.subr.mxu0 0.0
    %1453 = vmatpush1.msra.mxu0 0.0
    %1454 = vmatprep.subr.mxu0 0.0
    %1455 = vmatpush1.msra.mxu0 0.0
    %1456 = vmatprep.subr.mxu0 0.0
    %1457 = vmatpush1.msra.mxu0 0.0
    %1458 = vmatprep.subr.mxu0 0.0
    %1459 = vmatpush1.msra.mxu0 0.0
    %1460 = vmatprep.subr.mxu0 0.0
    %1461 = vmatpush1.msra.mxu0 0.0
    %1462 = vmatprep.subr.mxu0 0.0
    %1463 = vmatpush1.msra.mxu0 0.0
    %1464 = vmatprep.subr.mxu0 0.0
    %1465 = vmatpush1.msra.mxu0 0.0
    %1466 = vmatprep.subr.mxu0 0.0
    %1467 = vmatpush1.msra.mxu0 0.0
    %1468 = vmatprep.subr.mxu0 0.0
    %1469 = vmatpush1.msra.mxu0 0.0
    %1470 = vmatprep.subr.mxu0 0.0
    %1471 = vmatpush1.msra.mxu0 0.0
    %1472 = vmatprep.subr.mxu0 0.0
    %1473 = vmatpush1.msra.mxu0 0.0
    %1474 = vmatprep.subr.mxu0 0.0
    %1475 = vmatpush1.msra.mxu0 0.0
    %1476 = vmatprep.subr.mxu0 0.0
    %1477 = vmatpush1.msra.mxu0 0.0
    %1478 = vmatprep.subr.mxu0 0.0
    %1479 = vmatpush1.msra.mxu0 0.0
    %1480 = vmatprep.subr.mxu0 0.0
    %1481 = vmatpush1.msra.mxu0 0.0
    %1482 = vmatprep.subr.mxu0 0.0
    %1483 = vmatpush1.msra.mxu0 0.0
    %1484 = vmatprep.subr.mxu0 0.0
    %1485 = vmatpush1.msra.mxu0 0.0
    %1486 = vmatprep.subr.mxu0 0.0
    %1487 = vmatpush1.msra.mxu0 0.0
    %1488 = vmatprep.subr.mxu0 0.0
    %1489 = vmatpush1.msra.mxu0 0.0
    %1490 = vmatprep.subr.mxu0 0.0
    %1491 = vmatpush1.msra.mxu0 0.0
    %1492 = vmatprep.subr.mxu0 0.0
    %1493 = vmatpush1.msra.mxu0 0.0
    %1494 = vmatprep.subr.mxu0 0.0
    %1495 = vmatpush1.msra.mxu0 0.0
    %1496 = vmatprep.subr.mxu0 0.0
    %1497 = vmatpush1.msra.mxu0 0.0
    %1498 = vmatprep.subr.mxu0 0.0
    %1499 = vmatpush1.msra.mxu0 0.0
    %1500 = vmatprep.subr.mxu0 0.0
    %1501 = vmatpush1.msra.mxu0 0.0
    %1502 = vmatprep.subr.mxu0 0.0
    %1503 = vmatpush1.msra.mxu0 0.0
    %1504 = vmatprep.mubr.f32.mxu0 0.0
    %1505 = vmatmul.mubr.f32.gmra.mrb[0].mxu0 %v1328
    %v1506 = vpop.f32.mrb[0].mxu0
    %v1507 = vadd.f32 0.0, %v1506
    %v1508 = vpop.f32.mrb[0].mxu0
    %v1509 = vadd.f32 0.0, %v1508
    %1510 = vmatprep.mubr.f32.mxu0 0.0
    %1511 = vmatmul.mubr.f32.gmra.mrb[0].mxu0 %v1331
    %v1512 = vpop.f32.mrb[0].mxu0
    %v1513 = vadd.f32 0.0, %v1512
    %v1514 = vpop.f32.mrb[0].mxu0
    %v1515 = vadd.f32 0.0, %v1514
    %1516 = vmatprep.mubr.f32.mxu0 0.0
    %1517 = vmatmul.mubr.f32.gmra.mrb[0].mxu0 %v1334
    %v1518 = vpop.f32.mrb[0].mxu0
    %v1519 = vadd.f32 0.0, %v1518
    %v1520 = vpop.f32.mrb[0].mxu0
    %v1521 = vadd.f32 0.0, %v1520
    %1522 = vmatprep.mubr.f32.mxu0 0.0
    %1523 = vmatmul.mubr.f32.gmra.mrb[0].mxu0 %v1337
    %v1524 = vpop.f32.mrb[0].mxu0
    %v1525 = vadd.f32 0.0, %v1524
    %v1526 = vpop.f32.mrb[0].mxu0
    %v1527 = vadd.f32 0.0, %v1526
    %1528 = vdwg.mxu0
    %v1529 = vadd.f32 %v1266, %v1418
    %v1530 = vadd.f32 %v1267, %v1420
    %v1531 = vadd.f32 %v1268, %v1507
    %v1532 = vadd.f32 %v1269, %v1509
    %v1533 = vadd.f32 %v1270, %v1424
    %v1534 = vadd.f32 %v1271, %v1426
    %v1535 = vadd.f32 %v1272, %v1513
    %v1536 = vadd.f32 %v1273, %v1515
    %v1537 = vadd.f32 %v1274, %v1430
    %v1538 = vadd.f32 %v1275, %v1432
    %v1539 = vadd.f32 %v1276, %v1519
    %v1540 = vadd.f32 %v1277, %v1521
    %v1541 = vadd.f32 %v1278, %v1436
    %v1542 = vadd.f32 %v1279, %v1438
    %v1543 = vadd.f32 %v1280, %v1525
    %v1544 = vadd.f32 %v1281, %v1527
    %s1545 = scalar_lea.vmem %s2, 192
    %v1546 = vld [vmem:[%s1545] sm:$0xff]
    %v1547 = vld [vmem:[%s1545 + $0x8] sm:$0xff]
    %v1548 = vld [vmem:[%s1545 + $0x10] sm:$0xff]
    %v1549 = vld [vmem:[%s1545 + $0x18] sm:$0xff]
    %1550 = vrot.lane.b32.xlu0 %v33, 113
    %v1551 = vpop.permute.xlu0 %1550
    %1552 = vrot.lane.b32.xlu0 %v41, 113
    %v1553 = vpop.permute.xlu0 %1552
    %1554 = vrot.lane.b32.xlu0 %v34, 113
    %v1555 = vpop.permute.xlu0 %1554
    %1556 = vrot.lane.b32.xlu0 %v42, 113
    %v1557 = vpop.permute.xlu0 %1556
    %vm1558 = vcmp.lt.s32.totalorder %v54, 113
    %v1559 = vsel %vm1558, %v1555, %v1557
    %v1560 = vsel %vm1558, %v1553, %v1555
    %v1561 = vsel %vm1558, %v1551, %v1553
    %v1562 = vsel %vm1558, %v1557, %v1551
    %s1563 = scalar_lea.vmem %s1, 6
    %v1564 = vld [vmem:[%s1563] ss:$8 sm:$0xf]
    %v1566 = vlaneseq
    %v1567 = vshrl.u32 %v1566, 7
    %v1568 = vsub.s32 0, %v1567
    %v1569 = vrot.slane %v1564, %v1568
    %v1570 = vlaneseq
    %v1571 = vshrl.u32 %v1570, 7
    %v1572 = vsub.s32 1, %v1571
    %v1573 = vrot.slane %v1564, %v1572
    %v1574 = vlaneseq
    %v1575 = vshrl.u32 %v1574, 7
    %v1576 = vsub.s32 2, %v1575
    %v1577 = vrot.slane %v1564, %v1576
    %v1578 = vlaneseq
    %v1579 = vshrl.u32 %v1578, 7
    %v1580 = vsub.s32 3, %v1579
    %v1581 = vrot.slane %v1564, %v1580
    %v1586 = vmul.f32 %v1561, %v1569
    %v1587 = vmul.f32 %v1560, %v1573
    %v1588 = vmul.f32 %v1559, %v1577
    %v1589 = vmul.f32 %v1562, %v1581
    %v1591 = vsel %vm131, %v1546, 0
    %v1594 = vsel %vm131, %v1547, 0
    %v1597 = vsel %vm131, %v1548, 0
    %v1600 = vsel %vm131, %v1549, 0
    %v1603 = vsel %vm144, %v1586, 0
    %v1606 = vsel %vm144, %v1587, 0
    %v1609 = vsel %vm144, %v1588, 0
    %v1612 = vsel %vm144, %v1589, 0
    %1614 = vmatprep.subr.mxu0 %v1606
    %1615 = vmatpush1.msra.mxu0 %v1603
    %1616 = vmatprep.subr.mxu0 0.0
    %1617 = vmatpush1.msra.mxu0 0.0
    %1618 = vmatprep.subr.mxu0 0.0
    %1619 = vmatpush1.msra.mxu0 0.0
    %1620 = vmatprep.subr.mxu0 0.0
    %1621 = vmatpush1.msra.mxu0 0.0
    %1622 = vmatprep.subr.mxu0 0.0
    %1623 = vmatpush1.msra.mxu0 0.0
    %1624 = vmatprep.subr.mxu0 0.0
    %1625 = vmatpush1.msra.mxu0 0.0
    %1626 = vmatprep.subr.mxu0 0.0
    %1627 = vmatpush1.msra.mxu0 0.0
    %1628 = vmatprep.subr.mxu0 0.0
    %1629 = vmatpush1.msra.mxu0 0.0
    %1630 = vmatprep.subr.mxu0 0.0
    %1631 = vmatpush1.msra.mxu0 0.0
    %1632 = vmatprep.subr.mxu0 0.0
    %1633 = vmatpush1.msra.mxu0 0.0
    %1634 = vmatprep.subr.mxu0 0.0
    %1635 = vmatpush1.msra.mxu0 0.0
    %1636 = vmatprep.subr.mxu0 0.0
    %1637 = vmatpush1.msra.mxu0 0.0
    %1638 = vmatprep.subr.mxu0 0.0
    %1639 = vmatpush1.msra.mxu0 0.0
    %1640 = vmatprep.subr.mxu0 0.0
    %1641 = vmatpush1.msra.mxu0 0.0
    %1642 = vmatprep.subr.mxu0 0.0
    %1643 = vmatpush1.msra.mxu0 0.0
    %1644 = vmatprep.subr.mxu0 0.0
    %1645 = vmatpush1.msra.mxu0 0.0
    %1646 = vmatprep.subr.mxu0 0.0
    %1647 = vmatpush1.msra.mxu0 0.0
    %1648 = vmatprep.subr.mxu0 0.0
    %1649 = vmatpush1.msra.mxu0 0.0
    %1650 = vmatprep.subr.mxu0 0.0
    %1651 = vmatpush1.msra.mxu0 0.0
    %1652 = vmatprep.subr.mxu0 0.0
    %1653 = vmatpush1.msra.mxu0 0.0
    %1654 = vmatprep.subr.mxu0 0.0
    %1655 = vmatpush1.msra.mxu0 0.0
    %1656 = vmatprep.subr.mxu0 0.0
    %1657 = vmatpush1.msra.mxu0 0.0
    %1658 = vmatprep.subr.mxu0 0.0
    %1659 = vmatpush1.msra.mxu0 0.0
    %1660 = vmatprep.subr.mxu0 0.0
    %1661 = vmatpush1.msra.mxu0 0.0
    %1662 = vmatprep.subr.mxu0 0.0
    %1663 = vmatpush1.msra.mxu0 0.0
    %1664 = vmatprep.subr.mxu0 0.0
    %1665 = vmatpush1.msra.mxu0 0.0
    %1666 = vmatprep.subr.mxu0 0.0
    %1667 = vmatpush1.msra.mxu0 0.0
    %1668 = vmatprep.subr.mxu0 0.0
    %1669 = vmatpush1.msra.mxu0 0.0
    %1670 = vmatprep.subr.mxu0 0.0
    %1671 = vmatpush1.msra.mxu0 0.0
    %1672 = vmatprep.subr.mxu0 0.0
    %1673 = vmatpush1.msra.mxu0 0.0
    %1674 = vmatprep.subr.mxu0 0.0
    %1675 = vmatpush1.msra.mxu0 0.0
    %1676 = vmatprep.subr.mxu0 0.0
    %1677 = vmatpush1.msra.mxu0 0.0
    %1678 = vmatprep.mubr.f32.mxu0 0.0
    %1679 = vmatmul.mubr.f32.gmra.mrb[0].mxu0 %v1591
    %v1680 = vpop.f32.mrb[0].mxu0
    %v1681 = vadd.f32 0.0, %v1680
    %v1682 = vpop.f32.mrb[0].mxu0
    %v1683 = vadd.f32 0.0, %v1682
    %1684 = vmatprep.mubr.f32.mxu0 0.0
    %1685 = vmatmul.mubr.f32.gmra.mrb[0].mxu0 %v1594
    %v1686 = vpop.f32.mrb[0].mxu0
    %v1687 = vadd.f32 0.0, %v1686
    %v1688 = vpop.f32.mrb[0].mxu0
    %v1689 = vadd.f32 0.0, %v1688
    %1690 = vmatprep.mubr.f32.mxu0 0.0
    %1691 = vmatmul.mubr.f32.gmra.mrb[0].mxu0 %v1597
    %v1692 = vpop.f32.mrb[0].mxu0
    %v1693 = vadd.f32 0.0, %v1692
    %v1694 = vpop.f32.mrb[0].mxu0
    %v1695 = vadd.f32 0.0, %v1694
    %1696 = vmatprep.mubr.f32.mxu0 0.0
    %1697 = vmatmul.mubr.f32.gmra.mrb[0].mxu0 %v1600
    %v1698 = vpop.f32.mrb[0].mxu0
    %v1699 = vadd.f32 0.0, %v1698
    %v1700 = vpop.f32.mrb[0].mxu0
    %v1701 = vadd.f32 0.0, %v1700
    %1702 = vdwg.mxu0
    %1703 = vmatprep.subr.mxu0 %v1612
    %1704 = vmatpush1.msra.mxu0 %v1609
    %1705 = vmatprep.subr.mxu0 0.0
    %1706 = vmatpush1.msra.mxu0 0.0
    %1707 = vmatprep.subr.mxu0 0.0
    %1708 = vmatpush1.msra.mxu0 0.0
    %1709 = vmatprep.subr.mxu0 0.0
    %1710 = vmatpush1.msra.mxu0 0.0
    %1711 = vmatprep.subr.mxu0 0.0
    %1712 = vmatpush1.msra.mxu0 0.0
    %1713 = vmatprep.subr.mxu0 0.0
    %1714 = vmatpush1.msra.mxu0 0.0
    %1715 = vmatprep.subr.mxu0 0.0
    %1716 = vmatpush1.msra.mxu0 0.0
    %1717 = vmatprep.subr.mxu0 0.0
    %1718 = vmatpush1.msra.mxu0 0.0
    %1719 = vmatprep.subr.mxu0 0.0
    %1720 = vmatpush1.msra.mxu0 0.0
    %1721 = vmatprep.subr.mxu0 0.0
    %1722 = vmatpush1.msra.mxu0 0.0
    %1723 = vmatprep.subr.mxu0 0.0
    %1724 = vmatpush1.msra.mxu0 0.0
    %1725 = vmatprep.subr.mxu0 0.0
    %1726 = vmatpush1.msra.mxu0 0.0
    %1727 = vmatprep.subr.mxu0 0.0
    %1728 = vmatpush1.msra.mxu0 0.0
    %1729 = vmatprep.subr.mxu0 0.0
    %1730 = vmatpush1.msra.mxu0 0.0
    %1731 = vmatprep.subr.mxu0 0.0
    %1732 = vmatpush1.msra.mxu0 0.0
    %1733 = vmatprep.subr.mxu0 0.0
    %1734 = vmatpush1.msra.mxu0 0.0
    %1735 = vmatprep.subr.mxu0 0.0
    %1736 = vmatpush1.msra.mxu0 0.0
    %1737 = vmatprep.subr.mxu0 0.0
    %1738 = vmatpush1.msra.mxu0 0.0
    %1739 = vmatprep.subr.mxu0 0.0
    %1740 = vmatpush1.msra.mxu0 0.0
    %1741 = vmatprep.subr.mxu0 0.0
    %1742 = vmatpush1.msra.mxu0 0.0
    %1743 = vmatprep.subr.mxu0 0.0
    %1744 = vmatpush1.msra.mxu0 0.0
    %1745 = vmatprep.subr.mxu0 0.0
    %1746 = vmatpush1.msra.mxu0 0.0
    %1747 = vmatprep.subr.mxu0 0.0
    %1748 = vmatpush1.msra.mxu0 0.0
    %1749 = vmatprep.subr.mxu0 0.0
    %1750 = vmatpush1.msra.mxu0 0.0
    %1751 = vmatprep.subr.mxu0 0.0
    %1752 = vmatpush1.msra.mxu0 0.0
    %1753 = vmatprep.subr.mxu0 0.0
    %1754 = vmatpush1.msra.mxu0 0.0
    %1755 = vmatprep.subr.mxu0 0.0
    %1756 = vmatpush1.msra.mxu0 0.0
    %1757 = vmatprep.subr.mxu0 0.0
    %1758 = vmatpush1.msra.mxu0 0.0
    %1759 = vmatprep.subr.mxu0 0.0
    %1760 = vmatpush1.msra.mxu0 0.0
    %1761 = vmatprep.subr.mxu0 0.0
    %1762 = vmatpush1.msra.mxu0 0.0
    %1763 = vmatprep.subr.mxu0 0.0
    %1764 = vmatpush1.msra.mxu0 0.0
    %1765 = vmatprep.subr.mxu0 0.0
    %1766 = vmatpush1.msra.mxu0 0.0
    %1767 = vmatprep.mubr.f32.mxu0 0.0
    %1768 = vmatmul.mubr.f32.gmra.mrb[0].mxu0 %v1591
    %v1769 = vpop.f32.mrb[0].mxu0
    %v1770 = vadd.f32 0.0, %v1769
    %v1771 = vpop.f32.mrb[0].mxu0
    %v1772 = vadd.f32 0.0, %v1771
    %1773 = vmatprep.mubr.f32.mxu0 0.0
    %1774 = vmatmul.mubr.f32.gmra.mrb[0].mxu0 %v1594
    %v1775 = vpop.f32.mrb[0].mxu0
    %v1776 = vadd.f32 0.0, %v1775
    %v1777 = vpop.f32.mrb[0].mxu0
    %v1778 = vadd.f32 0.0, %v1777
    %1779 = vmatprep.mubr.f32.mxu0 0.0
    %1780 = vmatmul.mubr.f32.gmra.mrb[0].mxu0 %v1597
    %v1781 = vpop.f32.mrb[0].mxu0
    %v1782 = vadd.f32 0.0, %v1781
    %v1783 = vpop.f32.mrb[0].mxu0
    %v1784 = vadd.f32 0.0, %v1783
    %1785 = vmatprep.mubr.f32.mxu0 0.0
    %1786 = vmatmul.mubr.f32.gmra.mrb[0].mxu0 %v1600
    %v1787 = vpop.f32.mrb[0].mxu0
    %v1788 = vadd.f32 0.0, %v1787
    %v1789 = vpop.f32.mrb[0].mxu0
    %v1790 = vadd.f32 0.0, %v1789
    %1791 = vdwg.mxu0
    %v1792 = vadd.f32 %v1529, %v1681
    %v1793 = vadd.f32 %v1530, %v1683
    %v1794 = vadd.f32 %v1531, %v1770
    %v1795 = vadd.f32 %v1532, %v1772
    %v1796 = vadd.f32 %v1533, %v1687
    %v1797 = vadd.f32 %v1534, %v1689
    %v1798 = vadd.f32 %v1535, %v1776
    %v1799 = vadd.f32 %v1536, %v1778
    %v1800 = vadd.f32 %v1537, %v1693
    %v1801 = vadd.f32 %v1538, %v1695
    %v1802 = vadd.f32 %v1539, %v1782
    %v1803 = vadd.f32 %v1540, %v1784
    %v1804 = vadd.f32 %v1541, %v1699
    %v1805 = vadd.f32 %v1542, %v1701
    %v1806 = vadd.f32 %v1543, %v1788
    %v1807 = vadd.f32 %v1544, %v1790
    %s1808 = scalar_lea.vmem %s2, 224
    %v1809 = vld [vmem:[%s1808] sm:$0xff]
    %v1810 = vld [vmem:[%s1808 + $0x8] sm:$0xff]
    %v1811 = vld [vmem:[%s1808 + $0x10] sm:$0xff]
    %v1812 = vld [vmem:[%s1808 + $0x18] sm:$0xff]
    %1813 = vrot.lane.b32.xlu0 %v33, 112
    %v1814 = vpop.permute.xlu0 %1813
    %1815 = vrot.lane.b32.xlu0 %v41, 112
    %v1816 = vpop.permute.xlu0 %1815
    %1817 = vrot.lane.b32.xlu0 %v34, 112
    %v1818 = vpop.permute.xlu0 %1817
    %1819 = vrot.lane.b32.xlu0 %v42, 112
    %v1820 = vpop.permute.xlu0 %1819
    %vm1821 = vcmp.lt.s32.totalorder %v54, 112
    %v1822 = vsel %vm1821, %v1818, %v1820
    %v1823 = vsel %vm1821, %v1816, %v1818
    %v1824 = vsel %vm1821, %v1814, %v1816
    %v1825 = vsel %vm1821, %v1820, %v1814
    %s1826 = scalar_lea.vmem %s1, 7
    %v1827 = vld [vmem:[%s1826] ss:$8 sm:$0xf]
    %v1829 = vlaneseq
    %v1830 = vshrl.u32 %v1829, 7
    %v1831 = vsub.s32 0, %v1830
    %v1832 = vrot.slane %v1827, %v1831
    %v1833 = vlaneseq
    %v1834 = vshrl.u32 %v1833, 7
    %v1835 = vsub.s32 1, %v1834
    %v1836 = vrot.slane %v1827, %v1835
    %v1837 = vlaneseq
    %v1838 = vshrl.u32 %v1837, 7
    %v1839 = vsub.s32 2, %v1838
    %v1840 = vrot.slane %v1827, %v1839
    %v1841 = vlaneseq
    %v1842 = vshrl.u32 %v1841, 7
    %v1843 = vsub.s32 3, %v1842
    %v1844 = vrot.slane %v1827, %v1843
    %v1849 = vmul.f32 %v1824, %v1832
    %v1850 = vmul.f32 %v1823, %v1836
    %v1851 = vmul.f32 %v1822, %v1840
    %v1852 = vmul.f32 %v1825, %v1844
    %v1854 = vsel %vm131, %v1809, 0
    %v1857 = vsel %vm131, %v1810, 0
    %v1860 = vsel %vm131, %v1811, 0
    %v1863 = vsel %vm131, %v1812, 0
    %v1866 = vsel %vm144, %v1849, 0
    %v1869 = vsel %vm144, %v1850, 0
    %v1872 = vsel %vm144, %v1851, 0
    %v1875 = vsel %vm144, %v1852, 0
    %1877 = vmatprep.subr.mxu0 %v1869
    %1878 = vmatpush1.msra.mxu0 %v1866
    %1879 = vmatprep.subr.mxu0 0.0
    %1880 = vmatpush1.msra.mxu0 0.0
    %1881 = vmatprep.subr.mxu0 0.0
    %1882 = vmatpush1.msra.mxu0 0.0
    %1883 = vmatprep.subr.mxu0 0.0
    %1884 = vmatpush1.msra.mxu0 0.0
    %1885 = vmatprep.subr.mxu0 0.0
    %1886 = vmatpush1.msra.mxu0 0.0
    %1887 = vmatprep.subr.mxu0 0.0
    %1888 = vmatpush1.msra.mxu0 0.0
    %1889 = vmatprep.subr.mxu0 0.0
    %1890 = vmatpush1.msra.mxu0 0.0
    %1891 = vmatprep.subr.mxu0 0.0
    %1892 = vmatpush1.msra.mxu0 0.0
    %1893 = vmatprep.subr.mxu0 0.0
    %1894 = vmatpush1.msra.mxu0 0.0
    %1895 = vmatprep.subr.mxu0 0.0
    %1896 = vmatpush1.msra.mxu0 0.0
    %1897 = vmatprep.subr.mxu0 0.0
    %1898 = vmatpush1.msra.mxu0 0.0
    %1899 = vmatprep.subr.mxu0 0.0
    %1900 = vmatpush1.msra.mxu0 0.0
    %1901 = vmatprep.subr.mxu0 0.0
    %1902 = vmatpush1.msra.mxu0 0.0
    %1903 = vmatprep.subr.mxu0 0.0
    %1904 = vmatpush1.msra.mxu0 0.0
    %1905 = vmatprep.subr.mxu0 0.0
    %1906 = vmatpush1.msra.mxu0 0.0
    %1907 = vmatprep.subr.mxu0 0.0
    %1908 = vmatpush1.msra.mxu0 0.0
    %1909 = vmatprep.subr.mxu0 0.0
    %1910 = vmatpush1.msra.mxu0 0.0
    %1911 = vmatprep.subr.mxu0 0.0
    %1912 = vmatpush1.msra.mxu0 0.0
    %1913 = vmatprep.subr.mxu0 0.0
    %1914 = vmatpush1.msra.mxu0 0.0
    %1915 = vmatprep.subr.mxu0 0.0
    %1916 = vmatpush1.msra.mxu0 0.0
    %1917 = vmatprep.subr.mxu0 0.0
    %1918 = vmatpush1.msra.mxu0 0.0
    %1919 = vmatprep.subr.mxu0 0.0
    %1920 = vmatpush1.msra.mxu0 0.0
    %1921 = vmatprep.subr.mxu0 0.0
    %1922 = vmatpush1.msra.mxu0 0.0
    %1923 = vmatprep.subr.mxu0 0.0
    %1924 = vmatpush1.msra.mxu0 0.0
    %1925 = vmatprep.subr.mxu0 0.0
    %1926 = vmatpush1.msra.mxu0 0.0
    %1927 = vmatprep.subr.mxu0 0.0
    %1928 = vmatpush1.msra.mxu0 0.0
    %1929 = vmatprep.subr.mxu0 0.0
    %1930 = vmatpush1.msra.mxu0 0.0
    %1931 = vmatprep.subr.mxu0 0.0
    %1932 = vmatpush1.msra.mxu0 0.0
    %1933 = vmatprep.subr.mxu0 0.0
    %1934 = vmatpush1.msra.mxu0 0.0
    %1935 = vmatprep.subr.mxu0 0.0
    %1936 = vmatpush1.msra.mxu0 0.0
    %1937 = vmatprep.subr.mxu0 0.0
    %1938 = vmatpush1.msra.mxu0 0.0
    %1939 = vmatprep.subr.mxu0 0.0
    %1940 = vmatpush1.msra.mxu0 0.0
    %1941 = vmatprep.mubr.f32.mxu0 0.0
    %1942 = vmatmul.mubr.f32.gmra.mrb[0].mxu0 %v1854
    %v1943 = vpop.f32.mrb[0].mxu0
    %v1944 = vadd.f32 0.0, %v1943
    %v1945 = vpop.f32.mrb[0].mxu0
    %v1946 = vadd.f32 0.0, %v1945
    %1947 = vmatprep.mubr.f32.mxu0 0.0
    %1948 = vmatmul.mubr.f32.gmra.mrb[0].mxu0 %v1857
    %v1949 = vpop.f32.mrb[0].mxu0
    %v1950 = vadd.f32 0.0, %v1949
    %v1951 = vpop.f32.mrb[0].mxu0
    %v1952 = vadd.f32 0.0, %v1951
    %1953 = vmatprep.mubr.f32.mxu0 0.0
    %1954 = vmatmul.mubr.f32.gmra.mrb[0].mxu0 %v1860
    %v1955 = vpop.f32.mrb[0].mxu0
    %v1956 = vadd.f32 0.0, %v1955
    %v1957 = vpop.f32.mrb[0].mxu0
    %v1958 = vadd.f32 0.0, %v1957
    %1959 = vmatprep.mubr.f32.mxu0 0.0
    %1960 = vmatmul.mubr.f32.gmra.mrb[0].mxu0 %v1863
    %v1961 = vpop.f32.mrb[0].mxu0
    %v1962 = vadd.f32 0.0, %v1961
    %v1963 = vpop.f32.mrb[0].mxu0
    %v1964 = vadd.f32 0.0, %v1963
    %1965 = vdwg.mxu0
    %1966 = vmatprep.subr.mxu0 %v1875
    %1967 = vmatpush1.msra.mxu0 %v1872
    %1968 = vmatprep.subr.mxu0 0.0
    %1969 = vmatpush1.msra.mxu0 0.0
    %1970 = vmatprep.subr.mxu0 0.0
    %1971 = vmatpush1.msra.mxu0 0.0
    %1972 = vmatprep.subr.mxu0 0.0
    %1973 = vmatpush1.msra.mxu0 0.0
    %1974 = vmatprep.subr.mxu0 0.0
    %1975 = vmatpush1.msra.mxu0 0.0
    %1976 = vmatprep.subr.mxu0 0.0
    %1977 = vmatpush1.msra.mxu0 0.0
    %1978 = vmatprep.subr.mxu0 0.0
    %1979 = vmatpush1.msra.mxu0 0.0
    %1980 = vmatprep.subr.mxu0 0.0
    %1981 = vmatpush1.msra.mxu0 0.0
    %1982 = vmatprep.subr.mxu0 0.0
    %1983 = vmatpush1.msra.mxu0 0.0
    %1984 = vmatprep.subr.mxu0 0.0
    %1985 = vmatpush1.msra.mxu0 0.0
    %1986 = vmatprep.subr.mxu0 0.0
    %1987 = vmatpush1.msra.mxu0 0.0
    %1988 = vmatprep.subr.mxu0 0.0
    %1989 = vmatpush1.msra.mxu0 0.0
    %1990 = vmatprep.subr.mxu0 0.0
    %1991 = vmatpush1.msra.mxu0 0.0
    %1992 = vmatprep.subr.mxu0 0.0
    %1993 = vmatpush1.msra.mxu0 0.0
    %1994 = vmatprep.subr.mxu0 0.0
    %1995 = vmatpush1.msra.mxu0 0.0
    %1996 = vmatprep.subr.mxu0 0.0
    %1997 = vmatpush1.msra.mxu0 0.0
    %1998 = vmatprep.subr.mxu0 0.0
    %1999 = vmatpush1.msra.mxu0 0.0
    %2000 = vmatprep.subr.mxu0 0.0
    %2001 = vmatpush1.msra.mxu0 0.0
    %2002 = vmatprep.subr.mxu0 0.0
    %2003 = vmatpush1.msra.mxu0 0.0
    %2004 = vmatprep.subr.mxu0 0.0
    %2005 = vmatpush1.msra.mxu0 0.0
    %2006 = vmatprep.subr.mxu0 0.0
    %2007 = vmatpush1.msra.mxu0 0.0
    %2008 = vmatprep.subr.mxu0 0.0
    %2009 = vmatpush1.msra.mxu0 0.0
    %2010 = vmatprep.subr.mxu0 0.0
    %2011 = vmatpush1.msra.mxu0 0.0
    %2012 = vmatprep.subr.mxu0 0.0
    %2013 = vmatpush1.msra.mxu0 0.0
    %2014 = vmatprep.subr.mxu0 0.0
    %2015 = vmatpush1.msra.mxu0 0.0
    %2016 = vmatprep.subr.mxu0 0.0
    %2017 = vmatpush1.msra.mxu0 0.0
    %2018 = vmatprep.subr.mxu0 0.0
    %2019 = vmatpush1.msra.mxu0 0.0
    %2020 = vmatprep.subr.mxu0 0.0
    %2021 = vmatpush1.msra.mxu0 0.0
    %2022 = vmatprep.subr.mxu0 0.0
    %2023 = vmatpush1.msra.mxu0 0.0
    %2024 = vmatprep.subr.mxu0 0.0
    %2025 = vmatpush1.msra.mxu0 0.0
    %2026 = vmatprep.subr.mxu0 0.0
    %2027 = vmatpush1.msra.mxu0 0.0
    %2028 = vmatprep.subr.mxu0 0.0
    %2029 = vmatpush1.msra.mxu0 0.0
    %2030 = vmatprep.mubr.f32.mxu0 0.0
    %2031 = vmatmul.mubr.f32.gmra.mrb[0].mxu0 %v1854
    %v2032 = vpop.f32.mrb[0].mxu0
    %v2033 = vadd.f32 0.0, %v2032
    %v2034 = vpop.f32.mrb[0].mxu0
    %v2035 = vadd.f32 0.0, %v2034
    %2036 = vmatprep.mubr.f32.mxu0 0.0
    %2037 = vmatmul.mubr.f32.gmra.mrb[0].mxu0 %v1857
    %v2038 = vpop.f32.mrb[0].mxu0
    %v2039 = vadd.f32 0.0, %v2038
    %v2040 = vpop.f32.mrb[0].mxu0
    %v2041 = vadd.f32 0.0, %v2040
    %2042 = vmatprep.mubr.f32.mxu0 0.0
    %2043 = vmatmul.mubr.f32.gmra.mrb[0].mxu0 %v1860
    %v2044 = vpop.f32.mrb[0].mxu0
    %v2045 = vadd.f32 0.0, %v2044
    %v2046 = vpop.f32.mrb[0].mxu0
    %v2047 = vadd.f32 0.0, %v2046
    %2048 = vmatprep.mubr.f32.mxu0 0.0
    %2049 = vmatmul.mubr.f32.gmra.mrb[0].mxu0 %v1863
    %v2050 = vpop.f32.mrb[0].mxu0
    %v2051 = vadd.f32 0.0, %v2050
    %v2052 = vpop.f32.mrb[0].mxu0
    %v2053 = vadd.f32 0.0, %v2052
    %2054 = vdwg.mxu0
    %v2055 = vadd.f32 %v1792, %v1944
    %v2056 = vadd.f32 %v1793, %v1946
    %v2057 = vadd.f32 %v1794, %v2033
    %v2058 = vadd.f32 %v1795, %v2035
    %v2059 = vadd.f32 %v1796, %v1950
    %v2060 = vadd.f32 %v1797, %v1952
    %v2061 = vadd.f32 %v1798, %v2039
    %v2062 = vadd.f32 %v1799, %v2041
    %v2063 = vadd.f32 %v1800, %v1956
    %v2064 = vadd.f32 %v1801, %v1958
    %v2065 = vadd.f32 %v1802, %v2045
    %v2066 = vadd.f32 %v1803, %v2047
    %v2067 = vadd.f32 %v1804, %v1962
    %v2068 = vadd.f32 %v1805, %v1964
    %v2069 = vadd.f32 %v1806, %v2051
    %v2070 = vadd.f32 %v1807, %v2053
    %s2071 = scalar_lea.vmem %s2, 256
    %v2072 = vld [vmem:[%s2071] sm:$0xff]
    %v2073 = vld [vmem:[%s2071 + $0x8] sm:$0xff]
    %v2074 = vld [vmem:[%s2071 + $0x10] sm:$0xff]
    %v2075 = vld [vmem:[%s2071 + $0x18] sm:$0xff]
    %2076 = vrot.lane.b32.xlu0 %v33, 111
    %v2077 = vpop.permute.xlu0 %2076
    %2078 = vrot.lane.b32.xlu0 %v41, 111
    %v2079 = vpop.permute.xlu0 %2078
    %2080 = vrot.lane.b32.xlu0 %v34, 111
    %v2081 = vpop.permute.xlu0 %2080
    %2082 = vrot.lane.b32.xlu0 %v42, 111
    %v2083 = vpop.permute.xlu0 %2082
    %vm2084 = vcmp.lt.s32.totalorder %v54, 111
    %v2085 = vsel %vm2084, %v2081, %v2083
    %v2086 = vsel %vm2084, %v2079, %v2081
    %v2087 = vsel %vm2084, %v2077, %v2079
    %v2088 = vsel %vm2084, %v2083, %v2077
    %s2089 = scalar_lea.vmem %s1, 32
    %v2090 = vld [vmem:[%s2089] ss:$8 sm:$0xf]
    %v2092 = vlaneseq
    %v2093 = vshrl.u32 %v2092, 7
    %v2094 = vsub.s32 0, %v2093
    %v2095 = vrot.slane %v2090, %v2094
    %v2096 = vlaneseq
    %v2097 = vshrl.u32 %v2096, 7
    %v2098 = vsub.s32 1, %v2097
    %v2099 = vrot.slane %v2090, %v2098
    %v2100 = vlaneseq
    %v2101 = vshrl.u32 %v2100, 7
    %v2102 = vsub.s32 2, %v2101
    %v2103 = vrot.slane %v2090, %v2102
    %v2104 = vlaneseq
    %v2105 = vshrl.u32 %v2104, 7
    %v2106 = vsub.s32 3, %v2105
    %v2107 = vrot.slane %v2090, %v2106
    %v2112 = vmul.f32 %v2087, %v2095
    %v2113 = vmul.f32 %v2086, %v2099
    %v2114 = vmul.f32 %v2085, %v2103
    %v2115 = vmul.f32 %v2088, %v2107
    %v2117 = vsel %vm131, %v2072, 0
    %v2120 = vsel %vm131, %v2073, 0
    %v2123 = vsel %vm131, %v2074, 0
    %v2126 = vsel %vm131, %v2075, 0
    %v2129 = vsel %vm144, %v2112, 0
    %v2132 = vsel %vm144, %v2113, 0
    %v2135 = vsel %vm144, %v2114, 0
    %v2138 = vsel %vm144, %v2115, 0
    %2140 = vmatprep.subr.mxu0 %v2132
    %2141 = vmatpush1.msra.mxu0 %v2129
    %2142 = vmatprep.subr.mxu0 0.0
    %2143 = vmatpush1.msra.mxu0 0.0
    %2144 = vmatprep.subr.mxu0 0.0
    %2145 = vmatpush1.msra.mxu0 0.0
    %2146 = vmatprep.subr.mxu0 0.0
    %2147 = vmatpush1.msra.mxu0 0.0
    %2148 = vmatprep.subr.mxu0 0.0
    %2149 = vmatpush1.msra.mxu0 0.0
    %2150 = vmatprep.subr.mxu0 0.0
    %2151 = vmatpush1.msra.mxu0 0.0
    %2152 = vmatprep.subr.mxu0 0.0
    %2153 = vmatpush1.msra.mxu0 0.0
    %2154 = vmatprep.subr.mxu0 0.0
    %2155 = vmatpush1.msra.mxu0 0.0
    %2156 = vmatprep.subr.mxu0 0.0
    %2157 = vmatpush1.msra.mxu0 0.0
    %2158 = vmatprep.subr.mxu0 0.0
    %2159 = vmatpush1.msra.mxu0 0.0
    %2160 = vmatprep.subr.mxu0 0.0
    %2161 = vmatpush1.msra.mxu0 0.0
    %2162 = vmatprep.subr.mxu0 0.0
    %2163 = vmatpush1.msra.mxu0 0.0
    %2164 = vmatprep.subr.mxu0 0.0
    %2165 = vmatpush1.msra.mxu0 0.0
    %2166 = vmatprep.subr.mxu0 0.0
    %2167 = vmatpush1.msra.mxu0 0.0
    %2168 = vmatprep.subr.mxu0 0.0
    %2169 = vmatpush1.msra.mxu0 0.0
    %2170 = vmatprep.subr.mxu0 0.0
    %2171 = vmatpush1.msra.mxu0 0.0
    %2172 = vmatprep.subr.mxu0 0.0
    %2173 = vmatpush1.msra.mxu0 0.0
    %2174 = vmatprep.subr.mxu0 0.0
    %2175 = vmatpush1.msra.mxu0 0.0
    %2176 = vmatprep.subr.mxu0 0.0
    %2177 = vmatpush1.msra.mxu0 0.0
    %2178 = vmatprep.subr.mxu0 0.0
    %2179 = vmatpush1.msra.mxu0 0.0
    %2180 = vmatprep.subr.mxu0 0.0
    %2181 = vmatpush1.msra.mxu0 0.0
    %2182 = vmatprep.subr.mxu0 0.0
    %2183 = vmatpush1.msra.mxu0 0.0
    %2184 = vmatprep.subr.mxu0 0.0
    %2185 = vmatpush1.msra.mxu0 0.0
    %2186 = vmatprep.subr.mxu0 0.0
    %2187 = vmatpush1.msra.mxu0 0.0
    %2188 = vmatprep.subr.mxu0 0.0
    %2189 = vmatpush1.msra.mxu0 0.0
    %2190 = vmatprep.subr.mxu0 0.0
    %2191 = vmatpush1.msra.mxu0 0.0
    %2192 = vmatprep.subr.mxu0 0.0
    %2193 = vmatpush1.msra.mxu0 0.0
    %2194 = vmatprep.subr.mxu0 0.0
    %2195 = vmatpush1.msra.mxu0 0.0
    %2196 = vmatprep.subr.mxu0 0.0
    %2197 = vmatpush1.msra.mxu0 0.0
    %2198 = vmatprep.subr.mxu0 0.0
    %2199 = vmatpush1.msra.mxu0 0.0
    %2200 = vmatprep.subr.mxu0 0.0
    %2201 = vmatpush1.msra.mxu0 0.0
    %2202 = vmatprep.subr.mxu0 0.0
    %2203 = vmatpush1.msra.mxu0 0.0
    %2204 = vmatprep.mubr.f32.mxu0 0.0
    %2205 = vmatmul.mubr.f32.gmra.mrb[0].mxu0 %v2117
    %v2206 = vpop.f32.mrb[0].mxu0
    %v2207 = vadd.f32 0.0, %v2206
    %v2208 = vpop.f32.mrb[0].mxu0
    %v2209 = vadd.f32 0.0, %v2208
    %2210 = vmatprep.mubr.f32.mxu0 0.0
    %2211 = vmatmul.mubr.f32.gmra.mrb[0].mxu0 %v2120
    %v2212 = vpop.f32.mrb[0].mxu0
    %v2213 = vadd.f32 0.0, %v2212
    %v2214 = vpop.f32.mrb[0].mxu0
    %v2215 = vadd.f32 0.0, %v2214
    %2216 = vmatprep.mubr.f32.mxu0 0.0
    %2217 = vmatmul.mubr.f32.gmra.mrb[0].mxu0 %v2123
    %v2218 = vpop.f32.mrb[0].mxu0
    %v2219 = vadd.f32 0.0, %v2218
    %v2220 = vpop.f32.mrb[0].mxu0
    %v2221 = vadd.f32 0.0, %v2220
    %2222 = vmatprep.mubr.f32.mxu0 0.0
    %2223 = vmatmul.mubr.f32.gmra.mrb[0].mxu0 %v2126
    %v2224 = vpop.f32.mrb[0].mxu0
    %v2225 = vadd.f32 0.0, %v2224
    %v2226 = vpop.f32.mrb[0].mxu0
    %v2227 = vadd.f32 0.0, %v2226
    %2228 = vdwg.mxu0
    %2229 = vmatprep.subr.mxu0 %v2138
    %2230 = vmatpush1.msra.mxu0 %v2135
    %2231 = vmatprep.subr.mxu0 0.0
    %2232 = vmatpush1.msra.mxu0 0.0
    %2233 = vmatprep.subr.mxu0 0.0
    %2234 = vmatpush1.msra.mxu0 0.0
    %2235 = vmatprep.subr.mxu0 0.0
    %2236 = vmatpush1.msra.mxu0 0.0
    %2237 = vmatprep.subr.mxu0 0.0
    %2238 = vmatpush1.msra.mxu0 0.0
    %2239 = vmatprep.subr.mxu0 0.0
    %2240 = vmatpush1.msra.mxu0 0.0
    %2241 = vmatprep.subr.mxu0 0.0
    %2242 = vmatpush1.msra.mxu0 0.0
    %2243 = vmatprep.subr.mxu0 0.0
    %2244 = vmatpush1.msra.mxu0 0.0
    %2245 = vmatprep.subr.mxu0 0.0
    %2246 = vmatpush1.msra.mxu0 0.0
    %2247 = vmatprep.subr.mxu0 0.0
    %2248 = vmatpush1.msra.mxu0 0.0
    %2249 = vmatprep.subr.mxu0 0.0
    %2250 = vmatpush1.msra.mxu0 0.0
    %2251 = vmatprep.subr.mxu0 0.0
    %2252 = vmatpush1.msra.mxu0 0.0
    %2253 = vmatprep.subr.mxu0 0.0
    %2254 = vmatpush1.msra.mxu0 0.0
    %2255 = vmatprep.subr.mxu0 0.0
    %2256 = vmatpush1.msra.mxu0 0.0
    %2257 = vmatprep.subr.mxu0 0.0
    %2258 = vmatpush1.msra.mxu0 0.0
    %2259 = vmatprep.subr.mxu0 0.0
    %2260 = vmatpush1.msra.mxu0 0.0
    %2261 = vmatprep.subr.mxu0 0.0
    %2262 = vmatpush1.msra.mxu0 0.0
    %2263 = vmatprep.subr.mxu0 0.0
    %2264 = vmatpush1.msra.mxu0 0.0
    %2265 = vmatprep.subr.mxu0 0.0
    %2266 = vmatpush1.msra.mxu0 0.0
    %2267 = vmatprep.subr.mxu0 0.0
    %2268 = vmatpush1.msra.mxu0 0.0
    %2269 = vmatprep.subr.mxu0 0.0
    %2270 = vmatpush1.msra.mxu0 0.0
    %2271 = vmatprep.subr.mxu0 0.0
    %2272 = vmatpush1.msra.mxu0 0.0
    %2273 = vmatprep.subr.mxu0 0.0
    %2274 = vmatpush1.msra.mxu0 0.0
    %2275 = vmatprep.subr.mxu0 0.0
    %2276 = vmatpush1.msra.mxu0 0.0
    %2277 = vmatprep.subr.mxu0 0.0
    %2278 = vmatpush1.msra.mxu0 0.0
    %2279 = vmatprep.subr.mxu0 0.0
    %2280 = vmatpush1.msra.mxu0 0.0
    %2281 = vmatprep.subr.mxu0 0.0
    %2282 = vmatpush1.msra.mxu0 0.0
    %2283 = vmatprep.subr.mxu0 0.0
    %2284 = vmatpush1.msra.mxu0 0.0
    %2285 = vmatprep.subr.mxu0 0.0
    %2286 = vmatpush1.msra.mxu0 0.0
    %2287 = vmatprep.subr.mxu0 0.0
    %2288 = vmatpush1.msra.mxu0 0.0
    %2289 = vmatprep.subr.mxu0 0.0
    %2290 = vmatpush1.msra.mxu0 0.0
    %2291 = vmatprep.subr.mxu0 0.0
    %2292 = vmatpush1.msra.mxu0 0.0
    %2293 = vmatprep.mubr.f32.mxu0 0.0
    %2294 = vmatmul.mubr.f32.gmra.mrb[0].mxu0 %v2117
    %v2295 = vpop.f32.mrb[0].mxu0
    %v2296 = vadd.f32 0.0, %v2295
    %v2297 = vpop.f32.mrb[0].mxu0
    %v2298 = vadd.f32 0.0, %v2297
    %2299 = vmatprep.mubr.f32.mxu0 0.0
    %2300 = vmatmul.mubr.f32.gmra.mrb[0].mxu0 %v2120
    %v2301 = vpop.f32.mrb[0].mxu0
    %v2302 = vadd.f32 0.0, %v2301
    %v2303 = vpop.f32.mrb[0].mxu0
    %v2304 = vadd.f32 0.0, %v2303
    %2305 = vmatprep.mubr.f32.mxu0 0.0
    %2306 = vmatmul.mubr.f32.gmra.mrb[0].mxu0 %v2123
    %v2307 = vpop.f32.mrb[0].mxu0
    %v2308 = vadd.f32 0.0, %v2307
    %v2309 = vpop.f32.mrb[0].mxu0
    %v2310 = vadd.f32 0.0, %v2309
    %2311 = vmatprep.mubr.f32.mxu0 0.0
    %2312 = vmatmul.mubr.f32.gmra.mrb[0].mxu0 %v2126
    %v2313 = vpop.f32.mrb[0].mxu0
    %v2314 = vadd.f32 0.0, %v2313
    %v2315 = vpop.f32.mrb[0].mxu0
    %v2316 = vadd.f32 0.0, %v2315
    %2317 = vdwg.mxu0
    %v2318 = vadd.f32 %v2055, %v2207
    %v2319 = vadd.f32 %v2056, %v2209
    %v2320 = vadd.f32 %v2057, %v2296
    %v2321 = vadd.f32 %v2058, %v2298
    %v2322 = vadd.f32 %v2059, %v2213
    %v2323 = vadd.f32 %v2060, %v2215
    %v2324 = vadd.f32 %v2061, %v2302
    %v2325 = vadd.f32 %v2062, %v2304
    %v2326 = vadd.f32 %v2063, %v2219
    %v2327 = vadd.f32 %v2064, %v2221
    %v2328 = vadd.f32 %v2065, %v2308
    %v2329 = vadd.f32 %v2066, %v2310
    %v2330 = vadd.f32 %v2067, %v2225
    %v2331 = vadd.f32 %v2068, %v2227
    %v2332 = vadd.f32 %v2069, %v2314
    %v2333 = vadd.f32 %v2070, %v2316
    %v2334 = vld [vmem:[%s3] sm:$0xff]
    %v2335 = vld [vmem:[%s3 + $0x8] sm:$0xff]
    %v2336 = vld [vmem:[%s3 + $0x10] sm:$0xff]
    %v2337 = vld [vmem:[%s3 + $0x18] sm:$0xff]
    %2339 = vset.pattern.permute.xlu0 0
    %2340 = vperm.xlu0 %2339, %v2334
    %v2341 = vpop.permute.xlu0 %2340
    %2344 = vset.pattern.permute.xlu0 0
    %2345 = vperm.xlu0 %2344, %v2335
    %v2346 = vpop.permute.xlu0 %2345
    %2349 = vset.pattern.permute.xlu0 0
    %2350 = vperm.xlu0 %2349, %v2336
    %v2351 = vpop.permute.xlu0 %2350
    %2354 = vset.pattern.permute.xlu0 0
    %2355 = vperm.xlu0 %2354, %v2337
    %v2356 = vpop.permute.xlu0 %2355
    %v2358 = vadd.f32 %v2318, %v2341
    %v2359 = vadd.f32 %v2319, %v2341
    %v2360 = vadd.f32 %v2320, %v2341
    %v2361 = vadd.f32 %v2321, %v2341
    %v2362 = vadd.f32 %v2322, %v2346
    %v2363 = vadd.f32 %v2323, %v2346
    %v2364 = vadd.f32 %v2324, %v2346
    %v2365 = vadd.f32 %v2325, %v2346
    %v2366 = vadd.f32 %v2326, %v2351
    %v2367 = vadd.f32 %v2327, %v2351
    %v2368 = vadd.f32 %v2328, %v2351
    %v2369 = vadd.f32 %v2329, %v2351
    %v2370 = vadd.f32 %v2330, %v2356
    %v2371 = vadd.f32 %v2331, %v2356
    %v2372 = vadd.f32 %v2332, %v2356
    %v2373 = vadd.f32 %v2333, %v2356
    %v2374 = vmax.f32 %v2358, 0.0
    %v2375 = vmax.f32 %v2359, 0.0
    %v2376 = vmax.f32 %v2360, 0.0
    %v2377 = vmax.f32 %v2361, 0.0
    %v2378 = vmax.f32 %v2362, 0.0
    %v2379 = vmax.f32 %v2363, 0.0
    %v2380 = vmax.f32 %v2364, 0.0
    %v2381 = vmax.f32 %v2365, 0.0
    %v2382 = vmax.f32 %v2366, 0.0
    %v2383 = vmax.f32 %v2367, 0.0
    %v2384 = vmax.f32 %v2368, 0.0
    %v2385 = vmax.f32 %v2369, 0.0
    %v2386 = vmax.f32 %v2370, 0.0
    %v2387 = vmax.f32 %v2371, 0.0
    %v2388 = vmax.f32 %v2372, 0.0
    %v2389 = vmax.f32 %v2373, 0.0
    %v2390 = vld [vmem:[%s4] sm:$0xff]
    %v2391 = vld [vmem:[%s4 + $0x8] sm:$0xff]
    %v2392 = vld [vmem:[%s4 + $0x10] sm:$0xff]
    %v2393 = vld [vmem:[%s4 + $0x18] sm:$0xff]
    %2394 = vrot.lane.b32.xlu0 %v2374, 17
    %v2395 = vpop.permute.xlu0 %2394
    %2396 = vrot.lane.b32.xlu0 %v2378, 17
    %v2397 = vpop.permute.xlu0 %2396
    %2398 = vrot.lane.b32.xlu0 %v2382, 17
    %v2399 = vpop.permute.xlu0 %2398
    %2400 = vrot.lane.b32.xlu0 %v2386, 17
    %v2401 = vpop.permute.xlu0 %2400
    %2402 = vrot.lane.b32.xlu0 %v2375, 17
    %v2403 = vpop.permute.xlu0 %2402
    %2404 = vrot.lane.b32.xlu0 %v2379, 17
    %v2405 = vpop.permute.xlu0 %2404
    %2406 = vrot.lane.b32.xlu0 %v2383, 17
    %v2407 = vpop.permute.xlu0 %2406
    %2408 = vrot.lane.b32.xlu0 %v2387, 17
    %v2409 = vpop.permute.xlu0 %2408
    %2410 = vrot.lane.b32.xlu0 %v2376, 17
    %v2411 = vpop.permute.xlu0 %2410
    %2412 = vrot.lane.b32.xlu0 %v2380, 17
    %v2413 = vpop.permute.xlu0 %2412
    %2414 = vrot.lane.b32.xlu0 %v2384, 17
    %v2415 = vpop.permute.xlu0 %2414
    %2416 = vrot.lane.b32.xlu0 %v2388, 17
    %v2417 = vpop.permute.xlu0 %2416
    %2418 = vrot.lane.b32.xlu0 %v2377, 17
    %v2419 = vpop.permute.xlu0 %2418
    %2420 = vrot.lane.b32.xlu0 %v2381, 17
    %v2421 = vpop.permute.xlu0 %2420
    %2422 = vrot.lane.b32.xlu0 %v2385, 17
    %v2423 = vpop.permute.xlu0 %2422
    %2424 = vrot.lane.b32.xlu0 %v2389, 17
    %v2425 = vpop.permute.xlu0 %2424
    %v2426 = vsel %vm55, %v2411, %v2419
    %v2427 = vsel %vm55, %v2413, %v2421
    %v2428 = vsel %vm55, %v2415, %v2423
    %v2429 = vsel %vm55, %v2417, %v2425
    %v2430 = vsel %vm55, %v2403, %v2411
    %v2431 = vsel %vm55, %v2405, %v2413
    %v2432 = vsel %vm55, %v2407, %v2415
    %v2433 = vsel %vm55, %v2409, %v2417
    %v2434 = vsel %vm55, %v2395, %v2403
    %v2435 = vsel %vm55, %v2397, %v2405
    %v2436 = vsel %vm55, %v2399, %v2407
    %v2437 = vsel %vm55, %v2401, %v2409
    %v2438 = vsel %vm55, %v2419, %v2395
    %v2439 = vsel %vm55, %v2421, %v2397
    %v2440 = vsel %vm55, %v2423, %v2399
    %v2441 = vsel %vm55, %v2425, %v2401
    %v2442 = vmul.f32 %v2438, %v65
    %v2443 = vmul.f32 %v2434, %v69
    %v2444 = vmul.f32 %v2430, %v73
    %v2445 = vmul.f32 %v2426, %v77
    %v2446 = vmul.f32 %v2439, %v65
    %v2447 = vmul.f32 %v2435, %v69
    %v2448 = vmul.f32 %v2431, %v73
    %v2449 = vmul.f32 %v2427, %v77
    %v2450 = vmul.f32 %v2440, %v65
    %v2451 = vmul.f32 %v2436, %v69
    %v2452 = vmul.f32 %v2432, %v73
    %v2453 = vmul.f32 %v2428, %v77
    %v2454 = vmul.f32 %v2441, %v65
    %v2455 = vmul.f32 %v2437, %v69
    %v2456 = vmul.f32 %v2433, %v73
    %v2457 = vmul.f32 %v2429, %v77
    %s2458 = scalar_lea.vmem %s4, 32
    %v2459 = vld [vmem:[%s2458] sm:$0xff]
    %v2460 = vld [vmem:[%s2458 + $0x8] sm:$0xff]
    %v2461 = vld [vmem:[%s2458 + $0x10] sm:$0xff]
    %v2462 = vld [vmem:[%s2458 + $0x18] sm:$0xff]
    %2463 = vrot.lane.b32.xlu0 %v2374, 16
    %v2464 = vpop.permute.xlu0 %2463
    %2465 = vrot.lane.b32.xlu0 %v2378, 16
    %v2466 = vpop.permute.xlu0 %2465
    %2467 = vrot.lane.b32.xlu0 %v2382, 16
    %v2468 = vpop.permute.xlu0 %2467
    %2469 = vrot.lane.b32.xlu0 %v2386, 16
    %v2470 = vpop.permute.xlu0 %2469
    %2471 = vrot.lane.b32.xlu0 %v2375, 16
    %v2472 = vpop.permute.xlu0 %2471
    %2473 = vrot.lane.b32.xlu0 %v2379, 16
    %v2474 = vpop.permute.xlu0 %2473
    %2475 = vrot.lane.b32.xlu0 %v2383, 16
    %v2476 = vpop.permute.xlu0 %2475
    %2477 = vrot.lane.b32.xlu0 %v2387, 16
    %v2478 = vpop.permute.xlu0 %2477
    %2479 = vrot.lane.b32.xlu0 %v2376, 16
    %v2480 = vpop.permute.xlu0 %2479
    %2481 = vrot.lane.b32.xlu0 %v2380, 16
    %v2482 = vpop.permute.xlu0 %2481
    %2483 = vrot.lane.b32.xlu0 %v2384, 16
    %v2484 = vpop.permute.xlu0 %2483
    %2485 = vrot.lane.b32.xlu0 %v2388, 16
    %v2486 = vpop.permute.xlu0 %2485
    %2487 = vrot.lane.b32.xlu0 %v2377, 16
    %v2488 = vpop.permute.xlu0 %2487
    %2489 = vrot.lane.b32.xlu0 %v2381, 16
    %v2490 = vpop.permute.xlu0 %2489
    %2491 = vrot.lane.b32.xlu0 %v2385, 16
    %v2492 = vpop.permute.xlu0 %2491
    %2493 = vrot.lane.b32.xlu0 %v2389, 16
    %v2494 = vpop.permute.xlu0 %2493
    %v2495 = vsel %vm99, %v2480, %v2488
    %v2496 = vsel %vm99, %v2482, %v2490
    %v2497 = vsel %vm99, %v2484, %v2492
    %v2498 = vsel %vm99, %v2486, %v2494
    %v2499 = vsel %vm99, %v2472, %v2480
    %v2500 = vsel %vm99, %v2474, %v2482
    %v2501 = vsel %vm99, %v2476, %v2484
    %v2502 = vsel %vm99, %v2478, %v2486
    %v2503 = vsel %vm99, %v2464, %v2472
    %v2504 = vsel %vm99, %v2466, %v2474
    %v2505 = vsel %vm99, %v2468, %v2476
    %v2506 = vsel %vm99, %v2470, %v2478
    %v2507 = vsel %vm99, %v2488, %v2464
    %v2508 = vsel %vm99, %v2490, %v2466
    %v2509 = vsel %vm99, %v2492, %v2468
    %v2510 = vsel %vm99, %v2494, %v2470
    %v2511 = vmul.f32 %v2507, %v110
    %v2512 = vmul.f32 %v2503, %v114
    %v2513 = vmul.f32 %v2499, %v118
    %v2514 = vmul.f32 %v2495, %v122
    %v2515 = vmul.f32 %v2508, %v110
    %v2516 = vmul.f32 %v2504, %v114
    %v2517 = vmul.f32 %v2500, %v118
    %v2518 = vmul.f32 %v2496, %v122
    %v2519 = vmul.f32 %v2509, %v110
    %v2520 = vmul.f32 %v2505, %v114
    %v2521 = vmul.f32 %v2501, %v118
    %v2522 = vmul.f32 %v2497, %v122
    %v2523 = vmul.f32 %v2510, %v110
    %v2524 = vmul.f32 %v2506, %v114
    %v2525 = vmul.f32 %v2502, %v118
    %v2526 = vmul.f32 %v2498, %v122
    %vm2527 = vcmask 261120
    %v2529 = vsel %vm2527, %v2459, 0
    %v2532 = vsel %vm2527, %v2460, 0
    %v2535 = vsel %vm2527, %v2461, 0
    %v2538 = vsel %vm2527, %v2462, 0
    %2540 = vmatprep.subr.mxu0 %v2512
    %2541 = vmatpush1.msra.mxu0 %v2511
    %2542 = vmatprep.subr.mxu0 %v2516
    %2543 = vmatpush1.msra.mxu0 %v2515
    %2544 = vmatprep.subr.mxu0 %v2520
    %2545 = vmatpush1.msra.mxu0 %v2519
    %2546 = vmatprep.subr.mxu0 %v2524
    %2547 = vmatpush1.msra.mxu0 %v2523
    %2548 = vmatprep.subr.mxu0 0.0
    %2549 = vmatpush1.msra.mxu0 0.0
    %2550 = vmatprep.subr.mxu0 0.0
    %2551 = vmatpush1.msra.mxu0 0.0
    %2552 = vmatprep.subr.mxu0 0.0
    %2553 = vmatpush1.msra.mxu0 0.0
    %2554 = vmatprep.subr.mxu0 0.0
    %2555 = vmatpush1.msra.mxu0 0.0
    %2556 = vmatprep.subr.mxu0 0.0
    %2557 = vmatpush1.msra.mxu0 0.0
    %2558 = vmatprep.subr.mxu0 0.0
    %2559 = vmatpush1.msra.mxu0 0.0
    %2560 = vmatprep.subr.mxu0 0.0
    %2561 = vmatpush1.msra.mxu0 0.0
    %2562 = vmatprep.subr.mxu0 0.0
    %2563 = vmatpush1.msra.mxu0 0.0
    %2564 = vmatprep.subr.mxu0 0.0
    %2565 = vmatpush1.msra.mxu0 0.0
    %2566 = vmatprep.subr.mxu0 0.0
    %2567 = vmatpush1.msra.mxu0 0.0
    %2568 = vmatprep.subr.mxu0 0.0
    %2569 = vmatpush1.msra.mxu0 0.0
    %2570 = vmatprep.subr.mxu0 0.0
    %2571 = vmatpush1.msra.mxu0 0.0
    %2572 = vmatprep.subr.mxu0 0.0
    %2573 = vmatpush1.msra.mxu0 0.0
    %2574 = vmatprep.subr.mxu0 0.0
    %2575 = vmatpush1.msra.mxu0 0.0
    %2576 = vmatprep.subr.mxu0 0.0
    %2577 = vmatpush1.msra.mxu0 0.0
    %2578 = vmatprep.subr.mxu0 0.0
    %2579 = vmatpush1.msra.mxu0 0.0
    %2580 = vmatprep.subr.mxu0 0.0
    %2581 = vmatpush1.msra.mxu0 0.0
    %2582 = vmatprep.subr.mxu0 0.0
    %2583 = vmatpush1.msra.mxu0 0.0
    %2584 = vmatprep.subr.mxu0 0.0
    %2585 = vmatpush1.msra.mxu0 0.0
    %2586 = vmatprep.subr.mxu0 0.0
    %2587 = vmatpush1.msra.mxu0 0.0
    %2588 = vmatprep.subr.mxu0 0.0
    %2589 = vmatpush1.msra.mxu0 0.0
    %2590 = vmatprep.subr.mxu0 0.0
    %2591 = vmatpush1.msra.mxu0 0.0
    %2592 = vmatprep.subr.mxu0 0.0
    %2593 = vmatpush1.msra.mxu0 0.0
    %2594 = vmatprep.subr.mxu0 0.0
    %2595 = vmatpush1.msra.mxu0 0.0
    %2596 = vmatprep.subr.mxu0 0.0
    %2597 = vmatpush1.msra.mxu0 0.0
    %2598 = vmatprep.subr.mxu0 0.0
    %2599 = vmatpush1.msra.mxu0 0.0
    %2600 = vmatprep.subr.mxu0 0.0
    %2601 = vmatpush1.msra.mxu0 0.0
    %2602 = vmatprep.subr.mxu0 0.0
    %2603 = vmatpush1.msra.mxu0 0.0
    %2604 = vmatprep.mubr.f32.mxu0 0.0
    %2605 = vmatmul.mubr.f32.gmra.mrb[0].mxu0 %v2529
    %v2606 = vpop.f32.mrb[0].mxu0
    %v2607 = vadd.f32 0.0, %v2606
    %v2608 = vpop.f32.mrb[0].mxu0
    %v2609 = vadd.f32 0.0, %v2608
    %2610 = vmatprep.mubr.f32.mxu0 0.0
    %2611 = vmatmul.mubr.f32.gmra.mrb[0].mxu0 %v2532
    %v2612 = vpop.f32.mrb[0].mxu0
    %v2613 = vadd.f32 0.0, %v2612
    %v2614 = vpop.f32.mrb[0].mxu0
    %v2615 = vadd.f32 0.0, %v2614
    %2616 = vmatprep.mubr.f32.mxu0 0.0
    %2617 = vmatmul.mubr.f32.gmra.mrb[0].mxu0 %v2535
    %v2618 = vpop.f32.mrb[0].mxu0
    %v2619 = vadd.f32 0.0, %v2618
    %v2620 = vpop.f32.mrb[0].mxu0
    %v2621 = vadd.f32 0.0, %v2620
    %2622 = vmatprep.mubr.f32.mxu0 0.0
    %2623 = vmatmul.mubr.f32.gmra.mrb[0].mxu0 %v2538
    %v2624 = vpop.f32.mrb[0].mxu0
    %v2625 = vadd.f32 0.0, %v2624
    %v2626 = vpop.f32.mrb[0].mxu0
    %v2627 = vadd.f32 0.0, %v2626
    %2628 = vdwg.mxu0
    %2629 = vmatprep.subr.mxu0 %v2514
    %2630 = vmatpush1.msra.mxu0 %v2513
    %2631 = vmatprep.subr.mxu0 %v2518
    %2632 = vmatpush1.msra.mxu0 %v2517
    %2633 = vmatprep.subr.mxu0 %v2522
    %2634 = vmatpush1.msra.mxu0 %v2521
    %2635 = vmatprep.subr.mxu0 %v2526
    %2636 = vmatpush1.msra.mxu0 %v2525
    %2637 = vmatprep.subr.mxu0 0.0
    %2638 = vmatpush1.msra.mxu0 0.0
    %2639 = vmatprep.subr.mxu0 0.0
    %2640 = vmatpush1.msra.mxu0 0.0
    %2641 = vmatprep.subr.mxu0 0.0
    %2642 = vmatpush1.msra.mxu0 0.0
    %2643 = vmatprep.subr.mxu0 0.0
    %2644 = vmatpush1.msra.mxu0 0.0
    %2645 = vmatprep.subr.mxu0 0.0
    %2646 = vmatpush1.msra.mxu0 0.0
    %2647 = vmatprep.subr.mxu0 0.0
    %2648 = vmatpush1.msra.mxu0 0.0
    %2649 = vmatprep.subr.mxu0 0.0
    %2650 = vmatpush1.msra.mxu0 0.0
    %2651 = vmatprep.subr.mxu0 0.0
    %2652 = vmatpush1.msra.mxu0 0.0
    %2653 = vmatprep.subr.mxu0 0.0
    %2654 = vmatpush1.msra.mxu0 0.0
    %2655 = vmatprep.subr.mxu0 0.0
    %2656 = vmatpush1.msra.mxu0 0.0
    %2657 = vmatprep.subr.mxu0 0.0
    %2658 = vmatpush1.msra.mxu0 0.0
    %2659 = vmatprep.subr.mxu0 0.0
    %2660 = vmatpush1.msra.mxu0 0.0
    %2661 = vmatprep.subr.mxu0 0.0
    %2662 = vmatpush1.msra.mxu0 0.0
    %2663 = vmatprep.subr.mxu0 0.0
    %2664 = vmatpush1.msra.mxu0 0.0
    %2665 = vmatprep.subr.mxu0 0.0
    %2666 = vmatpush1.msra.mxu0 0.0
    %2667 = vmatprep.subr.mxu0 0.0
    %2668 = vmatpush1.msra.mxu0 0.0
    %2669 = vmatprep.subr.mxu0 0.0
    %2670 = vmatpush1.msra.mxu0 0.0
    %2671 = vmatprep.subr.mxu0 0.0
    %2672 = vmatpush1.msra.mxu0 0.0
    %2673 = vmatprep.subr.mxu0 0.0
    %2674 = vmatpush1.msra.mxu0 0.0
    %2675 = vmatprep.subr.mxu0 0.0
    %2676 = vmatpush1.msra.mxu0 0.0
    %2677 = vmatprep.subr.mxu0 0.0
    %2678 = vmatpush1.msra.mxu0 0.0
    %2679 = vmatprep.subr.mxu0 0.0
    %2680 = vmatpush1.msra.mxu0 0.0
    %2681 = vmatprep.subr.mxu0 0.0
    %2682 = vmatpush1.msra.mxu0 0.0
    %2683 = vmatprep.subr.mxu0 0.0
    %2684 = vmatpush1.msra.mxu0 0.0
    %2685 = vmatprep.subr.mxu0 0.0
    %2686 = vmatpush1.msra.mxu0 0.0
    %2687 = vmatprep.subr.mxu0 0.0
    %2688 = vmatpush1.msra.mxu0 0.0
    %2689 = vmatprep.subr.mxu0 0.0
    %2690 = vmatpush1.msra.mxu0 0.0
    %2691 = vmatprep.subr.mxu0 0.0
    %2692 = vmatpush1.msra.mxu0 0.0
    %2693 = vmatprep.mubr.f32.mxu0 0.0
    %2694 = vmatmul.mubr.f32.gmra.mrb[0].mxu0 %v2529
    %v2695 = vpop.f32.mrb[0].mxu0
    %v2696 = vadd.f32 0.0, %v2695
    %v2697 = vpop.f32.mrb[0].mxu0
    %v2698 = vadd.f32 0.0, %v2697
    %2699 = vmatprep.mubr.f32.mxu0 0.0
    %2700 = vmatmul.mubr.f32.gmra.mrb[0].mxu0 %v2532
    %v2701 = vpop.f32.mrb[0].mxu0
    %v2702 = vadd.f32 0.0, %v2701
    %v2703 = vpop.f32.mrb[0].mxu0
    %v2704 = vadd.f32 0.0, %v2703
    %2705 = vmatprep.mubr.f32.mxu0 0.0
    %2706 = vmatmul.mubr.f32.gmra.mrb[0].mxu0 %v2535
    %v2707 = vpop.f32.mrb[0].mxu0
    %v2708 = vadd.f32 0.0, %v2707
    %v2709 = vpop.f32.mrb[0].mxu0
    %v2710 = vadd.f32 0.0, %v2709
    %2711 = vmatprep.mubr.f32.mxu0 0.0
    %2712 = vmatmul.mubr.f32.gmra.mrb[0].mxu0 %v2538
    %v2713 = vpop.f32.mrb[0].mxu0
    %v2714 = vadd.f32 0.0, %v2713
    %v2715 = vpop.f32.mrb[0].mxu0
    %v2716 = vadd.f32 0.0, %v2715
    %2717 = vdwg.mxu0
    %v2719 = vsel %vm2527, %v2390, 0
    %v2722 = vsel %vm2527, %v2391, 0
    %v2725 = vsel %vm2527, %v2392, 0
    %v2728 = vsel %vm2527, %v2393, 0
    %2730 = vmatprep.subr.mxu0 %v2443
    %2731 = vmatpush1.msra.mxu0 %v2442
    %2732 = vmatprep.subr.mxu0 %v2447
    %2733 = vmatpush1.msra.mxu0 %v2446
    %2734 = vmatprep.subr.mxu0 %v2451
    %2735 = vmatpush1.msra.mxu0 %v2450
    %2736 = vmatprep.subr.mxu0 %v2455
    %2737 = vmatpush1.msra.mxu0 %v2454
    %2738 = vmatprep.subr.mxu0 0.0
    %2739 = vmatpush1.msra.mxu0 0.0
    %2740 = vmatprep.subr.mxu0 0.0
    %2741 = vmatpush1.msra.mxu0 0.0
    %2742 = vmatprep.subr.mxu0 0.0
    %2743 = vmatpush1.msra.mxu0 0.0
    %2744 = vmatprep.subr.mxu0 0.0
    %2745 = vmatpush1.msra.mxu0 0.0
    %2746 = vmatprep.subr.mxu0 0.0
    %2747 = vmatpush1.msra.mxu0 0.0
    %2748 = vmatprep.subr.mxu0 0.0
    %2749 = vmatpush1.msra.mxu0 0.0
    %2750 = vmatprep.subr.mxu0 0.0
    %2751 = vmatpush1.msra.mxu0 0.0
    %2752 = vmatprep.subr.mxu0 0.0
    %2753 = vmatpush1.msra.mxu0 0.0
    %2754 = vmatprep.subr.mxu0 0.0
    %2755 = vmatpush1.msra.mxu0 0.0
    %2756 = vmatprep.subr.mxu0 0.0
    %2757 = vmatpush1.msra.mxu0 0.0
    %2758 = vmatprep.subr.mxu0 0.0
    %2759 = vmatpush1.msra.mxu0 0.0
    %2760 = vmatprep.subr.mxu0 0.0
    %2761 = vmatpush1.msra.mxu0 0.0
    %2762 = vmatprep.subr.mxu0 0.0
    %2763 = vmatpush1.msra.mxu0 0.0
    %2764 = vmatprep.subr.mxu0 0.0
    %2765 = vmatpush1.msra.mxu0 0.0
    %2766 = vmatprep.subr.mxu0 0.0
    %2767 = vmatpush1.msra.mxu0 0.0
    %2768 = vmatprep.subr.mxu0 0.0
    %2769 = vmatpush1.msra.mxu0 0.0
    %2770 = vmatprep.subr.mxu0 0.0
    %2771 = vmatpush1.msra.mxu0 0.0
    %2772 = vmatprep.subr.mxu0 0.0
    %2773 = vmatpush1.msra.mxu0 0.0
    %2774 = vmatprep.subr.mxu0 0.0
    %2775 = vmatpush1.msra.mxu0 0.0
    %2776 = vmatprep.subr.mxu0 0.0
    %2777 = vmatpush1.msra.mxu0 0.0
    %2778 = vmatprep.subr.mxu0 0.0
    %2779 = vmatpush1.msra.mxu0 0.0
    %2780 = vmatprep.subr.mxu0 0.0
    %2781 = vmatpush1.msra.mxu0 0.0
    %2782 = vmatprep.subr.mxu0 0.0
    %2783 = vmatpush1.msra.mxu0 0.0
    %2784 = vmatprep.subr.mxu0 0.0
    %2785 = vmatpush1.msra.mxu0 0.0
    %2786 = vmatprep.subr.mxu0 0.0
    %2787 = vmatpush1.msra.mxu0 0.0
    %2788 = vmatprep.subr.mxu0 0.0
    %2789 = vmatpush1.msra.mxu0 0.0
    %2790 = vmatprep.subr.mxu0 0.0
    %2791 = vmatpush1.msra.mxu0 0.0
    %2792 = vmatprep.subr.mxu0 0.0
    %2793 = vmatpush1.msra.mxu0 0.0
    %2794 = vmatprep.mubr.f32.mxu0 0.0
    %2795 = vmatmul.mubr.f32.gmra.mrb[0].mxu0 %v2719
    %v2796 = vpop.f32.mrb[0].mxu0
    %v2797 = vadd.f32 %v2607, %v2796
    %v2798 = vpop.f32.mrb[0].mxu0
    %v2799 = vadd.f32 %v2609, %v2798
    %2800 = vmatprep.mubr.f32.mxu0 0.0
    %2801 = vmatmul.mubr.f32.gmra.mrb[0].mxu0 %v2722
    %v2802 = vpop.f32.mrb[0].mxu0
    %v2803 = vadd.f32 %v2613, %v2802
    %v2804 = vpop.f32.mrb[0].mxu0
    %v2805 = vadd.f32 %v2615, %v2804
    %2806 = vmatprep.mubr.f32.mxu0 0.0
    %2807 = vmatmul.mubr.f32.gmra.mrb[0].mxu0 %v2725
    %v2808 = vpop.f32.mrb[0].mxu0
    %v2809 = vadd.f32 %v2619, %v2808
    %v2810 = vpop.f32.mrb[0].mxu0
    %v2811 = vadd.f32 %v2621, %v2810
    %2812 = vmatprep.mubr.f32.mxu0 0.0
    %2813 = vmatmul.mubr.f32.gmra.mrb[0].mxu0 %v2728
    %v2814 = vpop.f32.mrb[0].mxu0
    %v2815 = vadd.f32 %v2625, %v2814
    %v2816 = vpop.f32.mrb[0].mxu0
    %v2817 = vadd.f32 %v2627, %v2816
    %2818 = vdwg.mxu0
    %2819 = vmatprep.subr.mxu0 %v2445
    %2820 = vmatpush1.msra.mxu0 %v2444
    %2821 = vmatprep.subr.mxu0 %v2449
    %2822 = vmatpush1.msra.mxu0 %v2448
    %2823 = vmatprep.subr.mxu0 %v2453
    %2824 = vmatpush1.msra.mxu0 %v2452
    %2825 = vmatprep.subr.mxu0 %v2457
    %2826 = vmatpush1.msra.mxu0 %v2456
    %2827 = vmatprep.subr.mxu0 0.0
    %2828 = vmatpush1.msra.mxu0 0.0
    %2829 = vmatprep.subr.mxu0 0.0
    %2830 = vmatpush1.msra.mxu0 0.0
    %2831 = vmatprep.subr.mxu0 0.0
    %2832 = vmatpush1.msra.mxu0 0.0
    %2833 = vmatprep.subr.mxu0 0.0
    %2834 = vmatpush1.msra.mxu0 0.0
    %2835 = vmatprep.subr.mxu0 0.0
    %2836 = vmatpush1.msra.mxu0 0.0
    %2837 = vmatprep.subr.mxu0 0.0
    %2838 = vmatpush1.msra.mxu0 0.0
    %2839 = vmatprep.subr.mxu0 0.0
    %2840 = vmatpush1.msra.mxu0 0.0
    %2841 = vmatprep.subr.mxu0 0.0
    %2842 = vmatpush1.msra.mxu0 0.0
    %2843 = vmatprep.subr.mxu0 0.0
    %2844 = vmatpush1.msra.mxu0 0.0
    %2845 = vmatprep.subr.mxu0 0.0
    %2846 = vmatpush1.msra.mxu0 0.0
    %2847 = vmatprep.subr.mxu0 0.0
    %2848 = vmatpush1.msra.mxu0 0.0
    %2849 = vmatprep.subr.mxu0 0.0
    %2850 = vmatpush1.msra.mxu0 0.0
    %2851 = vmatprep.subr.mxu0 0.0
    %2852 = vmatpush1.msra.mxu0 0.0
    %2853 = vmatprep.subr.mxu0 0.0
    %2854 = vmatpush1.msra.mxu0 0.0
    %2855 = vmatprep.subr.mxu0 0.0
    %2856 = vmatpush1.msra.mxu0 0.0
    %2857 = vmatprep.subr.mxu0 0.0
    %2858 = vmatpush1.msra.mxu0 0.0
    %2859 = vmatprep.subr.mxu0 0.0
    %2860 = vmatpush1.msra.mxu0 0.0
    %2861 = vmatprep.subr.mxu0 0.0
    %2862 = vmatpush1.msra.mxu0 0.0
    %2863 = vmatprep.subr.mxu0 0.0
    %2864 = vmatpush1.msra.mxu0 0.0
    %2865 = vmatprep.subr.mxu0 0.0
    %2866 = vmatpush1.msra.mxu0 0.0
    %2867 = vmatprep.subr.mxu0 0.0
    %2868 = vmatpush1.msra.mxu0 0.0
    %2869 = vmatprep.subr.mxu0 0.0
    %2870 = vmatpush1.msra.mxu0 0.0
    %2871 = vmatprep.subr.mxu0 0.0
    %2872 = vmatpush1.msra.mxu0 0.0
    %2873 = vmatprep.subr.mxu0 0.0
    %2874 = vmatpush1.msra.mxu0 0.0
    %2875 = vmatprep.subr.mxu0 0.0
    %2876 = vmatpush1.msra.mxu0 0.0
    %2877 = vmatprep.subr.mxu0 0.0
    %2878 = vmatpush1.msra.mxu0 0.0
    %2879 = vmatprep.subr.mxu0 0.0
    %2880 = vmatpush1.msra.mxu0 0.0
    %2881 = vmatprep.subr.mxu0 0.0
    %2882 = vmatpush1.msra.mxu0 0.0
    %2883 = vmatprep.mubr.f32.mxu0 0.0
    %2884 = vmatmul.mubr.f32.gmra.mrb[0].mxu0 %v2719
    %v2885 = vpop.f32.mrb[0].mxu0
    %v2886 = vadd.f32 %v2696, %v2885
    %v2887 = vpop.f32.mrb[0].mxu0
    %v2888 = vadd.f32 %v2698, %v2887
    %2889 = vmatprep.mubr.f32.mxu0 0.0
    %2890 = vmatmul.mubr.f32.gmra.mrb[0].mxu0 %v2722
    %v2891 = vpop.f32.mrb[0].mxu0
    %v2892 = vadd.f32 %v2702, %v2891
    %v2893 = vpop.f32.mrb[0].mxu0
    %v2894 = vadd.f32 %v2704, %v2893
    %2895 = vmatprep.mubr.f32.mxu0 0.0
    %2896 = vmatmul.mubr.f32.gmra.mrb[0].mxu0 %v2725
    %v2897 = vpop.f32.mrb[0].mxu0
    %v2898 = vadd.f32 %v2708, %v2897
    %v2899 = vpop.f32.mrb[0].mxu0
    %v2900 = vadd.f32 %v2710, %v2899
    %2901 = vmatprep.mubr.f32.mxu0 0.0
    %2902 = vmatmul.mubr.f32.gmra.mrb[0].mxu0 %v2728
    %v2903 = vpop.f32.mrb[0].mxu0
    %v2904 = vadd.f32 %v2714, %v2903
    %v2905 = vpop.f32.mrb[0].mxu0
    %v2906 = vadd.f32 %v2716, %v2905
    %2907 = vdwg.mxu0
    %s2908 = scalar_lea.vmem %s4, 64
    %v2909 = vld [vmem:[%s2908] sm:$0xff]
    %v2910 = vld [vmem:[%s2908 + $0x8] sm:$0xff]
    %v2911 = vld [vmem:[%s2908 + $0x10] sm:$0xff]
    %v2912 = vld [vmem:[%s2908 + $0x18] sm:$0xff]
    %2913 = vrot.lane.b32.xlu0 %v2374, 15
    %v2914 = vpop.permute.xlu0 %2913
    %2915 = vrot.lane.b32.xlu0 %v2378, 15
    %v2916 = vpop.permute.xlu0 %2915
    %2917 = vrot.lane.b32.xlu0 %v2382, 15
    %v2918 = vpop.permute.xlu0 %2917
    %2919 = vrot.lane.b32.xlu0 %v2386, 15
    %v2920 = vpop.permute.xlu0 %2919
    %2921 = vrot.lane.b32.xlu0 %v2375, 15
    %v2922 = vpop.permute.xlu0 %2921
    %2923 = vrot.lane.b32.xlu0 %v2379, 15
    %v2924 = vpop.permute.xlu0 %2923
    %2925 = vrot.lane.b32.xlu0 %v2383, 15
    %v2926 = vpop.permute.xlu0 %2925
    %2927 = vrot.lane.b32.xlu0 %v2387, 15
    %v2928 = vpop.permute.xlu0 %2927
    %2929 = vrot.lane.b32.xlu0 %v2376, 15
    %v2930 = vpop.permute.xlu0 %2929
    %2931 = vrot.lane.b32.xlu0 %v2380, 15
    %v2932 = vpop.permute.xlu0 %2931
    %2933 = vrot.lane.b32.xlu0 %v2384, 15
    %v2934 = vpop.permute.xlu0 %2933
    %2935 = vrot.lane.b32.xlu0 %v2388, 15
    %v2936 = vpop.permute.xlu0 %2935
    %2937 = vrot.lane.b32.xlu0 %v2377, 15
    %v2938 = vpop.permute.xlu0 %2937
    %2939 = vrot.lane.b32.xlu0 %v2381, 15
    %v2940 = vpop.permute.xlu0 %2939
    %2941 = vrot.lane.b32.xlu0 %v2385, 15
    %v2942 = vpop.permute.xlu0 %2941
    %2943 = vrot.lane.b32.xlu0 %v2389, 15
    %v2944 = vpop.permute.xlu0 %2943
    %v2945 = vsel %vm550, %v2930, %v2938
    %v2946 = vsel %vm550, %v2932, %v2940
    %v2947 = vsel %vm550, %v2934, %v2942
    %v2948 = vsel %vm550, %v2936, %v2944
    %v2949 = vsel %vm550, %v2922, %v2930
    %v2950 = vsel %vm550, %v2924, %v2932
    %v2951 = vsel %vm550, %v2926, %v2934
    %v2952 = vsel %vm550, %v2928, %v2936
    %v2953 = vsel %vm550, %v2914, %v2922
    %v2954 = vsel %vm550, %v2916, %v2924
    %v2955 = vsel %vm550, %v2918, %v2926
    %v2956 = vsel %vm550, %v2920, %v2928
    %v2957 = vsel %vm550, %v2938, %v2914
    %v2958 = vsel %vm550, %v2940, %v2916
    %v2959 = vsel %vm550, %v2942, %v2918
    %v2960 = vsel %vm550, %v2944, %v2920
    %v2961 = vmul.f32 %v2957, %v561
    %v2962 = vmul.f32 %v2953, %v565
    %v2963 = vmul.f32 %v2949, %v569
    %v2964 = vmul.f32 %v2945, %v573
    %v2965 = vmul.f32 %v2958, %v561
    %v2966 = vmul.f32 %v2954, %v565
    %v2967 = vmul.f32 %v2950, %v569
    %v2968 = vmul.f32 %v2946, %v573
    %v2969 = vmul.f32 %v2959, %v561
    %v2970 = vmul.f32 %v2955, %v565
    %v2971 = vmul.f32 %v2951, %v569
    %v2972 = vmul.f32 %v2947, %v573
    %v2973 = vmul.f32 %v2960, %v561
    %v2974 = vmul.f32 %v2956, %v565
    %v2975 = vmul.f32 %v2952, %v569
    %v2976 = vmul.f32 %v2948, %v573
    %v2978 = vsel %vm2527, %v2909, 0
    %v2981 = vsel %vm2527, %v2910, 0
    %v2984 = vsel %vm2527, %v2911, 0
    %v2987 = vsel %vm2527, %v2912, 0
    %2989 = vmatprep.subr.mxu0 %v2962
    %2990 = vmatpush1.msra.mxu0 %v2961
    %2991 = vmatprep.subr.mxu0 %v2966
    %2992 = vmatpush1.msra.mxu0 %v2965
    %2993 = vmatprep.subr.mxu0 %v2970
    %2994 = vmatpush1.msra.mxu0 %v2969
    %2995 = vmatprep.subr.mxu0 %v2974
    %2996 = vmatpush1.msra.mxu0 %v2973
    %2997 = vmatprep.subr.mxu0 0.0
    %2998 = vmatpush1.msra.mxu0 0.0
    %2999 = vmatprep.subr.mxu0 0.0
    %3000 = vmatpush1.msra.mxu0 0.0
    %3001 = vmatprep.subr.mxu0 0.0
    %3002 = vmatpush1.msra.mxu0 0.0
    %3003 = vmatprep.subr.mxu0 0.0
    %3004 = vmatpush1.msra.mxu0 0.0
    %3005 = vmatprep.subr.mxu0 0.0
    %3006 = vmatpush1.msra.mxu0 0.0
    %3007 = vmatprep.subr.mxu0 0.0
    %3008 = vmatpush1.msra.mxu0 0.0
    %3009 = vmatprep.subr.mxu0 0.0
    %3010 = vmatpush1.msra.mxu0 0.0
    %3011 = vmatprep.subr.mxu0 0.0
    %3012 = vmatpush1.msra.mxu0 0.0
    %3013 = vmatprep.subr.mxu0 0.0
    %3014 = vmatpush1.msra.mxu0 0.0
    %3015 = vmatprep.subr.mxu0 0.0
    %3016 = vmatpush1.msra.mxu0 0.0
    %3017 = vmatprep.subr.mxu0 0.0
    %3018 = vmatpush1.msra.mxu0 0.0
    %3019 = vmatprep.subr.mxu0 0.0
    %3020 = vmatpush1.msra.mxu0 0.0
    %3021 = vmatprep.subr.mxu0 0.0
    %3022 = vmatpush1.msra.mxu0 0.0
    %3023 = vmatprep.subr.mxu0 0.0
    %3024 = vmatpush1.msra.mxu0 0.0
    %3025 = vmatprep.subr.mxu0 0.0
    %3026 = vmatpush1.msra.mxu0 0.0
    %3027 = vmatprep.subr.mxu0 0.0
    %3028 = vmatpush1.msra.mxu0 0.0
    %3029 = vmatprep.subr.mxu0 0.0
    %3030 = vmatpush1.msra.mxu0 0.0
    %3031 = vmatprep.subr.mxu0 0.0
    %3032 = vmatpush1.msra.mxu0 0.0
    %3033 = vmatprep.subr.mxu0 0.0
    %3034 = vmatpush1.msra.mxu0 0.0
    %3035 = vmatprep.subr.mxu0 0.0
    %3036 = vmatpush1.msra.mxu0 0.0
    %3037 = vmatprep.subr.mxu0 0.0
    %3038 = vmatpush1.msra.mxu0 0.0
    %3039 = vmatprep.subr.mxu0 0.0
    %3040 = vmatpush1.msra.mxu0 0.0
    %3041 = vmatprep.subr.mxu0 0.0
    %3042 = vmatpush1.msra.mxu0 0.0
    %3043 = vmatprep.subr.mxu0 0.0
    %3044 = vmatpush1.msra.mxu0 0.0
    %3045 = vmatprep.subr.mxu0 0.0
    %3046 = vmatpush1.msra.mxu0 0.0
    %3047 = vmatprep.subr.mxu0 0.0
    %3048 = vmatpush1.msra.mxu0 0.0
    %3049 = vmatprep.subr.mxu0 0.0
    %3050 = vmatpush1.msra.mxu0 0.0
    %3051 = vmatprep.subr.mxu0 0.0
    %3052 = vmatpush1.msra.mxu0 0.0
    %3053 = vmatprep.mubr.f32.mxu0 0.0
    %3054 = vmatmul.mubr.f32.gmra.mrb[0].mxu0 %v2978
    %v3055 = vpop.f32.mrb[0].mxu0
    %v3056 = vadd.f32 0.0, %v3055
    %v3057 = vpop.f32.mrb[0].mxu0
    %v3058 = vadd.f32 0.0, %v3057
    %3059 = vmatprep.mubr.f32.mxu0 0.0
    %3060 = vmatmul.mubr.f32.gmra.mrb[0].mxu0 %v2981
    %v3061 = vpop.f32.mrb[0].mxu0
    %v3062 = vadd.f32 0.0, %v3061
    %v3063 = vpop.f32.mrb[0].mxu0
    %v3064 = vadd.f32 0.0, %v3063
    %3065 = vmatprep.mubr.f32.mxu0 0.0
    %3066 = vmatmul.mubr.f32.gmra.mrb[0].mxu0 %v2984
    %v3067 = vpop.f32.mrb[0].mxu0
    %v3068 = vadd.f32 0.0, %v3067
    %v3069 = vpop.f32.mrb[0].mxu0
    %v3070 = vadd.f32 0.0, %v3069
    %3071 = vmatprep.mubr.f32.mxu0 0.0
    %3072 = vmatmul.mubr.f32.gmra.mrb[0].mxu0 %v2987
    %v3073 = vpop.f32.mrb[0].mxu0
    %v3074 = vadd.f32 0.0, %v3073
    %v3075 = vpop.f32.mrb[0].mxu0
    %v3076 = vadd.f32 0.0, %v3075
    %3077 = vdwg.mxu0
    %3078 = vmatprep.subr.mxu0 %v2964
    %3079 = vmatpush1.msra.mxu0 %v2963
    %3080 = vmatprep.subr.mxu0 %v2968
    %3081 = vmatpush1.msra.mxu0 %v2967
    %3082 = vmatprep.subr.mxu0 %v2972
    %3083 = vmatpush1.msra.mxu0 %v2971
    %3084 = vmatprep.subr.mxu0 %v2976
    %3085 = vmatpush1.msra.mxu0 %v2975
    %3086 = vmatprep.subr.mxu0 0.0
    %3087 = vmatpush1.msra.mxu0 0.0
    %3088 = vmatprep.subr.mxu0 0.0
    %3089 = vmatpush1.msra.mxu0 0.0
    %3090 = vmatprep.subr.mxu0 0.0
    %3091 = vmatpush1.msra.mxu0 0.0
    %3092 = vmatprep.subr.mxu0 0.0
    %3093 = vmatpush1.msra.mxu0 0.0
    %3094 = vmatprep.subr.mxu0 0.0
    %3095 = vmatpush1.msra.mxu0 0.0
    %3096 = vmatprep.subr.mxu0 0.0
    %3097 = vmatpush1.msra.mxu0 0.0
    %3098 = vmatprep.subr.mxu0 0.0
    %3099 = vmatpush1.msra.mxu0 0.0
    %3100 = vmatprep.subr.mxu0 0.0
    %3101 = vmatpush1.msra.mxu0 0.0
    %3102 = vmatprep.subr.mxu0 0.0
    %3103 = vmatpush1.msra.mxu0 0.0
    %3104 = vmatprep.subr.mxu0 0.0
    %3105 = vmatpush1.msra.mxu0 0.0
    %3106 = vmatprep.subr.mxu0 0.0
    %3107 = vmatpush1.msra.mxu0 0.0
    %3108 = vmatprep.subr.mxu0 0.0
    %3109 = vmatpush1.msra.mxu0 0.0
    %3110 = vmatprep.subr.mxu0 0.0
    %3111 = vmatpush1.msra.mxu0 0.0
    %3112 = vmatprep.subr.mxu0 0.0
    %3113 = vmatpush1.msra.mxu0 0.0
    %3114 = vmatprep.subr.mxu0 0.0
    %3115 = vmatpush1.msra.mxu0 0.0
    %3116 = vmatprep.subr.mxu0 0.0
    %3117 = vmatpush1.msra.mxu0 0.0
    %3118 = vmatprep.subr.mxu0 0.0
    %3119 = vmatpush1.msra.mxu0 0.0
    %3120 = vmatprep.subr.mxu0 0.0
    %3121 = vmatpush1.msra.mxu0 0.0
    %3122 = vmatprep.subr.mxu0 0.0
    %3123 = vmatpush1.msra.mxu0 0.0
    %3124 = vmatprep.subr.mxu0 0.0
    %3125 = vmatpush1.msra.mxu0 0.0
    %3126 = vmatprep.subr.mxu0 0.0
    %3127 = vmatpush1.msra.mxu0 0.0
    %3128 = vmatprep.subr.mxu0 0.0
    %3129 = vmatpush1.msra.mxu0 0.0
    %3130 = vmatprep.subr.mxu0 0.0
    %3131 = vmatpush1.msra.mxu0 0.0
    %3132 = vmatprep.subr.mxu0 0.0
    %3133 = vmatpush1.msra.mxu0 0.0
    %3134 = vmatprep.subr.mxu0 0.0
    %3135 = vmatpush1.msra.mxu0 0.0
    %3136 = vmatprep.subr.mxu0 0.0
    %3137 = vmatpush1.msra.mxu0 0.0
    %3138 = vmatprep.subr.mxu0 0.0
    %3139 = vmatpush1.msra.mxu0 0.0
    %3140 = vmatprep.subr.mxu0 0.0
    %3141 = vmatpush1.msra.mxu0 0.0
    %3142 = vmatprep.mubr.f32.mxu0 0.0
    %3143 = vmatmul.mubr.f32.gmra.mrb[0].mxu0 %v2978
    %v3144 = vpop.f32.mrb[0].mxu0
    %v3145 = vadd.f32 0.0, %v3144
    %v3146 = vpop.f32.mrb[0].mxu0
    %v3147 = vadd.f32 0.0, %v3146
    %3148 = vmatprep.mubr.f32.mxu0 0.0
    %3149 = vmatmul.mubr.f32.gmra.mrb[0].mxu0 %v2981
    %v3150 = vpop.f32.mrb[0].mxu0
    %v3151 = vadd.f32 0.0, %v3150
    %v3152 = vpop.f32.mrb[0].mxu0
    %v3153 = vadd.f32 0.0, %v3152
    %3154 = vmatprep.mubr.f32.mxu0 0.0
    %3155 = vmatmul.mubr.f32.gmra.mrb[0].mxu0 %v2984
    %v3156 = vpop.f32.mrb[0].mxu0
    %v3157 = vadd.f32 0.0, %v3156
    %v3158 = vpop.f32.mrb[0].mxu0
    %v3159 = vadd.f32 0.0, %v3158
    %3160 = vmatprep.mubr.f32.mxu0 0.0
    %3161 = vmatmul.mubr.f32.gmra.mrb[0].mxu0 %v2987
    %v3162 = vpop.f32.mrb[0].mxu0
    %v3163 = vadd.f32 0.0, %v3162
    %v3164 = vpop.f32.mrb[0].mxu0
    %v3165 = vadd.f32 0.0, %v3164
    %3166 = vdwg.mxu0
    %v3167 = vadd.f32 %v2797, %v3056
    %v3168 = vadd.f32 %v2799, %v3058
    %v3169 = vadd.f32 %v2886, %v3145
    %v3170 = vadd.f32 %v2888, %v3147
    %v3171 = vadd.f32 %v2803, %v3062
    %v3172 = vadd.f32 %v2805, %v3064
    %v3173 = vadd.f32 %v2892, %v3151
    %v3174 = vadd.f32 %v2894, %v3153
    %v3175 = vadd.f32 %v2809, %v3068
    %v3176 = vadd.f32 %v2811, %v3070
    %v3177 = vadd.f32 %v2898, %v3157
    %v3178 = vadd.f32 %v2900, %v3159
    %v3179 = vadd.f32 %v2815, %v3074
    %v3180 = vadd.f32 %v2817, %v3076
    %v3181 = vadd.f32 %v2904, %v3163
    %v3182 = vadd.f32 %v2906, %v3165
    %s3183 = scalar_lea.vmem %s4, 96
    %v3184 = vld [vmem:[%s3183] sm:$0xff]
    %v3185 = vld [vmem:[%s3183 + $0x8] sm:$0xff]
    %v3186 = vld [vmem:[%s3183 + $0x10] sm:$0xff]
    %v3187 = vld [vmem:[%s3183 + $0x18] sm:$0xff]
    %3188 = vrot.lane.b32.xlu0 %v2374, 1
    %v3189 = vpop.permute.xlu0 %3188
    %3190 = vrot.lane.b32.xlu0 %v2378, 1
    %v3191 = vpop.permute.xlu0 %3190
    %3192 = vrot.lane.b32.xlu0 %v2382, 1
    %v3193 = vpop.permute.xlu0 %3192
    %3194 = vrot.lane.b32.xlu0 %v2386, 1
    %v3195 = vpop.permute.xlu0 %3194
    %3196 = vrot.lane.b32.xlu0 %v2375, 1
    %v3197 = vpop.permute.xlu0 %3196
    %3198 = vrot.lane.b32.xlu0 %v2379, 1
    %v3199 = vpop.permute.xlu0 %3198
    %3200 = vrot.lane.b32.xlu0 %v2383, 1
    %v3201 = vpop.permute.xlu0 %3200
    %3202 = vrot.lane.b32.xlu0 %v2387, 1
    %v3203 = vpop.permute.xlu0 %3202
    %3204 = vrot.lane.b32.xlu0 %v2376, 1
    %v3205 = vpop.permute.xlu0 %3204
    %3206 = vrot.lane.b32.xlu0 %v2380, 1
    %v3207 = vpop.permute.xlu0 %3206
    %3208 = vrot.lane.b32.xlu0 %v2384, 1
    %v3209 = vpop.permute.xlu0 %3208
    %3210 = vrot.lane.b32.xlu0 %v2388, 1
    %v3211 = vpop.permute.xlu0 %3210
    %3212 = vrot.lane.b32.xlu0 %v2377, 1
    %v3213 = vpop.permute.xlu0 %3212
    %3214 = vrot.lane.b32.xlu0 %v2381, 1
    %v3215 = vpop.permute.xlu0 %3214
    %3216 = vrot.lane.b32.xlu0 %v2385, 1
    %v3217 = vpop.permute.xlu0 %3216
    %3218 = vrot.lane.b32.xlu0 %v2389, 1
    %v3219 = vpop.permute.xlu0 %3218
    %v3220 = vsel %vm813, %v3205, %v3213
    %v3221 = vsel %vm813, %v3207, %v3215
    %v3222 = vsel %vm813, %v3209, %v3217
    %v3223 = vsel %vm813, %v3211, %v3219
    %v3224 = vsel %vm813, %v3197, %v3205
    %v3225 = vsel %vm813, %v3199, %v3207
    %v3226 = vsel %vm813, %v3201, %v3209
    %v3227 = vsel %vm813, %v3203, %v3211
    %v3228 = vsel %vm813, %v3189, %v3197
    %v3229 = vsel %vm813, %v3191, %v3199
    %v3230 = vsel %vm813, %v3193, %v3201
    %v3231 = vsel %vm813, %v3195, %v3203
    %v3232 = vsel %vm813, %v3213, %v3189
    %v3233 = vsel %vm813, %v3215, %v3191
    %v3234 = vsel %vm813, %v3217, %v3193
    %v3235 = vsel %vm813, %v3219, %v3195
    %v3236 = vmul.f32 %v3232, %v824
    %v3237 = vmul.f32 %v3228, %v828
    %v3238 = vmul.f32 %v3224, %v832
    %v3239 = vmul.f32 %v3220, %v836
    %v3240 = vmul.f32 %v3233, %v824
    %v3241 = vmul.f32 %v3229, %v828
    %v3242 = vmul.f32 %v3225, %v832
    %v3243 = vmul.f32 %v3221, %v836
    %v3244 = vmul.f32 %v3234, %v824
    %v3245 = vmul.f32 %v3230, %v828
    %v3246 = vmul.f32 %v3226, %v832
    %v3247 = vmul.f32 %v3222, %v836
    %v3248 = vmul.f32 %v3235, %v824
    %v3249 = vmul.f32 %v3231, %v828
    %v3250 = vmul.f32 %v3227, %v832
    %v3251 = vmul.f32 %v3223, %v836
    %v3253 = vsel %vm2527, %v3184, 0
    %v3256 = vsel %vm2527, %v3185, 0
    %v3259 = vsel %vm2527, %v3186, 0
    %v3262 = vsel %vm2527, %v3187, 0
    %3264 = vmatprep.subr.mxu0 %v3237
    %3265 = vmatpush1.msra.mxu0 %v3236
    %3266 = vmatprep.subr.mxu0 %v3241
    %3267 = vmatpush1.msra.mxu0 %v3240
    %3268 = vmatprep.subr.mxu0 %v3245
    %3269 = vmatpush1.msra.mxu0 %v3244
    %3270 = vmatprep.subr.mxu0 %v3249
    %3271 = vmatpush1.msra.mxu0 %v3248
    %3272 = vmatprep.subr.mxu0 0.0
    %3273 = vmatpush1.msra.mxu0 0.0
    %3274 = vmatprep.subr.mxu0 0.0
    %3275 = vmatpush1.msra.mxu0 0.0
    %3276 = vmatprep.subr.mxu0 0.0
    %3277 = vmatpush1.msra.mxu0 0.0
    %3278 = vmatprep.subr.mxu0 0.0
    %3279 = vmatpush1.msra.mxu0 0.0
    %3280 = vmatprep.subr.mxu0 0.0
    %3281 = vmatpush1.msra.mxu0 0.0
    %3282 = vmatprep.subr.mxu0 0.0
    %3283 = vmatpush1.msra.mxu0 0.0
    %3284 = vmatprep.subr.mxu0 0.0
    %3285 = vmatpush1.msra.mxu0 0.0
    %3286 = vmatprep.subr.mxu0 0.0
    %3287 = vmatpush1.msra.mxu0 0.0
    %3288 = vmatprep.subr.mxu0 0.0
    %3289 = vmatpush1.msra.mxu0 0.0
    %3290 = vmatprep.subr.mxu0 0.0
    %3291 = vmatpush1.msra.mxu0 0.0
    %3292 = vmatprep.subr.mxu0 0.0
    %3293 = vmatpush1.msra.mxu0 0.0
    %3294 = vmatprep.subr.mxu0 0.0
    %3295 = vmatpush1.msra.mxu0 0.0
    %3296 = vmatprep.subr.mxu0 0.0
    %3297 = vmatpush1.msra.mxu0 0.0
    %3298 = vmatprep.subr.mxu0 0.0
    %3299 = vmatpush1.msra.mxu0 0.0
    %3300 = vmatprep.subr.mxu0 0.0
    %3301 = vmatpush1.msra.mxu0 0.0
    %3302 = vmatprep.subr.mxu0 0.0
    %3303 = vmatpush1.msra.mxu0 0.0
    %3304 = vmatprep.subr.mxu0 0.0
    %3305 = vmatpush1.msra.mxu0 0.0
    %3306 = vmatprep.subr.mxu0 0.0
    %3307 = vmatpush1.msra.mxu0 0.0
    %3308 = vmatprep.subr.mxu0 0.0
    %3309 = vmatpush1.msra.mxu0 0.0
    %3310 = vmatprep.subr.mxu0 0.0
    %3311 = vmatpush1.msra.mxu0 0.0
    %3312 = vmatprep.subr.mxu0 0.0
    %3313 = vmatpush1.msra.mxu0 0.0
    %3314 = vmatprep.subr.mxu0 0.0
    %3315 = vmatpush1.msra.mxu0 0.0
    %3316 = vmatprep.subr.mxu0 0.0
    %3317 = vmatpush1.msra.mxu0 0.0
    %3318 = vmatprep.subr.mxu0 0.0
    %3319 = vmatpush1.msra.mxu0 0.0
    %3320 = vmatprep.subr.mxu0 0.0
    %3321 = vmatpush1.msra.mxu0 0.0
    %3322 = vmatprep.subr.mxu0 0.0
    %3323 = vmatpush1.msra.mxu0 0.0
    %3324 = vmatprep.subr.mxu0 0.0
    %3325 = vmatpush1.msra.mxu0 0.0
    %3326 = vmatprep.subr.mxu0 0.0
    %3327 = vmatpush1.msra.mxu0 0.0
    %3328 = vmatprep.mubr.f32.mxu0 0.0
    %3329 = vmatmul.mubr.f32.gmra.mrb[0].mxu0 %v3253
    %v3330 = vpop.f32.mrb[0].mxu0
    %v3331 = vadd.f32 0.0, %v3330
    %v3332 = vpop.f32.mrb[0].mxu0
    %v3333 = vadd.f32 0.0, %v3332
    %3334 = vmatprep.mubr.f32.mxu0 0.0
    %3335 = vmatmul.mubr.f32.gmra.mrb[0].mxu0 %v3256
    %v3336 = vpop.f32.mrb[0].mxu0
    %v3337 = vadd.f32 0.0, %v3336
    %v3338 = vpop.f32.mrb[0].mxu0
    %v3339 = vadd.f32 0.0, %v3338
    %3340 = vmatprep.mubr.f32.mxu0 0.0
    %3341 = vmatmul.mubr.f32.gmra.mrb[0].mxu0 %v3259
    %v3342 = vpop.f32.mrb[0].mxu0
    %v3343 = vadd.f32 0.0, %v3342
    %v3344 = vpop.f32.mrb[0].mxu0
    %v3345 = vadd.f32 0.0, %v3344
    %3346 = vmatprep.mubr.f32.mxu0 0.0
    %3347 = vmatmul.mubr.f32.gmra.mrb[0].mxu0 %v3262
    %v3348 = vpop.f32.mrb[0].mxu0
    %v3349 = vadd.f32 0.0, %v3348
    %v3350 = vpop.f32.mrb[0].mxu0
    %v3351 = vadd.f32 0.0, %v3350
    %3352 = vdwg.mxu0
    %3353 = vmatprep.subr.mxu0 %v3239
    %3354 = vmatpush1.msra.mxu0 %v3238
    %3355 = vmatprep.subr.mxu0 %v3243
    %3356 = vmatpush1.msra.mxu0 %v3242
    %3357 = vmatprep.subr.mxu0 %v3247
    %3358 = vmatpush1.msra.mxu0 %v3246
    %3359 = vmatprep.subr.mxu0 %v3251
    %3360 = vmatpush1.msra.mxu0 %v3250
    %3361 = vmatprep.subr.mxu0 0.0
    %3362 = vmatpush1.msra.mxu0 0.0
    %3363 = vmatprep.subr.mxu0 0.0
    %3364 = vmatpush1.msra.mxu0 0.0
    %3365 = vmatprep.subr.mxu0 0.0
    %3366 = vmatpush1.msra.mxu0 0.0
    %3367 = vmatprep.subr.mxu0 0.0
    %3368 = vmatpush1.msra.mxu0 0.0
    %3369 = vmatprep.subr.mxu0 0.0
    %3370 = vmatpush1.msra.mxu0 0.0
    %3371 = vmatprep.subr.mxu0 0.0
    %3372 = vmatpush1.msra.mxu0 0.0
    %3373 = vmatprep.subr.mxu0 0.0
    %3374 = vmatpush1.msra.mxu0 0.0
    %3375 = vmatprep.subr.mxu0 0.0
    %3376 = vmatpush1.msra.mxu0 0.0
    %3377 = vmatprep.subr.mxu0 0.0
    %3378 = vmatpush1.msra.mxu0 0.0
    %3379 = vmatprep.subr.mxu0 0.0
    %3380 = vmatpush1.msra.mxu0 0.0
    %3381 = vmatprep.subr.mxu0 0.0
    %3382 = vmatpush1.msra.mxu0 0.0
    %3383 = vmatprep.subr.mxu0 0.0
    %3384 = vmatpush1.msra.mxu0 0.0
    %3385 = vmatprep.subr.mxu0 0.0
    %3386 = vmatpush1.msra.mxu0 0.0
    %3387 = vmatprep.subr.mxu0 0.0
    %3388 = vmatpush1.msra.mxu0 0.0
    %3389 = vmatprep.subr.mxu0 0.0
    %3390 = vmatpush1.msra.mxu0 0.0
    %3391 = vmatprep.subr.mxu0 0.0
    %3392 = vmatpush1.msra.mxu0 0.0
    %3393 = vmatprep.subr.mxu0 0.0
    %3394 = vmatpush1.msra.mxu0 0.0
    %3395 = vmatprep.subr.mxu0 0.0
    %3396 = vmatpush1.msra.mxu0 0.0
    %3397 = vmatprep.subr.mxu0 0.0
    %3398 = vmatpush1.msra.mxu0 0.0
    %3399 = vmatprep.subr.mxu0 0.0
    %3400 = vmatpush1.msra.mxu0 0.0
    %3401 = vmatprep.subr.mxu0 0.0
    %3402 = vmatpush1.msra.mxu0 0.0
    %3403 = vmatprep.subr.mxu0 0.0
    %3404 = vmatpush1.msra.mxu0 0.0
    %3405 = vmatprep.subr.mxu0 0.0
    %3406 = vmatpush1.msra.mxu0 0.0
    %3407 = vmatprep.subr.mxu0 0.0
    %3408 = vmatpush1.msra.mxu0 0.0
    %3409 = vmatprep.subr.mxu0 0.0
    %3410 = vmatpush1.msra.mxu0 0.0
    %3411 = vmatprep.subr.mxu0 0.0
    %3412 = vmatpush1.msra.mxu0 0.0
    %3413 = vmatprep.subr.mxu0 0.0
    %3414 = vmatpush1.msra.mxu0 0.0
    %3415 = vmatprep.subr.mxu0 0.0
    %3416 = vmatpush1.msra.mxu0 0.0
    %3417 = vmatprep.mubr.f32.mxu0 0.0
    %3418 = vmatmul.mubr.f32.gmra.mrb[0].mxu0 %v3253
    %v3419 = vpop.f32.mrb[0].mxu0
    %v3420 = vadd.f32 0.0, %v3419
    %v3421 = vpop.f32.mrb[0].mxu0
    %v3422 = vadd.f32 0.0, %v3421
    %3423 = vmatprep.mubr.f32.mxu0 0.0
    %3424 = vmatmul.mubr.f32.gmra.mrb[0].mxu0 %v3256
    %v3425 = vpop.f32.mrb[0].mxu0
    %v3426 = vadd.f32 0.0, %v3425
    %v3427 = vpop.f32.mrb[0].mxu0
    %v3428 = vadd.f32 0.0, %v3427
    %3429 = vmatprep.mubr.f32.mxu0 0.0
    %3430 = vmatmul.mubr.f32.gmra.mrb[0].mxu0 %v3259
    %v3431 = vpop.f32.mrb[0].mxu0
    %v3432 = vadd.f32 0.0, %v3431
    %v3433 = vpop.f32.mrb[0].mxu0
    %v3434 = vadd.f32 0.0, %v3433
    %3435 = vmatprep.mubr.f32.mxu0 0.0
    %3436 = vmatmul.mubr.f32.gmra.mrb[0].mxu0 %v3262
    %v3437 = vpop.f32.mrb[0].mxu0
    %v3438 = vadd.f32 0.0, %v3437
    %v3439 = vpop.f32.mrb[0].mxu0
    %v3440 = vadd.f32 0.0, %v3439
    %3441 = vdwg.mxu0
    %v3442 = vadd.f32 %v3167, %v3331
    %v3443 = vadd.f32 %v3168, %v3333
    %v3444 = vadd.f32 %v3169, %v3420
    %v3445 = vadd.f32 %v3170, %v3422
    %v3446 = vadd.f32 %v3171, %v3337
    %v3447 = vadd.f32 %v3172, %v3339
    %v3448 = vadd.f32 %v3173, %v3426
    %v3449 = vadd.f32 %v3174, %v3428
    %v3450 = vadd.f32 %v3175, %v3343
    %v3451 = vadd.f32 %v3176, %v3345
    %v3452 = vadd.f32 %v3177, %v3432
    %v3453 = vadd.f32 %v3178, %v3434
    %v3454 = vadd.f32 %v3179, %v3349
    %v3455 = vadd.f32 %v3180, %v3351
    %v3456 = vadd.f32 %v3181, %v3438
    %v3457 = vadd.f32 %v3182, %v3440
    %s3458 = scalar_lea.vmem %s4, 128
    %v3459 = vld [vmem:[%s3458] sm:$0xff]
    %v3460 = vld [vmem:[%s3458 + $0x8] sm:$0xff]
    %v3461 = vld [vmem:[%s3458 + $0x10] sm:$0xff]
    %v3462 = vld [vmem:[%s3458 + $0x18] sm:$0xff]
    %v3464 = vsel %vm2527, %v3459, 0
    %v3467 = vsel %vm2527, %v3460, 0
    %v3470 = vsel %vm2527, %v3461, 0
    %v3473 = vsel %vm2527, %v3462, 0
    %3475 = vmatprep.subr.mxu0 %v2375
    %3476 = vmatpush1.msra.mxu0 %v2374
    %3477 = vmatprep.subr.mxu0 %v2379
    %3478 = vmatpush1.msra.mxu0 %v2378
    %3479 = vmatprep.subr.mxu0 %v2383
    %3480 = vmatpush1.msra.mxu0 %v2382
    %3481 = vmatprep.subr.mxu0 %v2387
    %3482 = vmatpush1.msra.mxu0 %v2386
    %3483 = vmatprep.subr.mxu0 0.0
    %3484 = vmatpush1.msra.mxu0 0.0
    %3485 = vmatprep.subr.mxu0 0.0
    %3486 = vmatpush1.msra.mxu0 0.0
    %3487 = vmatprep.subr.mxu0 0.0
    %3488 = vmatpush1.msra.mxu0 0.0
    %3489 = vmatprep.subr.mxu0 0.0
    %3490 = vmatpush1.msra.mxu0 0.0
    %3491 = vmatprep.subr.mxu0 0.0
    %3492 = vmatpush1.msra.mxu0 0.0
    %3493 = vmatprep.subr.mxu0 0.0
    %3494 = vmatpush1.msra.mxu0 0.0
    %3495 = vmatprep.subr.mxu0 0.0
    %3496 = vmatpush1.msra.mxu0 0.0
    %3497 = vmatprep.subr.mxu0 0.0
    %3498 = vmatpush1.msra.mxu0 0.0
    %3499 = vmatprep.subr.mxu0 0.0
    %3500 = vmatpush1.msra.mxu0 0.0
    %3501 = vmatprep.subr.mxu0 0.0
    %3502 = vmatpush1.msra.mxu0 0.0
    %3503 = vmatprep.subr.mxu0 0.0
    %3504 = vmatpush1.msra.mxu0 0.0
    %3505 = vmatprep.subr.mxu0 0.0
    %3506 = vmatpush1.msra.mxu0 0.0
    %3507 = vmatprep.subr.mxu0 0.0
    %3508 = vmatpush1.msra.mxu0 0.0
    %3509 = vmatprep.subr.mxu0 0.0
    %3510 = vmatpush1.msra.mxu0 0.0
    %3511 = vmatprep.subr.mxu0 0.0
    %3512 = vmatpush1.msra.mxu0 0.0
    %3513 = vmatprep.subr.mxu0 0.0
    %3514 = vmatpush1.msra.mxu0 0.0
    %3515 = vmatprep.subr.mxu0 0.0
    %3516 = vmatpush1.msra.mxu0 0.0
    %3517 = vmatprep.subr.mxu0 0.0
    %3518 = vmatpush1.msra.mxu0 0.0
    %3519 = vmatprep.subr.mxu0 0.0
    %3520 = vmatpush1.msra.mxu0 0.0
    %3521 = vmatprep.subr.mxu0 0.0
    %3522 = vmatpush1.msra.mxu0 0.0
    %3523 = vmatprep.subr.mxu0 0.0
    %3524 = vmatpush1.msra.mxu0 0.0
    %3525 = vmatprep.subr.mxu0 0.0
    %3526 = vmatpush1.msra.mxu0 0.0
    %3527 = vmatprep.subr.mxu0 0.0
    %3528 = vmatpush1.msra.mxu0 0.0
    %3529 = vmatprep.subr.mxu0 0.0
    %3530 = vmatpush1.msra.mxu0 0.0
    %3531 = vmatprep.subr.mxu0 0.0
    %3532 = vmatpush1.msra.mxu0 0.0
    %3533 = vmatprep.subr.mxu0 0.0
    %3534 = vmatpush1.msra.mxu0 0.0
    %3535 = vmatprep.subr.mxu0 0.0
    %3536 = vmatpush1.msra.mxu0 0.0
    %3537 = vmatprep.subr.mxu0 0.0
    %3538 = vmatpush1.msra.mxu0 0.0
    %3539 = vmatprep.mubr.f32.mxu0 0.0
    %3540 = vmatmul.mubr.f32.gmra.mrb[0].mxu0 %v3464
    %v3541 = vpop.f32.mrb[0].mxu0
    %v3542 = vadd.f32 0.0, %v3541
    %v3543 = vpop.f32.mrb[0].mxu0
    %v3544 = vadd.f32 0.0, %v3543
    %3545 = vmatprep.mubr.f32.mxu0 0.0
    %3546 = vmatmul.mubr.f32.gmra.mrb[0].mxu0 %v3467
    %v3547 = vpop.f32.mrb[0].mxu0
    %v3548 = vadd.f32 0.0, %v3547
    %v3549 = vpop.f32.mrb[0].mxu0
    %v3550 = vadd.f32 0.0, %v3549
    %3551 = vmatprep.mubr.f32.mxu0 0.0
    %3552 = vmatmul.mubr.f32.gmra.mrb[0].mxu0 %v3470
    %v3553 = vpop.f32.mrb[0].mxu0
    %v3554 = vadd.f32 0.0, %v3553
    %v3555 = vpop.f32.mrb[0].mxu0
    %v3556 = vadd.f32 0.0, %v3555
    %3557 = vmatprep.mubr.f32.mxu0 0.0
    %3558 = vmatmul.mubr.f32.gmra.mrb[0].mxu0 %v3473
    %v3559 = vpop.f32.mrb[0].mxu0
    %v3560 = vadd.f32 0.0, %v3559
    %v3561 = vpop.f32.mrb[0].mxu0
    %v3562 = vadd.f32 0.0, %v3561
    %3563 = vdwg.mxu0
    %3564 = vmatprep.subr.mxu0 %v2377
    %3565 = vmatpush1.msra.mxu0 %v2376
    %3566 = vmatprep.subr.mxu0 %v2381
    %3567 = vmatpush1.msra.mxu0 %v2380
    %3568 = vmatprep.subr.mxu0 %v2385
    %3569 = vmatpush1.msra.mxu0 %v2384
    %3570 = vmatprep.subr.mxu0 %v2389
    %3571 = vmatpush1.msra.mxu0 %v2388
    %3572 = vmatprep.subr.mxu0 0.0
    %3573 = vmatpush1.msra.mxu0 0.0
    %3574 = vmatprep.subr.mxu0 0.0
    %3575 = vmatpush1.msra.mxu0 0.0
    %3576 = vmatprep.subr.mxu0 0.0
    %3577 = vmatpush1.msra.mxu0 0.0
    %3578 = vmatprep.subr.mxu0 0.0
    %3579 = vmatpush1.msra.mxu0 0.0
    %3580 = vmatprep.subr.mxu0 0.0
    %3581 = vmatpush1.msra.mxu0 0.0
    %3582 = vmatprep.subr.mxu0 0.0
    %3583 = vmatpush1.msra.mxu0 0.0
    %3584 = vmatprep.subr.mxu0 0.0
    %3585 = vmatpush1.msra.mxu0 0.0
    %3586 = vmatprep.subr.mxu0 0.0
    %3587 = vmatpush1.msra.mxu0 0.0
    %3588 = vmatprep.subr.mxu0 0.0
    %3589 = vmatpush1.msra.mxu0 0.0
    %3590 = vmatprep.subr.mxu0 0.0
    %3591 = vmatpush1.msra.mxu0 0.0
    %3592 = vmatprep.subr.mxu0 0.0
    %3593 = vmatpush1.msra.mxu0 0.0
    %3594 = vmatprep.subr.mxu0 0.0
    %3595 = vmatpush1.msra.mxu0 0.0
    %3596 = vmatprep.subr.mxu0 0.0
    %3597 = vmatpush1.msra.mxu0 0.0
    %3598 = vmatprep.subr.mxu0 0.0
    %3599 = vmatpush1.msra.mxu0 0.0
    %3600 = vmatprep.subr.mxu0 0.0
    %3601 = vmatpush1.msra.mxu0 0.0
    %3602 = vmatprep.subr.mxu0 0.0
    %3603 = vmatpush1.msra.mxu0 0.0
    %3604 = vmatprep.subr.mxu0 0.0
    %3605 = vmatpush1.msra.mxu0 0.0
    %3606 = vmatprep.subr.mxu0 0.0
    %3607 = vmatpush1.msra.mxu0 0.0
    %3608 = vmatprep.subr.mxu0 0.0
    %3609 = vmatpush1.msra.mxu0 0.0
    %3610 = vmatprep.subr.mxu0 0.0
    %3611 = vmatpush1.msra.mxu0 0.0
    %3612 = vmatprep.subr.mxu0 0.0
    %3613 = vmatpush1.msra.mxu0 0.0
    %3614 = vmatprep.subr.mxu0 0.0
    %3615 = vmatpush1.msra.mxu0 0.0
    %3616 = vmatprep.subr.mxu0 0.0
    %3617 = vmatpush1.msra.mxu0 0.0
    %3618 = vmatprep.subr.mxu0 0.0
    %3619 = vmatpush1.msra.mxu0 0.0
    %3620 = vmatprep.subr.mxu0 0.0
    %3621 = vmatpush1.msra.mxu0 0.0
    %3622 = vmatprep.subr.mxu0 0.0
    %3623 = vmatpush1.msra.mxu0 0.0
    %3624 = vmatprep.subr.mxu0 0.0
    %3625 = vmatpush1.msra.mxu0 0.0
    %3626 = vmatprep.subr.mxu0 0.0
    %3627 = vmatpush1.msra.mxu0 0.0
    %3628 = vmatprep.mubr.f32.mxu0 0.0
    %3629 = vmatmul.mubr.f32.gmra.mrb[0].mxu0 %v3464
    %v3630 = vpop.f32.mrb[0].mxu0
    %v3631 = vadd.f32 0.0, %v3630
    %v3632 = vpop.f32.mrb[0].mxu0
    %v3633 = vadd.f32 0.0, %v3632
    %3634 = vmatprep.mubr.f32.mxu0 0.0
    %3635 = vmatmul.mubr.f32.gmra.mrb[0].mxu0 %v3467
    %v3636 = vpop.f32.mrb[0].mxu0
    %v3637 = vadd.f32 0.0, %v3636
    %v3638 = vpop.f32.mrb[0].mxu0
    %v3639 = vadd.f32 0.0, %v3638
    %3640 = vmatprep.mubr.f32.mxu0 0.0
    %3641 = vmatmul.mubr.f32.gmra.mrb[0].mxu0 %v3470
    %v3642 = vpop.f32.mrb[0].mxu0
    %v3643 = vadd.f32 0.0, %v3642
    %v3644 = vpop.f32.mrb[0].mxu0
    %v3645 = vadd.f32 0.0, %v3644
    %3646 = vmatprep.mubr.f32.mxu0 0.0
    %3647 = vmatmul.mubr.f32.gmra.mrb[0].mxu0 %v3473
    %v3648 = vpop.f32.mrb[0].mxu0
    %v3649 = vadd.f32 0.0, %v3648
    %v3650 = vpop.f32.mrb[0].mxu0
    %v3651 = vadd.f32 0.0, %v3650
    %3652 = vdwg.mxu0
    %v3653 = vadd.f32 %v3442, %v3542
    %v3654 = vadd.f32 %v3443, %v3544
    %v3655 = vadd.f32 %v3444, %v3631
    %v3656 = vadd.f32 %v3445, %v3633
    %v3657 = vadd.f32 %v3446, %v3548
    %v3658 = vadd.f32 %v3447, %v3550
    %v3659 = vadd.f32 %v3448, %v3637
    %v3660 = vadd.f32 %v3449, %v3639
    %v3661 = vadd.f32 %v3450, %v3554
    %v3662 = vadd.f32 %v3451, %v3556
    %v3663 = vadd.f32 %v3452, %v3643
    %v3664 = vadd.f32 %v3453, %v3645
    %v3665 = vadd.f32 %v3454, %v3560
    %v3666 = vadd.f32 %v3455, %v3562
    %v3667 = vadd.f32 %v3456, %v3649
    %v3668 = vadd.f32 %v3457, %v3651
    %s3669 = scalar_lea.vmem %s4, 160
    %v3670 = vld [vmem:[%s3669] sm:$0xff]
    %v3671 = vld [vmem:[%s3669 + $0x8] sm:$0xff]
    %v3672 = vld [vmem:[%s3669 + $0x10] sm:$0xff]
    %v3673 = vld [vmem:[%s3669 + $0x18] sm:$0xff]
    %3674 = vrot.lane.b32.xlu0 %v2374, 127
    %v3675 = vpop.permute.xlu0 %3674
    %3676 = vrot.lane.b32.xlu0 %v2378, 127
    %v3677 = vpop.permute.xlu0 %3676
    %3678 = vrot.lane.b32.xlu0 %v2382, 127
    %v3679 = vpop.permute.xlu0 %3678
    %3680 = vrot.lane.b32.xlu0 %v2386, 127
    %v3681 = vpop.permute.xlu0 %3680
    %3682 = vrot.lane.b32.xlu0 %v2375, 127
    %v3683 = vpop.permute.xlu0 %3682
    %3684 = vrot.lane.b32.xlu0 %v2379, 127
    %v3685 = vpop.permute.xlu0 %3684
    %3686 = vrot.lane.b32.xlu0 %v2383, 127
    %v3687 = vpop.permute.xlu0 %3686
    %3688 = vrot.lane.b32.xlu0 %v2387, 127
    %v3689 = vpop.permute.xlu0 %3688
    %3690 = vrot.lane.b32.xlu0 %v2376, 127
    %v3691 = vpop.permute.xlu0 %3690
    %3692 = vrot.lane.b32.xlu0 %v2380, 127
    %v3693 = vpop.permute.xlu0 %3692
    %3694 = vrot.lane.b32.xlu0 %v2384, 127
    %v3695 = vpop.permute.xlu0 %3694
    %3696 = vrot.lane.b32.xlu0 %v2388, 127
    %v3697 = vpop.permute.xlu0 %3696
    %3698 = vrot.lane.b32.xlu0 %v2377, 127
    %v3699 = vpop.permute.xlu0 %3698
    %3700 = vrot.lane.b32.xlu0 %v2381, 127
    %v3701 = vpop.permute.xlu0 %3700
    %3702 = vrot.lane.b32.xlu0 %v2385, 127
    %v3703 = vpop.permute.xlu0 %3702
    %3704 = vrot.lane.b32.xlu0 %v2389, 127
    %v3705 = vpop.permute.xlu0 %3704
    %v3706 = vsel %vm1295, %v3691, %v3699
    %v3707 = vsel %vm1295, %v3693, %v3701
    %v3708 = vsel %vm1295, %v3695, %v3703
    %v3709 = vsel %vm1295, %v3697, %v3705
    %v3710 = vsel %vm1295, %v3683, %v3691
    %v3711 = vsel %vm1295, %v3685, %v3693
    %v3712 = vsel %vm1295, %v3687, %v3695
    %v3713 = vsel %vm1295, %v3689, %v3697
    %v3714 = vsel %vm1295, %v3675, %v3683
    %v3715 = vsel %vm1295, %v3677, %v3685
    %v3716 = vsel %vm1295, %v3679, %v3687
    %v3717 = vsel %vm1295, %v3681, %v3689
    %v3718 = vsel %vm1295, %v3699, %v3675
    %v3719 = vsel %vm1295, %v3701, %v3677
    %v3720 = vsel %vm1295, %v3703, %v3679
    %v3721 = vsel %vm1295, %v3705, %v3681
    %v3722 = vmul.f32 %v3714, %v1306
    %v3723 = vmul.f32 %v3710, %v1310
    %v3724 = vmul.f32 %v3706, %v1314
    %v3725 = vmul.f32 %v3718, %v1318
    %v3726 = vmul.f32 %v3715, %v1306
    %v3727 = vmul.f32 %v3711, %v1310
    %v3728 = vmul.f32 %v3707, %v1314
    %v3729 = vmul.f32 %v3719, %v1318
    %v3730 = vmul.f32 %v3716, %v1306
    %v3731 = vmul.f32 %v3712, %v1310
    %v3732 = vmul.f32 %v3708, %v1314
    %v3733 = vmul.f32 %v3720, %v1318
    %v3734 = vmul.f32 %v3717, %v1306
    %v3735 = vmul.f32 %v3713, %v1310
    %v3736 = vmul.f32 %v3709, %v1314
    %v3737 = vmul.f32 %v3721, %v1318
    %v3739 = vsel %vm2527, %v3670, 0
    %v3742 = vsel %vm2527, %v3671, 0
    %v3745 = vsel %vm2527, %v3672, 0
    %v3748 = vsel %vm2527, %v3673, 0
    %3750 = vmatprep.subr.mxu0 %v3723
    %3751 = vmatpush1.msra.mxu0 %v3722
    %3752 = vmatprep.subr.mxu0 %v3727
    %3753 = vmatpush1.msra.mxu0 %v3726
    %3754 = vmatprep.subr.mxu0 %v3731
    %3755 = vmatpush1.msra.mxu0 %v3730
    %3756 = vmatprep.subr.mxu0 %v3735
    %3757 = vmatpush1.msra.mxu0 %v3734
    %3758 = vmatprep.subr.mxu0 0.0
    %3759 = vmatpush1.msra.mxu0 0.0
    %3760 = vmatprep.subr.mxu0 0.0
    %3761 = vmatpush1.msra.mxu0 0.0
    %3762 = vmatprep.subr.mxu0 0.0
    %3763 = vmatpush1.msra.mxu0 0.0
    %3764 = vmatprep.subr.mxu0 0.0
    %3765 = vmatpush1.msra.mxu0 0.0
    %3766 = vmatprep.subr.mxu0 0.0
    %3767 = vmatpush1.msra.mxu0 0.0
    %3768 = vmatprep.subr.mxu0 0.0
    %3769 = vmatpush1.msra.mxu0 0.0
    %3770 = vmatprep.subr.mxu0 0.0
    %3771 = vmatpush1.msra.mxu0 0.0
    %3772 = vmatprep.subr.mxu0 0.0
    %3773 = vmatpush1.msra.mxu0 0.0
    %3774 = vmatprep.subr.mxu0 0.0
    %3775 = vmatpush1.msra.mxu0 0.0
    %3776 = vmatprep.subr.mxu0 0.0
    %3777 = vmatpush1.msra.mxu0 0.0
    %3778 = vmatprep.subr.mxu0 0.0
    %3779 = vmatpush1.msra.mxu0 0.0
    %3780 = vmatprep.subr.mxu0 0.0
    %3781 = vmatpush1.msra.mxu0 0.0
    %3782 = vmatprep.subr.mxu0 0.0
    %3783 = vmatpush1.msra.mxu0 0.0
    %3784 = vmatprep.subr.mxu0 0.0
    %3785 = vmatpush1.msra.mxu0 0.0
    %3786 = vmatprep.subr.mxu0 0.0
    %3787 = vmatpush1.msra.mxu0 0.0
    %3788 = vmatprep.subr.mxu0 0.0
    %3789 = vmatpush1.msra.mxu0 0.0
    %3790 = vmatprep.subr.mxu0 0.0
    %3791 = vmatpush1.msra.mxu0 0.0
    %3792 = vmatprep.subr.mxu0 0.0
    %3793 = vmatpush1.msra.mxu0 0.0
    %3794 = vmatprep.subr.mxu0 0.0
    %3795 = vmatpush1.msra.mxu0 0.0
    %3796 = vmatprep.subr.mxu0 0.0
    %3797 = vmatpush1.msra.mxu0 0.0
    %3798 = vmatprep.subr.mxu0 0.0
    %3799 = vmatpush1.msra.mxu0 0.0
    %3800 = vmatprep.subr.mxu0 0.0
    %3801 = vmatpush1.msra.mxu0 0.0
    %3802 = vmatprep.subr.mxu0 0.0
    %3803 = vmatpush1.msra.mxu0 0.0
    %3804 = vmatprep.subr.mxu0 0.0
    %3805 = vmatpush1.msra.mxu0 0.0
    %3806 = vmatprep.subr.mxu0 0.0
    %3807 = vmatpush1.msra.mxu0 0.0
    %3808 = vmatprep.subr.mxu0 0.0
    %3809 = vmatpush1.msra.mxu0 0.0
    %3810 = vmatprep.subr.mxu0 0.0
    %3811 = vmatpush1.msra.mxu0 0.0
    %3812 = vmatprep.subr.mxu0 0.0
    %3813 = vmatpush1.msra.mxu0 0.0
    %3814 = vmatprep.mubr.f32.mxu0 0.0
    %3815 = vmatmul.mubr.f32.gmra.mrb[0].mxu0 %v3739
    %v3816 = vpop.f32.mrb[0].mxu0
    %v3817 = vadd.f32 0.0, %v3816
    %v3818 = vpop.f32.mrb[0].mxu0
    %v3819 = vadd.f32 0.0, %v3818
    %3820 = vmatprep.mubr.f32.mxu0 0.0
    %3821 = vmatmul.mubr.f32.gmra.mrb[0].mxu0 %v3742
    %v3822 = vpop.f32.mrb[0].mxu0
    %v3823 = vadd.f32 0.0, %v3822
    %v3824 = vpop.f32.mrb[0].mxu0
    %v3825 = vadd.f32 0.0, %v3824
    %3826 = vmatprep.mubr.f32.mxu0 0.0
    %3827 = vmatmul.mubr.f32.gmra.mrb[0].mxu0 %v3745
    %v3828 = vpop.f32.mrb[0].mxu0
    %v3829 = vadd.f32 0.0, %v3828
    %v3830 = vpop.f32.mrb[0].mxu0
    %v3831 = vadd.f32 0.0, %v3830
    %3832 = vmatprep.mubr.f32.mxu0 0.0
    %3833 = vmatmul.mubr.f32.gmra.mrb[0].mxu0 %v3748
    %v3834 = vpop.f32.mrb[0].mxu0
    %v3835 = vadd.f32 0.0, %v3834
    %v3836 = vpop.f32.mrb[0].mxu0
    %v3837 = vadd.f32 0.0, %v3836
    %3838 = vdwg.mxu0
    %3839 = vmatprep.subr.mxu0 %v3725
    %3840 = vmatpush1.msra.mxu0 %v3724
    %3841 = vmatprep.subr.mxu0 %v3729
    %3842 = vmatpush1.msra.mxu0 %v3728
    %3843 = vmatprep.subr.mxu0 %v3733
    %3844 = vmatpush1.msra.mxu0 %v3732
    %3845 = vmatprep.subr.mxu0 %v3737
    %3846 = vmatpush1.msra.mxu0 %v3736
    %3847 = vmatprep.subr.mxu0 0.0
    %3848 = vmatpush1.msra.mxu0 0.0
    %3849 = vmatprep.subr.mxu0 0.0
    %3850 = vmatpush1.msra.mxu0 0.0
    %3851 = vmatprep.subr.mxu0 0.0
    %3852 = vmatpush1.msra.mxu0 0.0
    %3853 = vmatprep.subr.mxu0 0.0
    %3854 = vmatpush1.msra.mxu0 0.0
    %3855 = vmatprep.subr.mxu0 0.0
    %3856 = vmatpush1.msra.mxu0 0.0
    %3857 = vmatprep.subr.mxu0 0.0
    %3858 = vmatpush1.msra.mxu0 0.0
    %3859 = vmatprep.subr.mxu0 0.0
    %3860 = vmatpush1.msra.mxu0 0.0
    %3861 = vmatprep.subr.mxu0 0.0
    %3862 = vmatpush1.msra.mxu0 0.0
    %3863 = vmatprep.subr.mxu0 0.0
    %3864 = vmatpush1.msra.mxu0 0.0
    %3865 = vmatprep.subr.mxu0 0.0
    %3866 = vmatpush1.msra.mxu0 0.0
    %3867 = vmatprep.subr.mxu0 0.0
    %3868 = vmatpush1.msra.mxu0 0.0
    %3869 = vmatprep.subr.mxu0 0.0
    %3870 = vmatpush1.msra.mxu0 0.0
    %3871 = vmatprep.subr.mxu0 0.0
    %3872 = vmatpush1.msra.mxu0 0.0
    %3873 = vmatprep.subr.mxu0 0.0
    %3874 = vmatpush1.msra.mxu0 0.0
    %3875 = vmatprep.subr.mxu0 0.0
    %3876 = vmatpush1.msra.mxu0 0.0
    %3877 = vmatprep.subr.mxu0 0.0
    %3878 = vmatpush1.msra.mxu0 0.0
    %3879 = vmatprep.subr.mxu0 0.0
    %3880 = vmatpush1.msra.mxu0 0.0
    %3881 = vmatprep.subr.mxu0 0.0
    %3882 = vmatpush1.msra.mxu0 0.0
    %3883 = vmatprep.subr.mxu0 0.0
    %3884 = vmatpush1.msra.mxu0 0.0
    %3885 = vmatprep.subr.mxu0 0.0
    %3886 = vmatpush1.msra.mxu0 0.0
    %3887 = vmatprep.subr.mxu0 0.0
    %3888 = vmatpush1.msra.mxu0 0.0
    %3889 = vmatprep.subr.mxu0 0.0
    %3890 = vmatpush1.msra.mxu0 0.0
    %3891 = vmatprep.subr.mxu0 0.0
    %3892 = vmatpush1.msra.mxu0 0.0
    %3893 = vmatprep.subr.mxu0 0.0
    %3894 = vmatpush1.msra.mxu0 0.0
    %3895 = vmatprep.subr.mxu0 0.0
    %3896 = vmatpush1.msra.mxu0 0.0
    %3897 = vmatprep.subr.mxu0 0.0
    %3898 = vmatpush1.msra.mxu0 0.0
    %3899 = vmatprep.subr.mxu0 0.0
    %3900 = vmatpush1.msra.mxu0 0.0
    %3901 = vmatprep.subr.mxu0 0.0
    %3902 = vmatpush1.msra.mxu0 0.0
    %3903 = vmatprep.mubr.f32.mxu0 0.0
    %3904 = vmatmul.mubr.f32.gmra.mrb[0].mxu0 %v3739
    %v3905 = vpop.f32.mrb[0].mxu0
    %v3906 = vadd.f32 0.0, %v3905
    %v3907 = vpop.f32.mrb[0].mxu0
    %v3908 = vadd.f32 0.0, %v3907
    %3909 = vmatprep.mubr.f32.mxu0 0.0
    %3910 = vmatmul.mubr.f32.gmra.mrb[0].mxu0 %v3742
    %v3911 = vpop.f32.mrb[0].mxu0
    %v3912 = vadd.f32 0.0, %v3911
    %v3913 = vpop.f32.mrb[0].mxu0
    %v3914 = vadd.f32 0.0, %v3913
    %3915 = vmatprep.mubr.f32.mxu0 0.0
    %3916 = vmatmul.mubr.f32.gmra.mrb[0].mxu0 %v3745
    %v3917 = vpop.f32.mrb[0].mxu0
    %v3918 = vadd.f32 0.0, %v3917
    %v3919 = vpop.f32.mrb[0].mxu0
    %v3920 = vadd.f32 0.0, %v3919
    %3921 = vmatprep.mubr.f32.mxu0 0.0
    %3922 = vmatmul.mubr.f32.gmra.mrb[0].mxu0 %v3748
    %v3923 = vpop.f32.mrb[0].mxu0
    %v3924 = vadd.f32 0.0, %v3923
    %v3925 = vpop.f32.mrb[0].mxu0
    %v3926 = vadd.f32 0.0, %v3925
    %3927 = vdwg.mxu0
    %v3928 = vadd.f32 %v3653, %v3817
    %v3929 = vadd.f32 %v3654, %v3819
    %v3930 = vadd.f32 %v3655, %v3906
    %v3931 = vadd.f32 %v3656, %v3908
    %v3932 = vadd.f32 %v3657, %v3823
    %v3933 = vadd.f32 %v3658, %v3825
    %v3934 = vadd.f32 %v3659, %v3912
    %v3935 = vadd.f32 %v3660, %v3914
    %v3936 = vadd.f32 %v3661, %v3829
    %v3937 = vadd.f32 %v3662, %v3831
    %v3938 = vadd.f32 %v3663, %v3918
    %v3939 = vadd.f32 %v3664, %v3920
    %v3940 = vadd.f32 %v3665, %v3835
    %v3941 = vadd.f32 %v3666, %v3837
    %v3942 = vadd.f32 %v3667, %v3924
    %v3943 = vadd.f32 %v3668, %v3926
    %s3944 = scalar_lea.vmem %s4, 192
    %v3945 = vld [vmem:[%s3944] sm:$0xff]
    %v3946 = vld [vmem:[%s3944 + $0x8] sm:$0xff]
    %v3947 = vld [vmem:[%s3944 + $0x10] sm:$0xff]
    %v3948 = vld [vmem:[%s3944 + $0x18] sm:$0xff]
    %3949 = vrot.lane.b32.xlu0 %v2374, 113
    %v3950 = vpop.permute.xlu0 %3949
    %3951 = vrot.lane.b32.xlu0 %v2378, 113
    %v3952 = vpop.permute.xlu0 %3951
    %3953 = vrot.lane.b32.xlu0 %v2382, 113
    %v3954 = vpop.permute.xlu0 %3953
    %3955 = vrot.lane.b32.xlu0 %v2386, 113
    %v3956 = vpop.permute.xlu0 %3955
    %3957 = vrot.lane.b32.xlu0 %v2375, 113
    %v3958 = vpop.permute.xlu0 %3957
    %3959 = vrot.lane.b32.xlu0 %v2379, 113
    %v3960 = vpop.permute.xlu0 %3959
    %3961 = vrot.lane.b32.xlu0 %v2383, 113
    %v3962 = vpop.permute.xlu0 %3961
    %3963 = vrot.lane.b32.xlu0 %v2387, 113
    %v3964 = vpop.permute.xlu0 %3963
    %3965 = vrot.lane.b32.xlu0 %v2376, 113
    %v3966 = vpop.permute.xlu0 %3965
    %3967 = vrot.lane.b32.xlu0 %v2380, 113
    %v3968 = vpop.permute.xlu0 %3967
    %3969 = vrot.lane.b32.xlu0 %v2384, 113
    %v3970 = vpop.permute.xlu0 %3969
    %3971 = vrot.lane.b32.xlu0 %v2388, 113
    %v3972 = vpop.permute.xlu0 %3971
    %3973 = vrot.lane.b32.xlu0 %v2377, 113
    %v3974 = vpop.permute.xlu0 %3973
    %3975 = vrot.lane.b32.xlu0 %v2381, 113
    %v3976 = vpop.permute.xlu0 %3975
    %3977 = vrot.lane.b32.xlu0 %v2385, 113
    %v3978 = vpop.permute.xlu0 %3977
    %3979 = vrot.lane.b32.xlu0 %v2389, 113
    %v3980 = vpop.permute.xlu0 %3979
    %v3981 = vsel %vm1558, %v3966, %v3974
    %v3982 = vsel %vm1558, %v3968, %v3976
    %v3983 = vsel %vm1558, %v3970, %v3978
    %v3984 = vsel %vm1558, %v3972, %v3980
    %v3985 = vsel %vm1558, %v3958, %v3966
    %v3986 = vsel %vm1558, %v3960, %v3968
    %v3987 = vsel %vm1558, %v3962, %v3970
    %v3988 = vsel %vm1558, %v3964, %v3972
    %v3989 = vsel %vm1558, %v3950, %v3958
    %v3990 = vsel %vm1558, %v3952, %v3960
    %v3991 = vsel %vm1558, %v3954, %v3962
    %v3992 = vsel %vm1558, %v3956, %v3964
    %v3993 = vsel %vm1558, %v3974, %v3950
    %v3994 = vsel %vm1558, %v3976, %v3952
    %v3995 = vsel %vm1558, %v3978, %v3954
    %v3996 = vsel %vm1558, %v3980, %v3956
    %v3997 = vmul.f32 %v3989, %v1569
    %v3998 = vmul.f32 %v3985, %v1573
    %v3999 = vmul.f32 %v3981, %v1577
    %v4000 = vmul.f32 %v3993, %v1581
    %v4001 = vmul.f32 %v3990, %v1569
    %v4002 = vmul.f32 %v3986, %v1573
    %v4003 = vmul.f32 %v3982, %v1577
    %v4004 = vmul.f32 %v3994, %v1581
    %v4005 = vmul.f32 %v3991, %v1569
    %v4006 = vmul.f32 %v3987, %v1573
    %v4007 = vmul.f32 %v3983, %v1577
    %v4008 = vmul.f32 %v3995, %v1581
    %v4009 = vmul.f32 %v3992, %v1569
    %v4010 = vmul.f32 %v3988, %v1573
    %v4011 = vmul.f32 %v3984, %v1577
    %v4012 = vmul.f32 %v3996, %v1581
    %v4014 = vsel %vm2527, %v3945, 0
    %v4017 = vsel %vm2527, %v3946, 0
    %v4020 = vsel %vm2527, %v3947, 0
    %v4023 = vsel %vm2527, %v3948, 0
    %4025 = vmatprep.subr.mxu0 %v3998
    %4026 = vmatpush1.msra.mxu0 %v3997
    %4027 = vmatprep.subr.mxu0 %v4002
    %4028 = vmatpush1.msra.mxu0 %v4001
    %4029 = vmatprep.subr.mxu0 %v4006
    %4030 = vmatpush1.msra.mxu0 %v4005
    %4031 = vmatprep.subr.mxu0 %v4010
    %4032 = vmatpush1.msra.mxu0 %v4009
    %4033 = vmatprep.subr.mxu0 0.0
    %4034 = vmatpush1.msra.mxu0 0.0
    %4035 = vmatprep.subr.mxu0 0.0
    %4036 = vmatpush1.msra.mxu0 0.0
    %4037 = vmatprep.subr.mxu0 0.0
    %4038 = vmatpush1.msra.mxu0 0.0
    %4039 = vmatprep.subr.mxu0 0.0
    %4040 = vmatpush1.msra.mxu0 0.0
    %4041 = vmatprep.subr.mxu0 0.0
    %4042 = vmatpush1.msra.mxu0 0.0
    %4043 = vmatprep.subr.mxu0 0.0
    %4044 = vmatpush1.msra.mxu0 0.0
    %4045 = vmatprep.subr.mxu0 0.0
    %4046 = vmatpush1.msra.mxu0 0.0
    %4047 = vmatprep.subr.mxu0 0.0
    %4048 = vmatpush1.msra.mxu0 0.0
    %4049 = vmatprep.subr.mxu0 0.0
    %4050 = vmatpush1.msra.mxu0 0.0
    %4051 = vmatprep.subr.mxu0 0.0
    %4052 = vmatpush1.msra.mxu0 0.0
    %4053 = vmatprep.subr.mxu0 0.0
    %4054 = vmatpush1.msra.mxu0 0.0
    %4055 = vmatprep.subr.mxu0 0.0
    %4056 = vmatpush1.msra.mxu0 0.0
    %4057 = vmatprep.subr.mxu0 0.0
    %4058 = vmatpush1.msra.mxu0 0.0
    %4059 = vmatprep.subr.mxu0 0.0
    %4060 = vmatpush1.msra.mxu0 0.0
    %4061 = vmatprep.subr.mxu0 0.0
    %4062 = vmatpush1.msra.mxu0 0.0
    %4063 = vmatprep.subr.mxu0 0.0
    %4064 = vmatpush1.msra.mxu0 0.0
    %4065 = vmatprep.subr.mxu0 0.0
    %4066 = vmatpush1.msra.mxu0 0.0
    %4067 = vmatprep.subr.mxu0 0.0
    %4068 = vmatpush1.msra.mxu0 0.0
    %4069 = vmatprep.subr.mxu0 0.0
    %4070 = vmatpush1.msra.mxu0 0.0
    %4071 = vmatprep.subr.mxu0 0.0
    %4072 = vmatpush1.msra.mxu0 0.0
    %4073 = vmatprep.subr.mxu0 0.0
    %4074 = vmatpush1.msra.mxu0 0.0
    %4075 = vmatprep.subr.mxu0 0.0
    %4076 = vmatpush1.msra.mxu0 0.0
    %4077 = vmatprep.subr.mxu0 0.0
    %4078 = vmatpush1.msra.mxu0 0.0
    %4079 = vmatprep.subr.mxu0 0.0
    %4080 = vmatpush1.msra.mxu0 0.0
    %4081 = vmatprep.subr.mxu0 0.0
    %4082 = vmatpush1.msra.mxu0 0.0
    %4083 = vmatprep.subr.mxu0 0.0
    %4084 = vmatpush1.msra.mxu0 0.0
    %4085 = vmatprep.subr.mxu0 0.0
    %4086 = vmatpush1.msra.mxu0 0.0
    %4087 = vmatprep.subr.mxu0 0.0
    %4088 = vmatpush1.msra.mxu0 0.0
    %4089 = vmatprep.mubr.f32.mxu0 0.0
    %4090 = vmatmul.mubr.f32.gmra.mrb[0].mxu0 %v4014
    %v4091 = vpop.f32.mrb[0].mxu0
    %v4092 = vadd.f32 0.0, %v4091
    %v4093 = vpop.f32.mrb[0].mxu0
    %v4094 = vadd.f32 0.0, %v4093
    %4095 = vmatprep.mubr.f32.mxu0 0.0
    %4096 = vmatmul.mubr.f32.gmra.mrb[0].mxu0 %v4017
    %v4097 = vpop.f32.mrb[0].mxu0
    %v4098 = vadd.f32 0.0, %v4097
    %v4099 = vpop.f32.mrb[0].mxu0
    %v4100 = vadd.f32 0.0, %v4099
    %4101 = vmatprep.mubr.f32.mxu0 0.0
    %4102 = vmatmul.mubr.f32.gmra.mrb[0].mxu0 %v4020
    %v4103 = vpop.f32.mrb[0].mxu0
    %v4104 = vadd.f32 0.0, %v4103
    %v4105 = vpop.f32.mrb[0].mxu0
    %v4106 = vadd.f32 0.0, %v4105
    %4107 = vmatprep.mubr.f32.mxu0 0.0
    %4108 = vmatmul.mubr.f32.gmra.mrb[0].mxu0 %v4023
    %v4109 = vpop.f32.mrb[0].mxu0
    %v4110 = vadd.f32 0.0, %v4109
    %v4111 = vpop.f32.mrb[0].mxu0
    %v4112 = vadd.f32 0.0, %v4111
    %4113 = vdwg.mxu0
    %4114 = vmatprep.subr.mxu0 %v4000
    %4115 = vmatpush1.msra.mxu0 %v3999
    %4116 = vmatprep.subr.mxu0 %v4004
    %4117 = vmatpush1.msra.mxu0 %v4003
    %4118 = vmatprep.subr.mxu0 %v4008
    %4119 = vmatpush1.msra.mxu0 %v4007
    %4120 = vmatprep.subr.mxu0 %v4012
    %4121 = vmatpush1.msra.mxu0 %v4011
    %4122 = vmatprep.subr.mxu0 0.0
    %4123 = vmatpush1.msra.mxu0 0.0
    %4124 = vmatprep.subr.mxu0 0.0
    %4125 = vmatpush1.msra.mxu0 0.0
    %4126 = vmatprep.subr.mxu0 0.0
    %4127 = vmatpush1.msra.mxu0 0.0
    %4128 = vmatprep.subr.mxu0 0.0
    %4129 = vmatpush1.msra.mxu0 0.0
    %4130 = vmatprep.subr.mxu0 0.0
    %4131 = vmatpush1.msra.mxu0 0.0
    %4132 = vmatprep.subr.mxu0 0.0
    %4133 = vmatpush1.msra.mxu0 0.0
    %4134 = vmatprep.subr.mxu0 0.0
    %4135 = vmatpush1.msra.mxu0 0.0
    %4136 = vmatprep.subr.mxu0 0.0
    %4137 = vmatpush1.msra.mxu0 0.0
    %4138 = vmatprep.subr.mxu0 0.0
    %4139 = vmatpush1.msra.mxu0 0.0
    %4140 = vmatprep.subr.mxu0 0.0
    %4141 = vmatpush1.msra.mxu0 0.0
    %4142 = vmatprep.subr.mxu0 0.0
    %4143 = vmatpush1.msra.mxu0 0.0
    %4144 = vmatprep.subr.mxu0 0.0
    %4145 = vmatpush1.msra.mxu0 0.0
    %4146 = vmatprep.subr.mxu0 0.0
    %4147 = vmatpush1.msra.mxu0 0.0
    %4148 = vmatprep.subr.mxu0 0.0
    %4149 = vmatpush1.msra.mxu0 0.0
    %4150 = vmatprep.subr.mxu0 0.0
    %4151 = vmatpush1.msra.mxu0 0.0
    %4152 = vmatprep.subr.mxu0 0.0
    %4153 = vmatpush1.msra.mxu0 0.0
    %4154 = vmatprep.subr.mxu0 0.0
    %4155 = vmatpush1.msra.mxu0 0.0
    %4156 = vmatprep.subr.mxu0 0.0
    %4157 = vmatpush1.msra.mxu0 0.0
    %4158 = vmatprep.subr.mxu0 0.0
    %4159 = vmatpush1.msra.mxu0 0.0
    %4160 = vmatprep.subr.mxu0 0.0
    %4161 = vmatpush1.msra.mxu0 0.0
    %4162 = vmatprep.subr.mxu0 0.0
    %4163 = vmatpush1.msra.mxu0 0.0
    %4164 = vmatprep.subr.mxu0 0.0
    %4165 = vmatpush1.msra.mxu0 0.0
    %4166 = vmatprep.subr.mxu0 0.0
    %4167 = vmatpush1.msra.mxu0 0.0
    %4168 = vmatprep.subr.mxu0 0.0
    %4169 = vmatpush1.msra.mxu0 0.0
    %4170 = vmatprep.subr.mxu0 0.0
    %4171 = vmatpush1.msra.mxu0 0.0
    %4172 = vmatprep.subr.mxu0 0.0
    %4173 = vmatpush1.msra.mxu0 0.0
    %4174 = vmatprep.subr.mxu0 0.0
    %4175 = vmatpush1.msra.mxu0 0.0
    %4176 = vmatprep.subr.mxu0 0.0
    %4177 = vmatpush1.msra.mxu0 0.0
    %4178 = vmatprep.mubr.f32.mxu0 0.0
    %4179 = vmatmul.mubr.f32.gmra.mrb[0].mxu0 %v4014
    %v4180 = vpop.f32.mrb[0].mxu0
    %v4181 = vadd.f32 0.0, %v4180
    %v4182 = vpop.f32.mrb[0].mxu0
    %v4183 = vadd.f32 0.0, %v4182
    %4184 = vmatprep.mubr.f32.mxu0 0.0
    %4185 = vmatmul.mubr.f32.gmra.mrb[0].mxu0 %v4017
    %v4186 = vpop.f32.mrb[0].mxu0
    %v4187 = vadd.f32 0.0, %v4186
    %v4188 = vpop.f32.mrb[0].mxu0
    %v4189 = vadd.f32 0.0, %v4188
    %4190 = vmatprep.mubr.f32.mxu0 0.0
    %4191 = vmatmul.mubr.f32.gmra.mrb[0].mxu0 %v4020
    %v4192 = vpop.f32.mrb[0].mxu0
    %v4193 = vadd.f32 0.0, %v4192
    %v4194 = vpop.f32.mrb[0].mxu0
    %v4195 = vadd.f32 0.0, %v4194
    %4196 = vmatprep.mubr.f32.mxu0 0.0
    %4197 = vmatmul.mubr.f32.gmra.mrb[0].mxu0 %v4023
    %v4198 = vpop.f32.mrb[0].mxu0
    %v4199 = vadd.f32 0.0, %v4198
    %v4200 = vpop.f32.mrb[0].mxu0
    %v4201 = vadd.f32 0.0, %v4200
    %4202 = vdwg.mxu0
    %v4203 = vadd.f32 %v3928, %v4092
    %v4204 = vadd.f32 %v3929, %v4094
    %v4205 = vadd.f32 %v3930, %v4181
    %v4206 = vadd.f32 %v3931, %v4183
    %v4207 = vadd.f32 %v3932, %v4098
    %v4208 = vadd.f32 %v3933, %v4100
    %v4209 = vadd.f32 %v3934, %v4187
    %v4210 = vadd.f32 %v3935, %v4189
    %v4211 = vadd.f32 %v3936, %v4104
    %v4212 = vadd.f32 %v3937, %v4106
    %v4213 = vadd.f32 %v3938, %v4193
    %v4214 = vadd.f32 %v3939, %v4195
    %v4215 = vadd.f32 %v3940, %v4110
    %v4216 = vadd.f32 %v3941, %v4112
    %v4217 = vadd.f32 %v3942, %v4199
    %v4218 = vadd.f32 %v3943, %v4201
    %s4219 = scalar_lea.vmem %s4, 224
    %v4220 = vld [vmem:[%s4219] sm:$0xff]
    %v4221 = vld [vmem:[%s4219 + $0x8] sm:$0xff]
    %v4222 = vld [vmem:[%s4219 + $0x10] sm:$0xff]
    %v4223 = vld [vmem:[%s4219 + $0x18] sm:$0xff]
    %4224 = vrot.lane.b32.xlu0 %v2374, 112
    %v4225 = vpop.permute.xlu0 %4224
    %4226 = vrot.lane.b32.xlu0 %v2378, 112
    %v4227 = vpop.permute.xlu0 %4226
    %4228 = vrot.lane.b32.xlu0 %v2382, 112
    %v4229 = vpop.permute.xlu0 %4228
    %4230 = vrot.lane.b32.xlu0 %v2386, 112
    %v4231 = vpop.permute.xlu0 %4230
    %4232 = vrot.lane.b32.xlu0 %v2375, 112
    %v4233 = vpop.permute.xlu0 %4232
    %4234 = vrot.lane.b32.xlu0 %v2379, 112
    %v4235 = vpop.permute.xlu0 %4234
    %4236 = vrot.lane.b32.xlu0 %v2383, 112
    %v4237 = vpop.permute.xlu0 %4236
    %4238 = vrot.lane.b32.xlu0 %v2387, 112
    %v4239 = vpop.permute.xlu0 %4238
    %4240 = vrot.lane.b32.xlu0 %v2376, 112
    %v4241 = vpop.permute.xlu0 %4240
    %4242 = vrot.lane.b32.xlu0 %v2380, 112
    %v4243 = vpop.permute.xlu0 %4242
    %4244 = vrot.lane.b32.xlu0 %v2384, 112
    %v4245 = vpop.permute.xlu0 %4244
    %4246 = vrot.lane.b32.xlu0 %v2388, 112
    %v4247 = vpop.permute.xlu0 %4246
    %4248 = vrot.lane.b32.xlu0 %v2377, 112
    %v4249 = vpop.permute.xlu0 %4248
    %4250 = vrot.lane.b32.xlu0 %v2381, 112
    %v4251 = vpop.permute.xlu0 %4250
    %4252 = vrot.lane.b32.xlu0 %v2385, 112
    %v4253 = vpop.permute.xlu0 %4252
    %4254 = vrot.lane.b32.xlu0 %v2389, 112
    %v4255 = vpop.permute.xlu0 %4254
    %v4256 = vsel %vm1821, %v4241, %v4249
    %v4257 = vsel %vm1821, %v4243, %v4251
    %v4258 = vsel %vm1821, %v4245, %v4253
    %v4259 = vsel %vm1821, %v4247, %v4255
    %v4260 = vsel %vm1821, %v4233, %v4241
    %v4261 = vsel %vm1821, %v4235, %v4243
    %v4262 = vsel %vm1821, %v4237, %v4245
    %v4263 = vsel %vm1821, %v4239, %v4247
    %v4264 = vsel %vm1821, %v4225, %v4233
    %v4265 = vsel %vm1821, %v4227, %v4235
    %v4266 = vsel %vm1821, %v4229, %v4237
    %v4267 = vsel %vm1821, %v4231, %v4239
    %v4268 = vsel %vm1821, %v4249, %v4225
    %v4269 = vsel %vm1821, %v4251, %v4227
    %v4270 = vsel %vm1821, %v4253, %v4229
    %v4271 = vsel %vm1821, %v4255, %v4231
    %v4272 = vmul.f32 %v4264, %v1832
    %v4273 = vmul.f32 %v4260, %v1836
    %v4274 = vmul.f32 %v4256, %v1840
    %v4275 = vmul.f32 %v4268, %v1844
    %v4276 = vmul.f32 %v4265, %v1832
    %v4277 = vmul.f32 %v4261, %v1836
    %v4278 = vmul.f32 %v4257, %v1840
    %v4279 = vmul.f32 %v4269, %v1844
    %v4280 = vmul.f32 %v4266, %v1832
    %v4281 = vmul.f32 %v4262, %v1836
    %v4282 = vmul.f32 %v4258, %v1840
    %v4283 = vmul.f32 %v4270, %v1844
    %v4284 = vmul.f32 %v4267, %v1832
    %v4285 = vmul.f32 %v4263, %v1836
    %v4286 = vmul.f32 %v4259, %v1840
    %v4287 = vmul.f32 %v4271, %v1844
    %v4289 = vsel %vm2527, %v4220, 0
    %v4292 = vsel %vm2527, %v4221, 0
    %v4295 = vsel %vm2527, %v4222, 0
    %v4298 = vsel %vm2527, %v4223, 0
    %4300 = vmatprep.subr.mxu0 %v4273
    %4301 = vmatpush1.msra.mxu0 %v4272
    %4302 = vmatprep.subr.mxu0 %v4277
    %4303 = vmatpush1.msra.mxu0 %v4276
    %4304 = vmatprep.subr.mxu0 %v4281
    %4305 = vmatpush1.msra.mxu0 %v4280
    %4306 = vmatprep.subr.mxu0 %v4285
    %4307 = vmatpush1.msra.mxu0 %v4284
    %4308 = vmatprep.subr.mxu0 0.0
    %4309 = vmatpush1.msra.mxu0 0.0
    %4310 = vmatprep.subr.mxu0 0.0
    %4311 = vmatpush1.msra.mxu0 0.0
    %4312 = vmatprep.subr.mxu0 0.0
    %4313 = vmatpush1.msra.mxu0 0.0
    %4314 = vmatprep.subr.mxu0 0.0
    %4315 = vmatpush1.msra.mxu0 0.0
    %4316 = vmatprep.subr.mxu0 0.0
    %4317 = vmatpush1.msra.mxu0 0.0
    %4318 = vmatprep.subr.mxu0 0.0
    %4319 = vmatpush1.msra.mxu0 0.0
    %4320 = vmatprep.subr.mxu0 0.0
    %4321 = vmatpush1.msra.mxu0 0.0
    %4322 = vmatprep.subr.mxu0 0.0
    %4323 = vmatpush1.msra.mxu0 0.0
    %4324 = vmatprep.subr.mxu0 0.0
    %4325 = vmatpush1.msra.mxu0 0.0
    %4326 = vmatprep.subr.mxu0 0.0
    %4327 = vmatpush1.msra.mxu0 0.0
    %4328 = vmatprep.subr.mxu0 0.0
    %4329 = vmatpush1.msra.mxu0 0.0
    %4330 = vmatprep.subr.mxu0 0.0
    %4331 = vmatpush1.msra.mxu0 0.0
    %4332 = vmatprep.subr.mxu0 0.0
    %4333 = vmatpush1.msra.mxu0 0.0
    %4334 = vmatprep.subr.mxu0 0.0
    %4335 = vmatpush1.msra.mxu0 0.0
    %4336 = vmatprep.subr.mxu0 0.0
    %4337 = vmatpush1.msra.mxu0 0.0
    %4338 = vmatprep.subr.mxu0 0.0
    %4339 = vmatpush1.msra.mxu0 0.0
    %4340 = vmatprep.subr.mxu0 0.0
    %4341 = vmatpush1.msra.mxu0 0.0
    %4342 = vmatprep.subr.mxu0 0.0
    %4343 = vmatpush1.msra.mxu0 0.0
    %4344 = vmatprep.subr.mxu0 0.0
    %4345 = vmatpush1.msra.mxu0 0.0
    %4346 = vmatprep.subr.mxu0 0.0
    %4347 = vmatpush1.msra.mxu0 0.0
    %4348 = vmatprep.subr.mxu0 0.0
    %4349 = vmatpush1.msra.mxu0 0.0
    %4350 = vmatprep.subr.mxu0 0.0
    %4351 = vmatpush1.msra.mxu0 0.0
    %4352 = vmatprep.subr.mxu0 0.0
    %4353 = vmatpush1.msra.mxu0 0.0
    %4354 = vmatprep.subr.mxu0 0.0
    %4355 = vmatpush1.msra.mxu0 0.0
    %4356 = vmatprep.subr.mxu0 0.0
    %4357 = vmatpush1.msra.mxu0 0.0
    %4358 = vmatprep.subr.mxu0 0.0
    %4359 = vmatpush1.msra.mxu0 0.0
    %4360 = vmatprep.subr.mxu0 0.0
    %4361 = vmatpush1.msra.mxu0 0.0
    %4362 = vmatprep.subr.mxu0 0.0
    %4363 = vmatpush1.msra.mxu0 0.0
    %4364 = vmatprep.mubr.f32.mxu0 0.0
    %4365 = vmatmul.mubr.f32.gmra.mrb[0].mxu0 %v4289
    %v4366 = vpop.f32.mrb[0].mxu0
    %v4367 = vadd.f32 0.0, %v4366
    %v4368 = vpop.f32.mrb[0].mxu0
    %v4369 = vadd.f32 0.0, %v4368
    %4370 = vmatprep.mubr.f32.mxu0 0.0
    %4371 = vmatmul.mubr.f32.gmra.mrb[0].mxu0 %v4292
    %v4372 = vpop.f32.mrb[0].mxu0
    %v4373 = vadd.f32 0.0, %v4372
    %v4374 = vpop.f32.mrb[0].mxu0
    %v4375 = vadd.f32 0.0, %v4374
    %4376 = vmatprep.mubr.f32.mxu0 0.0
    %4377 = vmatmul.mubr.f32.gmra.mrb[0].mxu0 %v4295
    %v4378 = vpop.f32.mrb[0].mxu0
    %v4379 = vadd.f32 0.0, %v4378
    %v4380 = vpop.f32.mrb[0].mxu0
    %v4381 = vadd.f32 0.0, %v4380
    %4382 = vmatprep.mubr.f32.mxu0 0.0
    %4383 = vmatmul.mubr.f32.gmra.mrb[0].mxu0 %v4298
    %v4384 = vpop.f32.mrb[0].mxu0
    %v4385 = vadd.f32 0.0, %v4384
    %v4386 = vpop.f32.mrb[0].mxu0
    %v4387 = vadd.f32 0.0, %v4386
    %4388 = vdwg.mxu0
    %4389 = vmatprep.subr.mxu0 %v4275
    %4390 = vmatpush1.msra.mxu0 %v4274
    %4391 = vmatprep.subr.mxu0 %v4279
    %4392 = vmatpush1.msra.mxu0 %v4278
    %4393 = vmatprep.subr.mxu0 %v4283
    %4394 = vmatpush1.msra.mxu0 %v4282
    %4395 = vmatprep.subr.mxu0 %v4287
    %4396 = vmatpush1.msra.mxu0 %v4286
    %4397 = vmatprep.subr.mxu0 0.0
    %4398 = vmatpush1.msra.mxu0 0.0
    %4399 = vmatprep.subr.mxu0 0.0
    %4400 = vmatpush1.msra.mxu0 0.0
    %4401 = vmatprep.subr.mxu0 0.0
    %4402 = vmatpush1.msra.mxu0 0.0
    %4403 = vmatprep.subr.mxu0 0.0
    %4404 = vmatpush1.msra.mxu0 0.0
    %4405 = vmatprep.subr.mxu0 0.0
    %4406 = vmatpush1.msra.mxu0 0.0
    %4407 = vmatprep.subr.mxu0 0.0
    %4408 = vmatpush1.msra.mxu0 0.0
    %4409 = vmatprep.subr.mxu0 0.0
    %4410 = vmatpush1.msra.mxu0 0.0
    %4411 = vmatprep.subr.mxu0 0.0
    %4412 = vmatpush1.msra.mxu0 0.0
    %4413 = vmatprep.subr.mxu0 0.0
    %4414 = vmatpush1.msra.mxu0 0.0
    %4415 = vmatprep.subr.mxu0 0.0
    %4416 = vmatpush1.msra.mxu0 0.0
    %4417 = vmatprep.subr.mxu0 0.0
    %4418 = vmatpush1.msra.mxu0 0.0
    %4419 = vmatprep.subr.mxu0 0.0
    %4420 = vmatpush1.msra.mxu0 0.0
    %4421 = vmatprep.subr.mxu0 0.0
    %4422 = vmatpush1.msra.mxu0 0.0
    %4423 = vmatprep.subr.mxu0 0.0
    %4424 = vmatpush1.msra.mxu0 0.0
    %4425 = vmatprep.subr.mxu0 0.0
    %4426 = vmatpush1.msra.mxu0 0.0
    %4427 = vmatprep.subr.mxu0 0.0
    %4428 = vmatpush1.msra.mxu0 0.0
    %4429 = vmatprep.subr.mxu0 0.0
    %4430 = vmatpush1.msra.mxu0 0.0
    %4431 = vmatprep.subr.mxu0 0.0
    %4432 = vmatpush1.msra.mxu0 0.0
    %4433 = vmatprep.subr.mxu0 0.0
    %4434 = vmatpush1.msra.mxu0 0.0
    %4435 = vmatprep.subr.mxu0 0.0
    %4436 = vmatpush1.msra.mxu0 0.0
    %4437 = vmatprep.subr.mxu0 0.0
    %4438 = vmatpush1.msra.mxu0 0.0
    %4439 = vmatprep.subr.mxu0 0.0
    %4440 = vmatpush1.msra.mxu0 0.0
    %4441 = vmatprep.subr.mxu0 0.0
    %4442 = vmatpush1.msra.mxu0 0.0
    %4443 = vmatprep.subr.mxu0 0.0
    %4444 = vmatpush1.msra.mxu0 0.0
    %4445 = vmatprep.subr.mxu0 0.0
    %4446 = vmatpush1.msra.mxu0 0.0
    %4447 = vmatprep.subr.mxu0 0.0
    %4448 = vmatpush1.msra.mxu0 0.0
    %4449 = vmatprep.subr.mxu0 0.0
    %4450 = vmatpush1.msra.mxu0 0.0
    %4451 = vmatprep.subr.mxu0 0.0
    %4452 = vmatpush1.msra.mxu0 0.0
    %4453 = vmatprep.mubr.f32.mxu0 0.0
    %4454 = vmatmul.mubr.f32.gmra.mrb[0].mxu0 %v4289
    %v4455 = vpop.f32.mrb[0].mxu0
    %v4456 = vadd.f32 0.0, %v4455
    %v4457 = vpop.f32.mrb[0].mxu0
    %v4458 = vadd.f32 0.0, %v4457
    %4459 = vmatprep.mubr.f32.mxu0 0.0
    %4460 = vmatmul.mubr.f32.gmra.mrb[0].mxu0 %v4292
    %v4461 = vpop.f32.mrb[0].mxu0
    %v4462 = vadd.f32 0.0, %v4461
    %v4463 = vpop.f32.mrb[0].mxu0
    %v4464 = vadd.f32 0.0, %v4463
    %4465 = vmatprep.mubr.f32.mxu0 0.0
    %4466 = vmatmul.mubr.f32.gmra.mrb[0].mxu0 %v4295
    %v4467 = vpop.f32.mrb[0].mxu0
    %v4468 = vadd.f32 0.0, %v4467
    %v4469 = vpop.f32.mrb[0].mxu0
    %v4470 = vadd.f32 0.0, %v4469
    %4471 = vmatprep.mubr.f32.mxu0 0.0
    %4472 = vmatmul.mubr.f32.gmra.mrb[0].mxu0 %v4298
    %v4473 = vpop.f32.mrb[0].mxu0
    %v4474 = vadd.f32 0.0, %v4473
    %v4475 = vpop.f32.mrb[0].mxu0
    %v4476 = vadd.f32 0.0, %v4475
    %4477 = vdwg.mxu0
    %v4478 = vadd.f32 %v4203, %v4367
    %v4479 = vadd.f32 %v4204, %v4369
    %v4480 = vadd.f32 %v4205, %v4456
    %v4481 = vadd.f32 %v4206, %v4458
    %v4482 = vadd.f32 %v4207, %v4373
    %v4483 = vadd.f32 %v4208, %v4375
    %v4484 = vadd.f32 %v4209, %v4462
    %v4485 = vadd.f32 %v4210, %v4464
    %v4486 = vadd.f32 %v4211, %v4379
    %v4487 = vadd.f32 %v4212, %v4381
    %v4488 = vadd.f32 %v4213, %v4468
    %v4489 = vadd.f32 %v4214, %v4470
    %v4490 = vadd.f32 %v4215, %v4385
    %v4491 = vadd.f32 %v4216, %v4387
    %v4492 = vadd.f32 %v4217, %v4474
    %v4493 = vadd.f32 %v4218, %v4476
    %s4494 = scalar_lea.vmem %s4, 256
    %v4495 = vld [vmem:[%s4494] sm:$0xff]
    %v4496 = vld [vmem:[%s4494 + $0x8] sm:$0xff]
    %v4497 = vld [vmem:[%s4494 + $0x10] sm:$0xff]
    %v4498 = vld [vmem:[%s4494 + $0x18] sm:$0xff]
    %4499 = vrot.lane.b32.xlu0 %v2374, 111
    %v4500 = vpop.permute.xlu0 %4499
    %4501 = vrot.lane.b32.xlu0 %v2378, 111
    %v4502 = vpop.permute.xlu0 %4501
    %4503 = vrot.lane.b32.xlu0 %v2382, 111
    %v4504 = vpop.permute.xlu0 %4503
    %4505 = vrot.lane.b32.xlu0 %v2386, 111
    %v4506 = vpop.permute.xlu0 %4505
    %4507 = vrot.lane.b32.xlu0 %v2375, 111
    %v4508 = vpop.permute.xlu0 %4507
    %4509 = vrot.lane.b32.xlu0 %v2379, 111
    %v4510 = vpop.permute.xlu0 %4509
    %4511 = vrot.lane.b32.xlu0 %v2383, 111
    %v4512 = vpop.permute.xlu0 %4511
    %4513 = vrot.lane.b32.xlu0 %v2387, 111
    %v4514 = vpop.permute.xlu0 %4513
    %4515 = vrot.lane.b32.xlu0 %v2376, 111
    %v4516 = vpop.permute.xlu0 %4515
    %4517 = vrot.lane.b32.xlu0 %v2380, 111
    %v4518 = vpop.permute.xlu0 %4517
    %4519 = vrot.lane.b32.xlu0 %v2384, 111
    %v4520 = vpop.permute.xlu0 %4519
    %4521 = vrot.lane.b32.xlu0 %v2388, 111
    %v4522 = vpop.permute.xlu0 %4521
    %4523 = vrot.lane.b32.xlu0 %v2377, 111
    %v4524 = vpop.permute.xlu0 %4523
    %4525 = vrot.lane.b32.xlu0 %v2381, 111
    %v4526 = vpop.permute.xlu0 %4525
    %4527 = vrot.lane.b32.xlu0 %v2385, 111
    %v4528 = vpop.permute.xlu0 %4527
    %4529 = vrot.lane.b32.xlu0 %v2389, 111
    %v4530 = vpop.permute.xlu0 %4529
    %v4531 = vsel %vm2084, %v4516, %v4524
    %v4532 = vsel %vm2084, %v4518, %v4526
    %v4533 = vsel %vm2084, %v4520, %v4528
    %v4534 = vsel %vm2084, %v4522, %v4530
    %v4535 = vsel %vm2084, %v4508, %v4516
    %v4536 = vsel %vm2084, %v4510, %v4518
    %v4537 = vsel %vm2084, %v4512, %v4520
    %v4538 = vsel %vm2084, %v4514, %v4522
    %v4539 = vsel %vm2084, %v4500, %v4508
    %v4540 = vsel %vm2084, %v4502, %v4510
    %v4541 = vsel %vm2084, %v4504, %v4512
    %v4542 = vsel %vm2084, %v4506, %v4514
    %v4543 = vsel %vm2084, %v4524, %v4500
    %v4544 = vsel %vm2084, %v4526, %v4502
    %v4545 = vsel %vm2084, %v4528, %v4504
    %v4546 = vsel %vm2084, %v4530, %v4506
    %v4547 = vmul.f32 %v4539, %v2095
    %v4548 = vmul.f32 %v4535, %v2099
    %v4549 = vmul.f32 %v4531, %v2103
    %v4550 = vmul.f32 %v4543, %v2107
    %v4551 = vmul.f32 %v4540, %v2095
    %v4552 = vmul.f32 %v4536, %v2099
    %v4553 = vmul.f32 %v4532, %v2103
    %v4554 = vmul.f32 %v4544, %v2107
    %v4555 = vmul.f32 %v4541, %v2095
    %v4556 = vmul.f32 %v4537, %v2099
    %v4557 = vmul.f32 %v4533, %v2103
    %v4558 = vmul.f32 %v4545, %v2107
    %v4559 = vmul.f32 %v4542, %v2095
    %v4560 = vmul.f32 %v4538, %v2099
    %v4561 = vmul.f32 %v4534, %v2103
    %v4562 = vmul.f32 %v4546, %v2107
    %v4564 = vsel %vm2527, %v4495, 0
    %v4567 = vsel %vm2527, %v4496, 0
    %v4570 = vsel %vm2527, %v4497, 0
    %v4573 = vsel %vm2527, %v4498, 0
    %4575 = vmatprep.subr.mxu0 %v4548
    %4576 = vmatpush1.msra.mxu0 %v4547
    %4577 = vmatprep.subr.mxu0 %v4552
    %4578 = vmatpush1.msra.mxu0 %v4551
    %4579 = vmatprep.subr.mxu0 %v4556
    %4580 = vmatpush1.msra.mxu0 %v4555
    %4581 = vmatprep.subr.mxu0 %v4560
    %4582 = vmatpush1.msra.mxu0 %v4559
    %4583 = vmatprep.subr.mxu0 0.0
    %4584 = vmatpush1.msra.mxu0 0.0
    %4585 = vmatprep.subr.mxu0 0.0
    %4586 = vmatpush1.msra.mxu0 0.0
    %4587 = vmatprep.subr.mxu0 0.0
    %4588 = vmatpush1.msra.mxu0 0.0
    %4589 = vmatprep.subr.mxu0 0.0
    %4590 = vmatpush1.msra.mxu0 0.0
    %4591 = vmatprep.subr.mxu0 0.0
    %4592 = vmatpush1.msra.mxu0 0.0
    %4593 = vmatprep.subr.mxu0 0.0
    %4594 = vmatpush1.msra.mxu0 0.0
    %4595 = vmatprep.subr.mxu0 0.0
    %4596 = vmatpush1.msra.mxu0 0.0
    %4597 = vmatprep.subr.mxu0 0.0
    %4598 = vmatpush1.msra.mxu0 0.0
    %4599 = vmatprep.subr.mxu0 0.0
    %4600 = vmatpush1.msra.mxu0 0.0
    %4601 = vmatprep.subr.mxu0 0.0
    %4602 = vmatpush1.msra.mxu0 0.0
    %4603 = vmatprep.subr.mxu0 0.0
    %4604 = vmatpush1.msra.mxu0 0.0
    %4605 = vmatprep.subr.mxu0 0.0
    %4606 = vmatpush1.msra.mxu0 0.0
    %4607 = vmatprep.subr.mxu0 0.0
    %4608 = vmatpush1.msra.mxu0 0.0
    %4609 = vmatprep.subr.mxu0 0.0
    %4610 = vmatpush1.msra.mxu0 0.0
    %4611 = vmatprep.subr.mxu0 0.0
    %4612 = vmatpush1.msra.mxu0 0.0
    %4613 = vmatprep.subr.mxu0 0.0
    %4614 = vmatpush1.msra.mxu0 0.0
    %4615 = vmatprep.subr.mxu0 0.0
    %4616 = vmatpush1.msra.mxu0 0.0
    %4617 = vmatprep.subr.mxu0 0.0
    %4618 = vmatpush1.msra.mxu0 0.0
    %4619 = vmatprep.subr.mxu0 0.0
    %4620 = vmatpush1.msra.mxu0 0.0
    %4621 = vmatprep.subr.mxu0 0.0
    %4622 = vmatpush1.msra.mxu0 0.0
    %4623 = vmatprep.subr.mxu0 0.0
    %4624 = vmatpush1.msra.mxu0 0.0
    %4625 = vmatprep.subr.mxu0 0.0
    %4626 = vmatpush1.msra.mxu0 0.0
    %4627 = vmatprep.subr.mxu0 0.0
    %4628 = vmatpush1.msra.mxu0 0.0
    %4629 = vmatprep.subr.mxu0 0.0
    %4630 = vmatpush1.msra.mxu0 0.0
    %4631 = vmatprep.subr.mxu0 0.0
    %4632 = vmatpush1.msra.mxu0 0.0
    %4633 = vmatprep.subr.mxu0 0.0
    %4634 = vmatpush1.msra.mxu0 0.0
    %4635 = vmatprep.subr.mxu0 0.0
    %4636 = vmatpush1.msra.mxu0 0.0
    %4637 = vmatprep.subr.mxu0 0.0
    %4638 = vmatpush1.msra.mxu0 0.0
    %4639 = vmatprep.mubr.f32.mxu0 0.0
    %4640 = vmatmul.mubr.f32.gmra.mrb[0].mxu0 %v4564
    %v4641 = vpop.f32.mrb[0].mxu0
    %v4642 = vadd.f32 0.0, %v4641
    %v4643 = vpop.f32.mrb[0].mxu0
    %v4644 = vadd.f32 0.0, %v4643
    %4645 = vmatprep.mubr.f32.mxu0 0.0
    %4646 = vmatmul.mubr.f32.gmra.mrb[0].mxu0 %v4567
    %v4647 = vpop.f32.mrb[0].mxu0
    %v4648 = vadd.f32 0.0, %v4647
    %v4649 = vpop.f32.mrb[0].mxu0
    %v4650 = vadd.f32 0.0, %v4649
    %4651 = vmatprep.mubr.f32.mxu0 0.0
    %4652 = vmatmul.mubr.f32.gmra.mrb[0].mxu0 %v4570
    %v4653 = vpop.f32.mrb[0].mxu0
    %v4654 = vadd.f32 0.0, %v4653
    %v4655 = vpop.f32.mrb[0].mxu0
    %v4656 = vadd.f32 0.0, %v4655
    %4657 = vmatprep.mubr.f32.mxu0 0.0
    %4658 = vmatmul.mubr.f32.gmra.mrb[0].mxu0 %v4573
    %v4659 = vpop.f32.mrb[0].mxu0
    %v4660 = vadd.f32 0.0, %v4659
    %v4661 = vpop.f32.mrb[0].mxu0
    %v4662 = vadd.f32 0.0, %v4661
    %4663 = vdwg.mxu0
    %4664 = vmatprep.subr.mxu0 %v4550
    %4665 = vmatpush1.msra.mxu0 %v4549
    %4666 = vmatprep.subr.mxu0 %v4554
    %4667 = vmatpush1.msra.mxu0 %v4553
    %4668 = vmatprep.subr.mxu0 %v4558
    %4669 = vmatpush1.msra.mxu0 %v4557
    %4670 = vmatprep.subr.mxu0 %v4562
    %4671 = vmatpush1.msra.mxu0 %v4561
    %4672 = vmatprep.subr.mxu0 0.0
    %4673 = vmatpush1.msra.mxu0 0.0
    %4674 = vmatprep.subr.mxu0 0.0
    %4675 = vmatpush1.msra.mxu0 0.0
    %4676 = vmatprep.subr.mxu0 0.0
    %4677 = vmatpush1.msra.mxu0 0.0
    %4678 = vmatprep.subr.mxu0 0.0
    %4679 = vmatpush1.msra.mxu0 0.0
    %4680 = vmatprep.subr.mxu0 0.0
    %4681 = vmatpush1.msra.mxu0 0.0
    %4682 = vmatprep.subr.mxu0 0.0
    %4683 = vmatpush1.msra.mxu0 0.0
    %4684 = vmatprep.subr.mxu0 0.0
    %4685 = vmatpush1.msra.mxu0 0.0
    %4686 = vmatprep.subr.mxu0 0.0
    %4687 = vmatpush1.msra.mxu0 0.0
    %4688 = vmatprep.subr.mxu0 0.0
    %4689 = vmatpush1.msra.mxu0 0.0
    %4690 = vmatprep.subr.mxu0 0.0
    %4691 = vmatpush1.msra.mxu0 0.0
    %4692 = vmatprep.subr.mxu0 0.0
    %4693 = vmatpush1.msra.mxu0 0.0
    %4694 = vmatprep.subr.mxu0 0.0
    %4695 = vmatpush1.msra.mxu0 0.0
    %4696 = vmatprep.subr.mxu0 0.0
    %4697 = vmatpush1.msra.mxu0 0.0
    %4698 = vmatprep.subr.mxu0 0.0
    %4699 = vmatpush1.msra.mxu0 0.0
    %4700 = vmatprep.subr.mxu0 0.0
    %4701 = vmatpush1.msra.mxu0 0.0
    %4702 = vmatprep.subr.mxu0 0.0
    %4703 = vmatpush1.msra.mxu0 0.0
    %4704 = vmatprep.subr.mxu0 0.0
    %4705 = vmatpush1.msra.mxu0 0.0
    %4706 = vmatprep.subr.mxu0 0.0
    %4707 = vmatpush1.msra.mxu0 0.0
    %4708 = vmatprep.subr.mxu0 0.0
    %4709 = vmatpush1.msra.mxu0 0.0
    %4710 = vmatprep.subr.mxu0 0.0
    %4711 = vmatpush1.msra.mxu0 0.0
    %4712 = vmatprep.subr.mxu0 0.0
    %4713 = vmatpush1.msra.mxu0 0.0
    %4714 = vmatprep.subr.mxu0 0.0
    %4715 = vmatpush1.msra.mxu0 0.0
    %4716 = vmatprep.subr.mxu0 0.0
    %4717 = vmatpush1.msra.mxu0 0.0
    %4718 = vmatprep.subr.mxu0 0.0
    %4719 = vmatpush1.msra.mxu0 0.0
    %4720 = vmatprep.subr.mxu0 0.0
    %4721 = vmatpush1.msra.mxu0 0.0
    %4722 = vmatprep.subr.mxu0 0.0
    %4723 = vmatpush1.msra.mxu0 0.0
    %4724 = vmatprep.subr.mxu0 0.0
    %4725 = vmatpush1.msra.mxu0 0.0
    %4726 = vmatprep.subr.mxu0 0.0
    %4727 = vmatpush1.msra.mxu0 0.0
    %4728 = vmatprep.mubr.f32.mxu0 0.0
    %4729 = vmatmul.mubr.f32.gmra.mrb[0].mxu0 %v4564
    %v4730 = vpop.f32.mrb[0].mxu0
    %v4731 = vadd.f32 0.0, %v4730
    %v4732 = vpop.f32.mrb[0].mxu0
    %v4733 = vadd.f32 0.0, %v4732
    %4734 = vmatprep.mubr.f32.mxu0 0.0
    %4735 = vmatmul.mubr.f32.gmra.mrb[0].mxu0 %v4567
    %v4736 = vpop.f32.mrb[0].mxu0
    %v4737 = vadd.f32 0.0, %v4736
    %v4738 = vpop.f32.mrb[0].mxu0
    %v4739 = vadd.f32 0.0, %v4738
    %4740 = vmatprep.mubr.f32.mxu0 0.0
    %4741 = vmatmul.mubr.f32.gmra.mrb[0].mxu0 %v4570
    %v4742 = vpop.f32.mrb[0].mxu0
    %v4743 = vadd.f32 0.0, %v4742
    %v4744 = vpop.f32.mrb[0].mxu0
    %v4745 = vadd.f32 0.0, %v4744
    %4746 = vmatprep.mubr.f32.mxu0 0.0
    %4747 = vmatmul.mubr.f32.gmra.mrb[0].mxu0 %v4573
    %v4748 = vpop.f32.mrb[0].mxu0
    %v4749 = vadd.f32 0.0, %v4748
    %v4750 = vpop.f32.mrb[0].mxu0
    %v4751 = vadd.f32 0.0, %v4750
    %4752 = vdwg.mxu0
    %v4753 = vadd.f32 %v4478, %v4642
    %v4754 = vadd.f32 %v4479, %v4644
    %v4755 = vadd.f32 %v4480, %v4731
    %v4756 = vadd.f32 %v4481, %v4733
    %v4757 = vadd.f32 %v4482, %v4648
    %v4758 = vadd.f32 %v4483, %v4650
    %v4759 = vadd.f32 %v4484, %v4737
    %v4760 = vadd.f32 %v4485, %v4739
    %v4761 = vadd.f32 %v4486, %v4654
    %v4762 = vadd.f32 %v4487, %v4656
    %v4763 = vadd.f32 %v4488, %v4743
    %v4764 = vadd.f32 %v4489, %v4745
    %v4765 = vadd.f32 %v4490, %v4660
    %v4766 = vadd.f32 %v4491, %v4662
    %v4767 = vadd.f32 %v4492, %v4749
    %v4768 = vadd.f32 %v4493, %v4751
    %v4769 = vld [vmem:[%s5] sm:$0xff]
    %v4770 = vld [vmem:[%s5 + $0x8] sm:$0xff]
    %v4771 = vld [vmem:[%s5 + $0x10] sm:$0xff]
    %v4772 = vld [vmem:[%s5 + $0x18] sm:$0xff]
    %4774 = vset.pattern.permute.xlu0 0
    %4775 = vperm.xlu0 %4774, %v4769
    %v4776 = vpop.permute.xlu0 %4775
    %4779 = vset.pattern.permute.xlu0 0
    %4780 = vperm.xlu0 %4779, %v4770
    %v4781 = vpop.permute.xlu0 %4780
    %4784 = vset.pattern.permute.xlu0 0
    %4785 = vperm.xlu0 %4784, %v4771
    %v4786 = vpop.permute.xlu0 %4785
    %4789 = vset.pattern.permute.xlu0 0
    %4790 = vperm.xlu0 %4789, %v4772
    %v4791 = vpop.permute.xlu0 %4790
    %v4793 = vadd.f32 %v4753, %v4776
    %v4794 = vadd.f32 %v4754, %v4776
    %v4795 = vadd.f32 %v4755, %v4776
    %v4796 = vadd.f32 %v4756, %v4776
    %v4797 = vadd.f32 %v4757, %v4781
    %v4798 = vadd.f32 %v4758, %v4781
    %v4799 = vadd.f32 %v4759, %v4781
    %v4800 = vadd.f32 %v4760, %v4781
    %v4801 = vadd.f32 %v4761, %v4786
    %v4802 = vadd.f32 %v4762, %v4786
    %v4803 = vadd.f32 %v4763, %v4786
    %v4804 = vadd.f32 %v4764, %v4786
    %v4805 = vadd.f32 %v4765, %v4791
    %v4806 = vadd.f32 %v4766, %v4791
    %v4807 = vadd.f32 %v4767, %v4791
    %v4808 = vadd.f32 %v4768, %v4791
    %v4809 = vmax.f32 %v4793, 0.0
    %v4810 = vmax.f32 %v4794, 0.0
    %v4811 = vmax.f32 %v4795, 0.0
    %v4812 = vmax.f32 %v4796, 0.0
    %v4813 = vmax.f32 %v4797, 0.0
    %v4814 = vmax.f32 %v4798, 0.0
    %v4815 = vmax.f32 %v4799, 0.0
    %v4816 = vmax.f32 %v4800, 0.0
    %v4817 = vmax.f32 %v4801, 0.0
    %v4818 = vmax.f32 %v4802, 0.0
    %v4819 = vmax.f32 %v4803, 0.0
    %v4820 = vmax.f32 %v4804, 0.0
    %v4821 = vmax.f32 %v4805, 0.0
    %v4822 = vmax.f32 %v4806, 0.0
    %v4823 = vmax.f32 %v4807, 0.0
    %v4824 = vmax.f32 %v4808, 0.0
    %v4825 = vadd.f32 %v2374, %v4809
    %v4826 = vadd.f32 %v2375, %v4810
    %v4827 = vadd.f32 %v2376, %v4811
    %v4828 = vadd.f32 %v2377, %v4812
    %v4829 = vadd.f32 %v2378, %v4813
    %v4830 = vadd.f32 %v2379, %v4814
    %v4831 = vadd.f32 %v2380, %v4815
    %v4832 = vadd.f32 %v2381, %v4816
    %v4833 = vadd.f32 %v2382, %v4817
    %v4834 = vadd.f32 %v2383, %v4818
    %v4835 = vadd.f32 %v2384, %v4819
    %v4836 = vadd.f32 %v2385, %v4820
    %v4837 = vadd.f32 %v2386, %v4821
    %v4838 = vadd.f32 %v2387, %v4822
    %v4839 = vadd.f32 %v2388, %v4823
    %v4840 = vadd.f32 %v2389, %v4824
    %v4841 = vld [vmem:[%s6] sm:$0x7]
    %v4842 = vld [vmem:[%s7] sm:$0x7]
    %4844 = vset.pattern.permute.xlu0 0
    %4845 = vperm.xlu0 %4844, %v4842
    %v4846 = vpop.permute.xlu0 %4845
    %v4849 = vsel %vm2527, %v4841, 0
    %4851 = vmatprep.subr.mxu0 %v4826
    %4852 = vmatpush1.msra.mxu0 %v4825
    %4853 = vmatprep.subr.mxu0 %v4830
    %4854 = vmatpush1.msra.mxu0 %v4829
    %4855 = vmatprep.subr.mxu0 %v4834
    %4856 = vmatpush1.msra.mxu0 %v4833
    %4857 = vmatprep.subr.mxu0 %v4838
    %4858 = vmatpush1.msra.mxu0 %v4837
    %4859 = vmatprep.subr.mxu0 0.0
    %4860 = vmatpush1.msra.mxu0 0.0
    %4861 = vmatprep.subr.mxu0 0.0
    %4862 = vmatpush1.msra.mxu0 0.0
    %4863 = vmatprep.subr.mxu0 0.0
    %4864 = vmatpush1.msra.mxu0 0.0
    %4865 = vmatprep.subr.mxu0 0.0
    %4866 = vmatpush1.msra.mxu0 0.0
    %4867 = vmatprep.subr.mxu0 0.0
    %4868 = vmatpush1.msra.mxu0 0.0
    %4869 = vmatprep.subr.mxu0 0.0
    %4870 = vmatpush1.msra.mxu0 0.0
    %4871 = vmatprep.subr.mxu0 0.0
    %4872 = vmatpush1.msra.mxu0 0.0
    %4873 = vmatprep.subr.mxu0 0.0
    %4874 = vmatpush1.msra.mxu0 0.0
    %4875 = vmatprep.subr.mxu0 0.0
    %4876 = vmatpush1.msra.mxu0 0.0
    %4877 = vmatprep.subr.mxu0 0.0
    %4878 = vmatpush1.msra.mxu0 0.0
    %4879 = vmatprep.subr.mxu0 0.0
    %4880 = vmatpush1.msra.mxu0 0.0
    %4881 = vmatprep.subr.mxu0 0.0
    %4882 = vmatpush1.msra.mxu0 0.0
    %4883 = vmatprep.subr.mxu0 0.0
    %4884 = vmatpush1.msra.mxu0 0.0
    %4885 = vmatprep.subr.mxu0 0.0
    %4886 = vmatpush1.msra.mxu0 0.0
    %4887 = vmatprep.subr.mxu0 0.0
    %4888 = vmatpush1.msra.mxu0 0.0
    %4889 = vmatprep.subr.mxu0 0.0
    %4890 = vmatpush1.msra.mxu0 0.0
    %4891 = vmatprep.subr.mxu0 0.0
    %4892 = vmatpush1.msra.mxu0 0.0
    %4893 = vmatprep.subr.mxu0 0.0
    %4894 = vmatpush1.msra.mxu0 0.0
    %4895 = vmatprep.subr.mxu0 0.0
    %4896 = vmatpush1.msra.mxu0 0.0
    %4897 = vmatprep.subr.mxu0 0.0
    %4898 = vmatpush1.msra.mxu0 0.0
    %4899 = vmatprep.subr.mxu0 0.0
    %4900 = vmatpush1.msra.mxu0 0.0
    %4901 = vmatprep.subr.mxu0 0.0
    %4902 = vmatpush1.msra.mxu0 0.0
    %4903 = vmatprep.subr.mxu0 0.0
    %4904 = vmatpush1.msra.mxu0 0.0
    %4905 = vmatprep.subr.mxu0 0.0
    %4906 = vmatpush1.msra.mxu0 0.0
    %4907 = vmatprep.subr.mxu0 0.0
    %4908 = vmatpush1.msra.mxu0 0.0
    %4909 = vmatprep.subr.mxu0 0.0
    %4910 = vmatpush1.msra.mxu0 0.0
    %4911 = vmatprep.subr.mxu0 0.0
    %4912 = vmatpush1.msra.mxu0 0.0
    %4913 = vmatprep.subr.mxu0 0.0
    %4914 = vmatpush1.msra.mxu0 0.0
    %4915 = vmatprep.mubr.f32.mxu0 0.0
    %4916 = vmatmul.mubr.f32.gmra.mrb[0].mxu0 %v4849
    %v4917 = vpop.f32.mrb[0].mxu0
    %v4918 = vadd.f32 %v4846, %v4917
    %v4919 = vpop.f32.mrb[0].mxu0
    %v4920 = vadd.f32 %v4846, %v4919
    %4921 = vdwg.mxu0
    %4922 = vmatprep.subr.mxu0 %v4828
    %4923 = vmatpush1.msra.mxu0 %v4827
    %4924 = vmatprep.subr.mxu0 %v4832
    %4925 = vmatpush1.msra.mxu0 %v4831
    %4926 = vmatprep.subr.mxu0 %v4836
    %4927 = vmatpush1.msra.mxu0 %v4835
    %4928 = vmatprep.subr.mxu0 %v4840
    %4929 = vmatpush1.msra.mxu0 %v4839
    %4930 = vmatprep.subr.mxu0 0.0
    %4931 = vmatpush1.msra.mxu0 0.0
    %4932 = vmatprep.subr.mxu0 0.0
    %4933 = vmatpush1.msra.mxu0 0.0
    %4934 = vmatprep.subr.mxu0 0.0
    %4935 = vmatpush1.msra.mxu0 0.0
    %4936 = vmatprep.subr.mxu0 0.0
    %4937 = vmatpush1.msra.mxu0 0.0
    %4938 = vmatprep.subr.mxu0 0.0
    %4939 = vmatpush1.msra.mxu0 0.0
    %4940 = vmatprep.subr.mxu0 0.0
    %4941 = vmatpush1.msra.mxu0 0.0
    %4942 = vmatprep.subr.mxu0 0.0
    %4943 = vmatpush1.msra.mxu0 0.0
    %4944 = vmatprep.subr.mxu0 0.0
    %4945 = vmatpush1.msra.mxu0 0.0
    %4946 = vmatprep.subr.mxu0 0.0
    %4947 = vmatpush1.msra.mxu0 0.0
    %4948 = vmatprep.subr.mxu0 0.0
    %4949 = vmatpush1.msra.mxu0 0.0
    %4950 = vmatprep.subr.mxu0 0.0
    %4951 = vmatpush1.msra.mxu0 0.0
    %4952 = vmatprep.subr.mxu0 0.0
    %4953 = vmatpush1.msra.mxu0 0.0
    %4954 = vmatprep.subr.mxu0 0.0
    %4955 = vmatpush1.msra.mxu0 0.0
    %4956 = vmatprep.subr.mxu0 0.0
    %4957 = vmatpush1.msra.mxu0 0.0
    %4958 = vmatprep.subr.mxu0 0.0
    %4959 = vmatpush1.msra.mxu0 0.0
    %4960 = vmatprep.subr.mxu0 0.0
    %4961 = vmatpush1.msra.mxu0 0.0
    %4962 = vmatprep.subr.mxu0 0.0
    %4963 = vmatpush1.msra.mxu0 0.0
    %4964 = vmatprep.subr.mxu0 0.0
    %4965 = vmatpush1.msra.mxu0 0.0
    %4966 = vmatprep.subr.mxu0 0.0
    %4967 = vmatpush1.msra.mxu0 0.0
    %4968 = vmatprep.subr.mxu0 0.0
    %4969 = vmatpush1.msra.mxu0 0.0
    %4970 = vmatprep.subr.mxu0 0.0
    %4971 = vmatpush1.msra.mxu0 0.0
    %4972 = vmatprep.subr.mxu0 0.0
    %4973 = vmatpush1.msra.mxu0 0.0
    %4974 = vmatprep.subr.mxu0 0.0
    %4975 = vmatpush1.msra.mxu0 0.0
    %4976 = vmatprep.subr.mxu0 0.0
    %4977 = vmatpush1.msra.mxu0 0.0
    %4978 = vmatprep.subr.mxu0 0.0
    %4979 = vmatpush1.msra.mxu0 0.0
    %4980 = vmatprep.subr.mxu0 0.0
    %4981 = vmatpush1.msra.mxu0 0.0
    %4982 = vmatprep.subr.mxu0 0.0
    %4983 = vmatpush1.msra.mxu0 0.0
    %4984 = vmatprep.subr.mxu0 0.0
    %4985 = vmatpush1.msra.mxu0 0.0
    %4986 = vmatprep.mubr.f32.mxu0 0.0
    %4987 = vmatmul.mubr.f32.gmra.mrb[0].mxu0 %v4849
    %v4988 = vpop.f32.mrb[0].mxu0
    %v4989 = vadd.f32 %v4846, %v4988
    %v4990 = vpop.f32.mrb[0].mxu0
    %v4991 = vadd.f32 %v4846, %v4990
    %4992 = vdwg.mxu0
    %v4993 = vxor.u32 %v4918, 2147483648
    %v4994 = vxor.u32 %v4920, 2147483648
    %v4995 = vxor.u32 %v4989, 2147483648
    %v4996 = vxor.u32 %v4991, 2147483648
    %v4997 = vmul.f32 %v4993, 1.442695
    %v4998 = vpow.pop %v4997
    %v4999 = vmul.f32 %v4994, 1.442695
    %v5000 = vpow.pop %v4999
    %v5001 = vmul.f32 %v4995, 1.442695
    %v5002 = vpow.pop %v5001
    %v5003 = vmul.f32 %v4996, 1.442695
    %v5004 = vpow.pop %v5003
    %v5005 = vadd.f32 %v4998, 1.0
    %v5006 = vadd.f32 %v5000, 1.0
    %v5007 = vadd.f32 %v5002, 1.0
    %v5008 = vadd.f32 %v5004, 1.0
    %v5009 = vrcp.pop %v5005
    %v5010 = vmul.f32 1.0, %v5009
    %v5011 = vrcp.pop %v5006
    %v5012 = vmul.f32 1.0, %v5011
    %v5013 = vrcp.pop %v5007
    %v5014 = vmul.f32 1.0, %v5013
    %v5015 = vrcp.pop %v5008
    %v5016 = vmul.f32 1.0, %v5015
    %v5019 = vcombine.low %v4918, %v4920
    %v5021 = vunpack.c.l.s4 1983009808
    %v5022 = vunpack.c.0.s8 %v5021
    %v5023 = vlaneseq
    %v5024 = vshrl.u32 %v5023, 7
    %v5025 = vsub.s32 %v5022, %v5024
    %v5026 = vrot.slane %v5019, %v5025
    %5028 = vst [vmem:[#allocation2] sm:$0xf] %v5026
    %v5031 = vcombine.low %v5010, %v5012
    %v5033 = vunpack.c.l.s4 1966171168
    %v5034 = vunpack.c.0.s8 %v5033
    %v5035 = vlaneseq
    %v5036 = vshrl.u32 %v5035, 7
    %v5037 = vsub.s32 %v5034, %v5036
    %v5038 = vrot.slane %v5031, %v5037
    %v5040 = vunpack.c.l.s4 1966171168
    %v5041 = vunpack.c.0.s8 %v5040
    %v5042 = vlaneseq
    %v5043 = vshrl.u32 %v5042, 7
    %v5044 = vsub.s32 %v5041, %v5043
    %v5045 = vrot.slane %v5038, %v5044
    %v5046 = vcombine.high %v5045, %v5045
    %v5048 = vlaneseq
    %vm5049 = vcmp.ge.s32.totalorder %v5048, 0
    %vm5050 = vcmp.lt.s32.totalorder %v5048, 256
    %vm5051 = vmand %vm5049, %vm5050
    %5052 = vst.msk [vmem:[#allocation4] sm:$0x3] %vm5051, %v5046
    %v5055 = vcombine.low %v4989, %v4991
    %v5057 = vunpack.c.l.s4 1983009808
    %v5058 = vunpack.c.0.s8 %v5057
    %v5059 = vlaneseq
    %v5060 = vshrl.u32 %v5059, 7
    %v5061 = vsub.s32 %v5058, %v5060
    %v5062 = vrot.slane %v5055, %v5061
    %s5064 = scalar_lea.vmem [#allocation2], 4
    %5065 = vst [vmem:[%s5064] sm:$0xf] %v5062
    %v5068 = vcombine.low %v5014, %v5016
    %v5070 = vunpack.c.l.s4 1966171168
    %v5071 = vunpack.c.0.s8 %v5070
    %v5072 = vlaneseq
    %v5073 = vshrl.u32 %v5072, 7
    %v5074 = vsub.s32 %v5071, %v5073
    %v5075 = vrot.slane %v5068, %v5074
    %v5077 = vunpack.c.l.s4 1966171168
    %v5078 = vunpack.c.0.s8 %v5077
    %v5079 = vlaneseq
    %v5080 = vshrl.u32 %v5079, 7
    %v5081 = vsub.s32 %v5078, %v5080
    %v5082 = vrot.slane %v5075, %v5081
    %v5083 = vcombine.high %v5082, %v5082
    %s5085 = scalar_lea.vmem [#allocation4], 2
    %5086 = vst.msk [vmem:[%s5085] sm:$0x3] %vm5051, %v5083
    // Predicated region
    $region34: #{tpu_custom_call.1} parent=1 // pred_check
      _
    $region35: #{tpu_custom_call.1} parent=1 // pred_check_branch
      %5088 = sbr.rel (0) target = $region37
    $region36: #{tpu_custom_call.1} parent=1 // pred_region
      %s5090 = ssub.s32 128, 128
      %5091 = vsyncadd [#allocation3], %s5090
      %s5092 = sshll.u32 [#allocation2], 4
      %s5093 = int_to_ptr.vmem [resolvable:$true] %s5092
      %5098 = dma.vmem_to_hbm [thread:$0]  %s5093, 128, %s8, [#allocation3], 64, 64, 4
    $region37: #{tpu_custom_call.1} parent=1 // pred_fallthru
      _
    // Predicated region
    $region38: #{tpu_custom_call.1} parent=1 // pred_check
      _
    $region39: #{tpu_custom_call.1} parent=1 // pred_check_branch
      %5100 = sbr.rel (0) target = $region41
    $region40: #{tpu_custom_call.1} parent=1 // pred_region
      %s5102 = ssub.s32 64, 64
      %5103 = vsyncadd [#allocation5], %s5102
      %s5104 = sshll.u32 [#allocation4], 4
      %s5105 = int_to_ptr.vmem [resolvable:$true] %s5104
      %5110 = dma.vmem_to_hbm [thread:$0]  %s5105, 64, %s9, [#allocation5], 32, 32, 2
    $region41: #{tpu_custom_call.1} parent=1 // pred_fallthru
      _
    // Predicated region
    $region42: #{tpu_custom_call.1} parent=1 // pred_check
      _
    $region43: #{tpu_custom_call.1} parent=1 // pred_check_branch
      %5112 = sbr.rel (0) target = $region45
    $region44: #{tpu_custom_call.1} parent=1 // pred_region
      %5113 = dma.done [#allocation3], 128
    $region45: #{tpu_custom_call.1} parent=1 // pred_fallthru
      _
    // Predicated region
    $region46: #{tpu_custom_call.1} parent=1 // pred_check
      _
    $region47: #{tpu_custom_call.1} parent=1 // pred_check_branch
      %5115 = sbr.rel (0) target = $region49
    $region48: #{tpu_custom_call.1} parent=1 // pred_region
      %5116 = dma.done [#allocation5], 64
    $region49: #{tpu_custom_call.1} parent=1 // pred_fallthru
      _
    %5117 = vsyncpa [#allocation3], 1
    %5118 = vsyncpa [#allocation5], 1

</llo_original>
